<compile_context>
chip_gen: v6e
topology: v6e:2x2x1
jax: 0.10.0
libtpu: 0.0.40
codegen_flags: <defaults>
</compile_context>

<pallas_src>
import jax
import jax.numpy as jnp
import numpy as np
from jax.experimental import pallas as pl
from jax.experimental.pallas import tpu as pltpu


def _spatial_maxpool_kernel(s_even_ref, s_odd_ref, x_ref, o_ref):
    """One block.

    x_ref : (nb, C, tHo, 2*W)  lanes [0, W) hold input row 2*i, lanes [W, 2W)
                               hold input row 2*i + 1 (free view built by the
                               wrapper).  Columns are still interleaved:
                               window j uses columns 2j and 2j + 1.
    s_even_ref / s_odd_ref : (W, Wo) constant 0/1 column-selection matrices.
    o_ref : (nb, C, tHo, Wo)
    """
    nb, c, t_ho, w2 = x_ref.shape
    w = w2 // 2
    wo = w // 2
    cp = c - 5                                   # channels that get max-pooled

    s_even = s_even_ref[...]                     # (W, Wo)
    s_odd = s_odd_ref[...]                       # (W, Wo)
    xw = x_ref[...]                              # (nb, C, tHo, 2W) f32

    def sel(v2d, smat):                          # exact 0/1 column pick on MXU
        return jnp.dot(v2d, smat, precision=jax.lax.Precision.HIGHEST,
                       preferred_element_type=jnp.float32)

    # --- MaxPool2d over the 2x2 windows of the first C-5 channels -----------
    # VPU max over the two rows, VPU max with a one-lane shift (so the 2x2
    # window max sits at even columns), then ONE even-column selection matmul.
    m = jnp.maximum(xw[:, :cp, :, :w], xw[:, :cp, :, w:])       # (nb,cp,tHo,W)
    m2 = m.reshape(nb * cp * t_ho, w)
    mm = jnp.maximum(m2[:, :w - 1], m2[:, 1:])                  # [k]=max(m[k],m[k+1])
    pooled = sel(mm, s_even_ref[:w - 1]).reshape(nb, cp, t_ho, wo)

    # --- window shape weights: L1 over ALL channels, window-normalized ------
    # |x|-sum over channels commutes with column selection -> reduce first and
    # run the selection matmuls on (nb*tHo, W) rows only.
    # (the /sqrt(C-5) of the reference cancels exactly in the normalization)
    absall = jnp.sum(jnp.abs(xw), axis=1)                       # (nb, tHo, 2W)
    abs_rows = (absall[..., :w].reshape(nb * t_ho, w),
                absall[..., w:].reshape(nb * t_ho, w))

    # --- the 5 statistics channels: full 4-way de-interleave (5 rows only) --
    st_rows = (xw[:, cp:, :, :w].reshape(nb * 5 * t_ho, w),
               xw[:, cp:, :, w:].reshape(nb * 5 * t_ho, w))

    stats = []                                   # 4 x (nb, 5, tHo, Wo)
    wgt = []                                     # 4 x (nb, 1, tHo, Wo)
    for r in (0, 1):                             # input row 2i / 2i + 1
        for smat in (s_even, s_odd):             # even / odd column
            stats.append(sel(st_rows[r], smat).reshape(nb, 5, t_ho, wo))
            wgt.append(sel(abs_rows[r], smat).reshape(nb, 1, t_ho, wo))

    # normalized window weights: one reciprocal + 4 multiplies (no divides)
    den = wgt[0] + wgt[1] + wgt[2] + wgt[3]                     # (nb,1,tHo,Wo)
    inv = pl.reciprocal(den)                                    # exact (non-approx)
    wsq = [g * inv for g in wgt]

    a = [t[:, 0:1] for t in stats]               # channel -5
    b = [t[:, 1:2] for t in stats]               # channel -4
    va = [t[:, 2:3] for t in stats]              # channel -3
    vb = [t[:, 3:4] for t in stats]              # channel -2
    cv = [t[:, 4:5] for t in stats]              # channel -1

    def wsum(vals, wts):
        return (vals[0] * wts[0] + vals[1] * wts[1]
                + vals[2] * wts[2] + vals[3] * wts[3])

    mean_a = wsum(a, wsq)                        # (nb, 1, tHo, Wo)
    mean_b = wsum(b, wsq)
    var_a = wsum(va, wsq) + wsum([(t - mean_a) ** 2 for t in a], wsq)
    var_b = wsum(vb, wsq) + wsum([(t - mean_b) ** 2 for t in b], wsq)
    wsq2 = [t * t for t in wsq]
    covar = (wsum(cv, wsq)
             + wsum([(a[k] - mean_a) * (b[k] - mean_b) for k in range(4)], wsq2))

    # Direct ref stores on the leading (channel) axis -- no concatenate temp.
    o_ref[:, :cp] = pooled
    o_ref[:, cp + 0:cp + 1] = mean_a
    o_ref[:, cp + 1:cp + 2] = mean_b
    o_ref[:, cp + 2:cp + 3] = var_a
    o_ref[:, cp + 3:cp + 4] = var_b
    o_ref[:, cp + 4:cp + 5] = covar


def _vmem_budgets():
    """Return (input-block byte budget, explicit vmem_limit_bytes or None)."""
    try:
        cap = int(pltpu.get_tpu_info().vmem_capacity_bytes)
    except Exception:
        cap = 0
    if cap >= (96 << 20):
        # v5e / v6e class (128 MiB physical VMEM): bigger blocks amortize the
        # ~0.35 us per-grid-step overhead; raise the scoped-VMEM limit (v5e's
        # default is only 16 MiB) so 2x-buffered blocks + intermediates fit.
        return 6 << 20, 64 << 20
    # v7x-class (64 MiB per TensorCore) or unknown: modest blocks that stay
    # inside the default scoped limit and keep double-buffering intact.
    return 2 << 20, None


def _choose_tiling(n, c, ho, w2, in_budget):
    """Pick (nb, t_ho, grid): input block (nb, C, t_ho, w2) within budget,
    t_ho a multiple of 8 whenever Ho is split (free in-kernel reshapes, masked
    cdiv tail block), and >= 2 grid steps when there is enough work so both
    v7x TensorCores are used."""
    row_bytes = c * w2 * 4
    img_bytes = row_bytes * ho

    if img_bytes <= in_budget:
        # Whole image(s) per grid step; pack batch images to enlarge DMAs.
        nb = int(min(n, max(1, in_budget // img_bytes)))
        while n % nb:
            nb -= 1
        t_ho = ho
    else:
        # Split Ho with a sublane-aligned tile (tail block masked by Pallas).
        nb = 1
        t_ho = int(min(ho, max(8, (in_budget // row_bytes) // 8 * 8)))

    def n_steps(nb_, t_):
        return (n // nb_) * ((ho + t_ - 1) // t_)

    if n_steps(nb, t_ho) < 2:
        if nb > 1:                        # split the batch over >= 2 steps
            for cand in range(nb // 2, 0, -1):
                if n % cand == 0:
                    nb = cand
                    break
        elif ho > 8:                      # split Ho over >= 2 steps
            half = ((ho + 1) // 2 + 7) // 8 * 8
            if half < ho:
                t_ho = half

    grid = (n // nb, (ho + t_ho - 1) // t_ho)
    return nb, t_ho, grid


def spatial_maxpool2d(x, kernel_size=2, stride=2):
    assert kernel_size == 2 and stride == 2, "kernel specialized to k=stride=2"
    x = x.astype(jnp.float32)
    n, c, h, w_in = x.shape
    assert c > 5, "module requires more than 5 input channels"
    ho, wo = (h - 2) // 2 + 1, (w_in - 2) // 2 + 1
    w = 2 * wo                                    # cropped input width
    w2 = 2 * w

    # Drop rows/cols not covered by any window (no-op for even H, W), then take
    # the FREE contiguous view putting rows 2i and 2i+1 side by side on lanes.
    xv = x[:, :, :2 * ho, :w].reshape(n, c, ho, w2)

    # Constant 0/1 even/odd column-selection matrices, hoisted out of the
    # kernel; grid-invariant index_map => fetched once, stays VMEM-resident.
    cols = np.arange(wo)
    s_even = np.zeros((w, wo), np.float32)
    s_odd = np.zeros((w, wo), np.float32)
    s_even[2 * cols, cols] = 1.0
    s_odd[2 * cols + 1, cols] = 1.0

    in_budget, vmem_limit = _vmem_budgets()
    nb, t_ho, grid = _choose_tiling(n, c, ho, w2, in_budget)

    return pl.pallas_call(
        _spatial_maxpool_kernel,
        out_shape=jax.ShapeDtypeStruct((n, c, ho, wo), jnp.float32),
        grid_spec=pltpu.PrefetchScalarGridSpec(
            num_scalar_prefetch=0,
            grid=grid,
            in_specs=[
                pl.BlockSpec((w, wo), lambda bi, ti: (0, 0)),
                pl.BlockSpec((w, wo), lambda bi, ti: (0, 0)),
                pl.BlockSpec((nb, c, t_ho, w2), lambda bi, ti: (bi, 0, ti, 0)),
            ],
            out_specs=pl.BlockSpec((nb, c, t_ho, wo),
                                   lambda bi, ti: (bi, 0, ti, 0)),
        ),
        compiler_params=pltpu.CompilerParams(
            dimension_semantics=("parallel", "parallel"),
            vmem_limit_bytes=vmem_limit),
    )(jnp.asarray(s_even), jnp.asarray(s_odd), xv)


# ----------------------------- verification ---------------------------------

def _unfold_nchw(x, k, stride):
    """im2col matching torch.nn.functional.unfold ordering, kept per-channel."""
    n, c, h, w = x.shape
    ho = (h - k) // stride + 1
    wo = (w - k) // stride + 1
    patches = []
    for ki in range(k):
        for kj in range(k):
            patches.append(
                x[:, :, ki:ki + stride * (ho - 1) + 1:stride,
                      kj:kj + stride * (wo - 1) + 1:stride])
    xu = jnp.stack(patches, axis=1)                  # (N, k*k, C, Ho, Wo)
    return xu.reshape(n, k * k, c, ho * wo), ho, wo


def _reference(x, kernel_size=2, stride=2):
    """Pure-JAX replica of the (live) PyTorch forward, for verification."""
    x = x.astype(jnp.float32)
    n, c, h, w = x.shape
    cp = c - 5
    xu, ho, wo = _unfold_nchw(x, kernel_size, stride)     # (N, kk, C, L)
    pooled = jnp.max(xu[:, :, :cp, :], axis=1)            # (N, cp, L)
    sw = jnp.sum(jnp.abs(xu), axis=2) / jnp.sqrt(jnp.float32(cp))
    wsq = sw / jnp.sum(jnp.abs(sw), axis=1, keepdims=True)          # (N, kk, L)
    a, b = xu[:, :, cp, :], xu[:, :, cp + 1, :]
    va, vb, cv = xu[:, :, cp + 2, :], xu[:, :, cp + 3, :], xu[:, :, cp + 4, :]
    mean_a = jnp.sum(a * wsq, axis=1, keepdims=True)
    mean_b = jnp.sum(b * wsq, axis=1, keepdims=True)
    var_a = (jnp.sum(va * wsq, axis=1, keepdims=True)
             + jnp.sum((a - mean_a) ** 2 * wsq, axis=1, keepdims=True))
    var_b = (jnp.sum(vb * wsq, axis=1, keepdims=True)
             + jnp.sum((b - mean_b) ** 2 * wsq, axis=1, keepdims=True))
    covar = (jnp.sum(cv * wsq, axis=1, keepdims=True)
             + jnp.sum((a - mean_a) * (b - mean_b) * wsq ** 2,
                       axis=1, keepdims=True))
    agg = jnp.concatenate([mean_a, mean_b, var_a, var_b, covar], axis=1)
    out = jnp.concatenate([pooled, agg], axis=1)          # (N, C, L)
    return out.reshape(n, c, ho, wo)


if __name__ == "__main__":
    key = jax.random.PRNGKey(0)
    # batch=2, channels=16 (11 pooled + 5 statistics channels), spatial=16x16
    x = jax.random.normal(key, (2, 16, 16, 16), dtype=jnp.float32)

    out = spatial_maxpool2d(x, kernel_size=2, stride=2)
    out = jax.block_until_ready(out)

    ref = _reference(x, kernel_size=2, stride=2)
    assert out.shape == (2, 16, 8, 8), out.shape
    np.testing.assert_allclose(np.asarray(out), np.asarray(ref),
                               rtol=1e-5, atol=1e-5)
    print("KERNEL_OK")
</pallas_src>

<mosaic_0001>
module attributes {stable_mosaic.version = 11 : i64} {
  func.func @_spatial_maxpool_kernel(%arg0: i32, %arg1: i32, %arg2: memref<16x8xf32, #tpu.memory_space<vmem>>, %arg3: memref<16x8xf32, #tpu.memory_space<vmem>>, %arg4: memref<1x16x8x32xf32, #tpu.memory_space<vmem>>, %arg5: memref<1x16x8x8xf32, #tpu.memory_space<vmem>>) attributes {dimension_semantics = [#tpu.dimension_semantics<parallel>, #tpu.dimension_semantics<parallel>], iteration_bounds = array<i64: 2, 1>, scalar_prefetch = 0 : i64, scratch_operands = 0 : i64, tpu.core_type = #tpu.core_type<tc>, window_params = [{pipeline_mode = #tpu.pipeline_mode<synchronous>, transform_indices = @transform_0, window_bounds = array<i64: 16, 8>}, {pipeline_mode = #tpu.pipeline_mode<synchronous>, transform_indices = @transform_1, window_bounds = array<i64: 16, 8>}, {transform_indices = @transform_2, window_bounds = array<i64: 1, 16, 8, 32>}, {transform_indices = @transform_3, window_bounds = array<i64: 1, 16, 8, 8>}]} {
    %c0 = arith.constant 0 : index
    %c0_0 = arith.constant 0 : index
    %0 = vector.load %arg2[%c0, %c0_0] : memref<16x8xf32, #tpu.memory_space<vmem>>, vector<16x8xf32>
    %c0_1 = arith.constant 0 : index
    %c0_2 = arith.constant 0 : index
    %1 = vector.load %arg3[%c0_1, %c0_2] : memref<16x8xf32, #tpu.memory_space<vmem>>, vector<16x8xf32>
    %c0_3 = arith.constant 0 : index
    %c0_4 = arith.constant 0 : index
    %c0_5 = arith.constant 0 : index
    %c0_6 = arith.constant 0 : index
    %2 = vector.load %arg4[%c0_3, %c0_4, %c0_5, %c0_6] : memref<1x16x8x32xf32, #tpu.memory_space<vmem>>, vector<1x16x8x32xf32>
    %3 = vector.extract_strided_slice %2 {offsets = [0, 0, 0, 0], sizes = [1, 11, 8, 16], strides = [1, 1, 1, 1]} : vector<1x16x8x32xf32> to vector<1x11x8x16xf32>
    %4 = vector.extract_strided_slice %2 {offsets = [0, 0, 0, 16], sizes = [1, 11, 8, 16], strides = [1, 1, 1, 1]} : vector<1x16x8x32xf32> to vector<1x11x8x16xf32>
    %5 = arith.maximumf %3, %4 : vector<1x11x8x16xf32>
    %6 = vector.shape_cast %5 : vector<1x11x8x16xf32> to vector<88x16xf32>
    %7 = vector.extract_strided_slice %6 {offsets = [0, 0], sizes = [88, 15], strides = [1, 1]} : vector<88x16xf32> to vector<88x15xf32>
    %8 = vector.extract_strided_slice %6 {offsets = [0, 1], sizes = [88, 15], strides = [1, 1]} : vector<88x16xf32> to vector<88x15xf32>
    %9 = arith.maximumf %7, %8 : vector<88x15xf32>
    %c0_7 = arith.constant 0 : index
    %c0_8 = arith.constant 0 : index
    %10 = vector.load %arg2[%c0_7, %c0_8] : memref<16x8xf32, #tpu.memory_space<vmem>>, vector<15x8xf32>
    %cst = arith.constant dense<0.000000e+00> : vector<88x8xf32>
    %11 = tpu.matmul %9, %10, %cst {dimension_numbers = #tpu.dot_dimension_numbers<[1], [0], [0], [1], [0, 0, 1, 1], [], []>, precision = #tpu.contract_precision<fp32>} : vector<88x15xf32>, vector<15x8xf32>, vector<88x8xf32> -> vector<88x8xf32>
    %12 = vector.shape_cast %11 : vector<88x8xf32> to vector<1x11x8x8xf32>
    %13 = math.absf %2 : vector<1x16x8x32xf32>
    %cst_9 = arith.constant dense<0.000000e+00> : vector<1x8x32xf32>
    %14 = vector.multi_reduction <add>, %13, %cst_9 [1] : vector<1x16x8x32xf32> to vector<1x8x32xf32>
    %15 = vector.extract_strided_slice %14 {offsets = [0, 0, 0], sizes = [1, 8, 16], strides = [1, 1, 1]} : vector<1x8x32xf32> to vector<1x8x16xf32>
    %16 = vector.shape_cast %15 : vector<1x8x16xf32> to vector<8x16xf32>
    %17 = vector.extract_strided_slice %14 {offsets = [0, 0, 16], sizes = [1, 8, 16], strides = [1, 1, 1]} : vector<1x8x32xf32> to vector<1x8x16xf32>
    %18 = vector.shape_cast %17 : vector<1x8x16xf32> to vector<8x16xf32>
    %19 = vector.extract_strided_slice %2 {offsets = [0, 11, 0, 0], sizes = [1, 5, 8, 16], strides = [1, 1, 1, 1]} : vector<1x16x8x32xf32> to vector<1x5x8x16xf32>
    %20 = vector.shape_cast %19 : vector<1x5x8x16xf32> to vector<40x16xf32>
    %21 = vector.extract_strided_slice %2 {offsets = [0, 11, 0, 16], sizes = [1, 5, 8, 16], strides = [1, 1, 1, 1]} : vector<1x16x8x32xf32> to vector<1x5x8x16xf32>
    %22 = vector.shape_cast %21 : vector<1x5x8x16xf32> to vector<40x16xf32>
    %cst_10 = arith.constant dense<0.000000e+00> : vector<40x8xf32>
    %23 = tpu.matmul %20, %0, %cst_10 {dimension_numbers = #tpu.dot_dimension_numbers<[1], [0], [0], [1], [0, 0, 1, 1], [], []>, precision = #tpu.contract_precision<fp32>} : vector<40x16xf32>, vector<16x8xf32>, vector<40x8xf32> -> vector<40x8xf32>
    %24 = vector.shape_cast %23 : vector<40x8xf32> to vector<1x5x8x8xf32>
    %cst_11 = arith.constant dense<0.000000e+00> : vector<8x8xf32>
    %25 = tpu.matmul %16, %0, %cst_11 {dimension_numbers = #tpu.dot_dimension_numbers<[1], [0], [0], [1], [0, 0, 1, 1], [], []>, precision = #tpu.contract_precision<fp32>} : vector<8x16xf32>, vector<16x8xf32>, vector<8x8xf32> -> vector<8x8xf32>
    %26 = vector.shape_cast %25 : vector<8x8xf32> to vector<1x1x8x8xf32>
    %cst_12 = arith.constant dense<0.000000e+00> : vector<40x8xf32>
    %27 = tpu.matmul %20, %1, %cst_12 {dimension_numbers = #tpu.dot_dimension_numbers<[1], [0], [0], [1], [0, 0, 1, 1], [], []>, precision = #tpu.contract_precision<fp32>} : vector<40x16xf32>, vector<16x8xf32>, vector<40x8xf32> -> vector<40x8xf32>
    %28 = vector.shape_cast %27 : vector<40x8xf32> to vector<1x5x8x8xf32>
    %cst_13 = arith.constant dense<0.000000e+00> : vector<8x8xf32>
    %29 = tpu.matmul %16, %1, %cst_13 {dimension_numbers = #tpu.dot_dimension_numbers<[1], [0], [0], [1], [0, 0, 1, 1], [], []>, precision = #tpu.contract_precision<fp32>} : vector<8x16xf32>, vector<16x8xf32>, vector<8x8xf32> -> vector<8x8xf32>
    %30 = vector.shape_cast %29 : vector<8x8xf32> to vector<1x1x8x8xf32>
    %cst_14 = arith.constant dense<0.000000e+00> : vector<40x8xf32>
    %31 = tpu.matmul %22, %0, %cst_14 {dimension_numbers = #tpu.dot_dimension_numbers<[1], [0], [0], [1], [0, 0, 1, 1], [], []>, precision = #tpu.contract_precision<fp32>} : vector<40x16xf32>, vector<16x8xf32>, vector<40x8xf32> -> vector<40x8xf32>
    %32 = vector.shape_cast %31 : vector<40x8xf32> to vector<1x5x8x8xf32>
    %cst_15 = arith.constant dense<0.000000e+00> : vector<8x8xf32>
    %33 = tpu.matmul %18, %0, %cst_15 {dimension_numbers = #tpu.dot_dimension_numbers<[1], [0], [0], [1], [0, 0, 1, 1], [], []>, precision = #tpu.contract_precision<fp32>} : vector<8x16xf32>, vector<16x8xf32>, vector<8x8xf32> -> vector<8x8xf32>
    %34 = vector.shape_cast %33 : vector<8x8xf32> to vector<1x1x8x8xf32>
    %cst_16 = arith.constant dense<0.000000e+00> : vector<40x8xf32>
    %35 = tpu.matmul %22, %1, %cst_16 {dimension_numbers = #tpu.dot_dimension_numbers<[1], [0], [0], [1], [0, 0, 1, 1], [], []>, precision = #tpu.contract_precision<fp32>} : vector<40x16xf32>, vector<16x8xf32>, vector<40x8xf32> -> vector<40x8xf32>
    %36 = vector.shape_cast %35 : vector<40x8xf32> to vector<1x5x8x8xf32>
    %cst_17 = arith.constant dense<0.000000e+00> : vector<8x8xf32>
    %37 = tpu.matmul %18, %1, %cst_17 {dimension_numbers = #tpu.dot_dimension_numbers<[1], [0], [0], [1], [0, 0, 1, 1], [], []>, precision = #tpu.contract_precision<fp32>} : vector<8x16xf32>, vector<16x8xf32>, vector<8x8xf32> -> vector<8x8xf32>
    %38 = vector.shape_cast %37 : vector<8x8xf32> to vector<1x1x8x8xf32>
    %39 = arith.addf %26, %30 : vector<1x1x8x8xf32>
    %40 = arith.addf %39, %34 : vector<1x1x8x8xf32>
    %41 = arith.addf %40, %38 : vector<1x1x8x8xf32>
    %42 = tpu.reciprocal %41 : vector<1x1x8x8xf32> -> vector<1x1x8x8xf32>
    %43 = arith.mulf %26, %42 : vector<1x1x8x8xf32>
    %44 = arith.mulf %30, %42 : vector<1x1x8x8xf32>
    %45 = arith.mulf %34, %42 : vector<1x1x8x8xf32>
    %46 = arith.mulf %38, %42 : vector<1x1x8x8xf32>
    %47 = vector.extract_strided_slice %24 {offsets = [0, 0, 0, 0], sizes = [1, 1, 8, 8], strides = [1, 1, 1, 1]} : vector<1x5x8x8xf32> to vector<1x1x8x8xf32>
    %48 = vector.extract_strided_slice %28 {offsets = [0, 0, 0, 0], sizes = [1, 1, 8, 8], strides = [1, 1, 1, 1]} : vector<1x5x8x8xf32> to vector<1x1x8x8xf32>
    %49 = vector.extract_strided_slice %32 {offsets = [0, 0, 0, 0], sizes = [1, 1, 8, 8], strides = [1, 1, 1, 1]} : vector<1x5x8x8xf32> to vector<1x1x8x8xf32>
    %50 = vector.extract_strided_slice %36 {offsets = [0, 0, 0, 0], sizes = [1, 1, 8, 8], strides = [1, 1, 1, 1]} : vector<1x5x8x8xf32> to vector<1x1x8x8xf32>
    %51 = vector.extract_strided_slice %24 {offsets = [0, 1, 0, 0], sizes = [1, 1, 8, 8], strides = [1, 1, 1, 1]} : vector<1x5x8x8xf32> to vector<1x1x8x8xf32>
    %52 = vector.extract_strided_slice %28 {offsets = [0, 1, 0, 0], sizes = [1, 1, 8, 8], strides = [1, 1, 1, 1]} : vector<1x5x8x8xf32> to vector<1x1x8x8xf32>
    %53 = vector.extract_strided_slice %32 {offsets = [0, 1, 0, 0], sizes = [1, 1, 8, 8], strides = [1, 1, 1, 1]} : vector<1x5x8x8xf32> to vector<1x1x8x8xf32>
    %54 = vector.extract_strided_slice %36 {offsets = [0, 1, 0, 0], sizes = [1, 1, 8, 8], strides = [1, 1, 1, 1]} : vector<1x5x8x8xf32> to vector<1x1x8x8xf32>
    %55 = vector.extract_strided_slice %24 {offsets = [0, 2, 0, 0], sizes = [1, 1, 8, 8], strides = [1, 1, 1, 1]} : vector<1x5x8x8xf32> to vector<1x1x8x8xf32>
    %56 = vector.extract_strided_slice %28 {offsets = [0, 2, 0, 0], sizes = [1, 1, 8, 8], strides = [1, 1, 1, 1]} : vector<1x5x8x8xf32> to vector<1x1x8x8xf32>
    %57 = vector.extract_strided_slice %32 {offsets = [0, 2, 0, 0], sizes = [1, 1, 8, 8], strides = [1, 1, 1, 1]} : vector<1x5x8x8xf32> to vector<1x1x8x8xf32>
    %58 = vector.extract_strided_slice %36 {offsets = [0, 2, 0, 0], sizes = [1, 1, 8, 8], strides = [1, 1, 1, 1]} : vector<1x5x8x8xf32> to vector<1x1x8x8xf32>
    %59 = vector.extract_strided_slice %24 {offsets = [0, 3, 0, 0], sizes = [1, 1, 8, 8], strides = [1, 1, 1, 1]} : vector<1x5x8x8xf32> to vector<1x1x8x8xf32>
    %60 = vector.extract_strided_slice %28 {offsets = [0, 3, 0, 0], sizes = [1, 1, 8, 8], strides = [1, 1, 1, 1]} : vector<1x5x8x8xf32> to vector<1x1x8x8xf32>
    %61 = vector.extract_strided_slice %32 {offsets = [0, 3, 0, 0], sizes = [1, 1, 8, 8], strides = [1, 1, 1, 1]} : vector<1x5x8x8xf32> to vector<1x1x8x8xf32>
    %62 = vector.extract_strided_slice %36 {offsets = [0, 3, 0, 0], sizes = [1, 1, 8, 8], strides = [1, 1, 1, 1]} : vector<1x5x8x8xf32> to vector<1x1x8x8xf32>
    %63 = vector.extract_strided_slice %24 {offsets = [0, 4, 0, 0], sizes = [1, 1, 8, 8], strides = [1, 1, 1, 1]} : vector<1x5x8x8xf32> to vector<1x1x8x8xf32>
    %64 = vector.extract_strided_slice %28 {offsets = [0, 4, 0, 0], sizes = [1, 1, 8, 8], strides = [1, 1, 1, 1]} : vector<1x5x8x8xf32> to vector<1x1x8x8xf32>
    %65 = vector.extract_strided_slice %32 {offsets = [0, 4, 0, 0], sizes = [1, 1, 8, 8], strides = [1, 1, 1, 1]} : vector<1x5x8x8xf32> to vector<1x1x8x8xf32>
    %66 = vector.extract_strided_slice %36 {offsets = [0, 4, 0, 0], sizes = [1, 1, 8, 8], strides = [1, 1, 1, 1]} : vector<1x5x8x8xf32> to vector<1x1x8x8xf32>
    %67 = arith.mulf %47, %43 : vector<1x1x8x8xf32>
    %68 = arith.mulf %48, %44 : vector<1x1x8x8xf32>
    %69 = arith.addf %67, %68 : vector<1x1x8x8xf32>
    %70 = arith.mulf %49, %45 : vector<1x1x8x8xf32>
    %71 = arith.addf %69, %70 : vector<1x1x8x8xf32>
    %72 = arith.mulf %50, %46 : vector<1x1x8x8xf32>
    %73 = arith.addf %71, %72 : vector<1x1x8x8xf32>
    %74 = arith.mulf %51, %43 : vector<1x1x8x8xf32>
    %75 = arith.mulf %52, %44 : vector<1x1x8x8xf32>
    %76 = arith.addf %74, %75 : vector<1x1x8x8xf32>
    %77 = arith.mulf %53, %45 : vector<1x1x8x8xf32>
    %78 = arith.addf %76, %77 : vector<1x1x8x8xf32>
    %79 = arith.mulf %54, %46 : vector<1x1x8x8xf32>
    %80 = arith.addf %78, %79 : vector<1x1x8x8xf32>
    %81 = arith.mulf %55, %43 : vector<1x1x8x8xf32>
    %82 = arith.mulf %56, %44 : vector<1x1x8x8xf32>
    %83 = arith.addf %81, %82 : vector<1x1x8x8xf32>
    %84 = arith.mulf %57, %45 : vector<1x1x8x8xf32>
    %85 = arith.addf %83, %84 : vector<1x1x8x8xf32>
    %86 = arith.mulf %58, %46 : vector<1x1x8x8xf32>
    %87 = arith.addf %85, %86 : vector<1x1x8x8xf32>
    %88 = arith.subf %47, %73 : vector<1x1x8x8xf32>
    %89 = arith.mulf %88, %88 : vector<1x1x8x8xf32>
    %90 = arith.subf %48, %73 : vector<1x1x8x8xf32>
    %91 = arith.mulf %90, %90 : vector<1x1x8x8xf32>
    %92 = arith.subf %49, %73 : vector<1x1x8x8xf32>
    %93 = arith.mulf %92, %92 : vector<1x1x8x8xf32>
    %94 = arith.subf %50, %73 : vector<1x1x8x8xf32>
    %95 = arith.mulf %94, %94 : vector<1x1x8x8xf32>
    %96 = arith.mulf %89, %43 : vector<1x1x8x8xf32>
    %97 = arith.mulf %91, %44 : vector<1x1x8x8xf32>
    %98 = arith.addf %96, %97 : vector<1x1x8x8xf32>
    %99 = arith.mulf %93, %45 : vector<1x1x8x8xf32>
    %100 = arith.addf %98, %99 : vector<1x1x8x8xf32>
    %101 = arith.mulf %95, %46 : vector<1x1x8x8xf32>
    %102 = arith.addf %100, %101 : vector<1x1x8x8xf32>
    %103 = arith.addf %87, %102 : vector<1x1x8x8xf32>
    %104 = arith.mulf %59, %43 : vector<1x1x8x8xf32>
    %105 = arith.mulf %60, %44 : vector<1x1x8x8xf32>
    %106 = arith.addf %104, %105 : vector<1x1x8x8xf32>
    %107 = arith.mulf %61, %45 : vector<1x1x8x8xf32>
    %108 = arith.addf %106, %107 : vector<1x1x8x8xf32>
    %109 = arith.mulf %62, %46 : vector<1x1x8x8xf32>
    %110 = arith.addf %108, %109 : vector<1x1x8x8xf32>
    %111 = arith.subf %51, %80 : vector<1x1x8x8xf32>
    %112 = arith.mulf %111, %111 : vector<1x1x8x8xf32>
    %113 = arith.subf %52, %80 : vector<1x1x8x8xf32>
    %114 = arith.mulf %113, %113 : vector<1x1x8x8xf32>
    %115 = arith.subf %53, %80 : vector<1x1x8x8xf32>
    %116 = arith.mulf %115, %115 : vector<1x1x8x8xf32>
    %117 = arith.subf %54, %80 : vector<1x1x8x8xf32>
    %118 = arith.mulf %117, %117 : vector<1x1x8x8xf32>
    %119 = arith.mulf %112, %43 : vector<1x1x8x8xf32>
    %120 = arith.mulf %114, %44 : vector<1x1x8x8xf32>
    %121 = arith.addf %119, %120 : vector<1x1x8x8xf32>
    %122 = arith.mulf %116, %45 : vector<1x1x8x8xf32>
    %123 = arith.addf %121, %122 : vector<1x1x8x8xf32>
    %124 = arith.mulf %118, %46 : vector<1x1x8x8xf32>
    %125 = arith.addf %123, %124 : vector<1x1x8x8xf32>
    %126 = arith.addf %110, %125 : vector<1x1x8x8xf32>
    %127 = arith.mulf %43, %43 : vector<1x1x8x8xf32>
    %128 = arith.mulf %44, %44 : vector<1x1x8x8xf32>
    %129 = arith.mulf %45, %45 : vector<1x1x8x8xf32>
    %130 = arith.mulf %46, %46 : vector<1x1x8x8xf32>
    %131 = arith.mulf %63, %43 : vector<1x1x8x8xf32>
    %132 = arith.mulf %64, %44 : vector<1x1x8x8xf32>
    %133 = arith.addf %131, %132 : vector<1x1x8x8xf32>
    %134 = arith.mulf %65, %45 : vector<1x1x8x8xf32>
    %135 = arith.addf %133, %134 : vector<1x1x8x8xf32>
    %136 = arith.mulf %66, %46 : vector<1x1x8x8xf32>
    %137 = arith.addf %135, %136 : vector<1x1x8x8xf32>
    %138 = arith.subf %47, %73 : vector<1x1x8x8xf32>
    %139 = arith.subf %51, %80 : vector<1x1x8x8xf32>
    %140 = arith.mulf %138, %139 : vector<1x1x8x8xf32>
    %141 = arith.subf %48, %73 : vector<1x1x8x8xf32>
    %142 = arith.subf %52, %80 : vector<1x1x8x8xf32>
    %143 = arith.mulf %141, %142 : vector<1x1x8x8xf32>
    %144 = arith.subf %49, %73 : vector<1x1x8x8xf32>
    %145 = arith.subf %53, %80 : vector<1x1x8x8xf32>
    %146 = arith.mulf %144, %145 : vector<1x1x8x8xf32>
    %147 = arith.subf %50, %73 : vector<1x1x8x8xf32>
    %148 = arith.subf %54, %80 : vector<1x1x8x8xf32>
    %149 = arith.mulf %147, %148 : vector<1x1x8x8xf32>
    %150 = arith.mulf %140, %127 : vector<1x1x8x8xf32>
    %151 = arith.mulf %143, %128 : vector<1x1x8x8xf32>
    %152 = arith.addf %150, %151 : vector<1x1x8x8xf32>
    %153 = arith.mulf %146, %129 : vector<1x1x8x8xf32>
    %154 = arith.addf %152, %153 : vector<1x1x8x8xf32>
    %155 = arith.mulf %149, %130 : vector<1x1x8x8xf32>
    %156 = arith.addf %154, %155 : vector<1x1x8x8xf32>
    %157 = arith.addf %137, %156 : vector<1x1x8x8xf32>
    %c0_18 = arith.constant 0 : index
    %c0_19 = arith.constant 0 : index
    %c0_20 = arith.constant 0 : index
    %c0_21 = arith.constant 0 : index
    %158 = vector.load %arg5[%c0_18, %c0_19, %c0_20, %c0_21] : memref<1x16x8x8xf32, #tpu.memory_space<vmem>>, vector<1x11x8x8xf32>
    tpu.vector_store %arg5[%c0_18, %c0_19, %c0_20, %c0_21], %12 {strides = array<i32>} : memref<1x16x8x8xf32, #tpu.memory_space<vmem>>, vector<1x11x8x8xf32>,
    %c0_22 = arith.constant 0 : index
    %c11 = arith.constant 11 : index
    %c0_23 = arith.constant 0 : index
    %c0_24 = arith.constant 0 : index
    %159 = vector.load %arg5[%c0_22, %c11, %c0_23, %c0_24] : memref<1x16x8x8xf32, #tpu.memory_space<vmem>>, vector<1x1x8x8xf32>
    tpu.vector_store %arg5[%c0_22, %c11, %c0_23, %c0_24], %73 {strides = array<i32>} : memref<1x16x8x8xf32, #tpu.memory_space<vmem>>, vector<1x1x8x8xf32>,
    %c0_25 = arith.constant 0 : index
    %c12 = arith.constant 12 : index
    %c0_26 = arith.constant 0 : index
    %c0_27 = arith.constant 0 : index
    %160 = vector.load %arg5[%c0_25, %c12, %c0_26, %c0_27] : memref<1x16x8x8xf32, #tpu.memory_space<vmem>>, vector<1x1x8x8xf32>
    tpu.vector_store %arg5[%c0_25, %c12, %c0_26, %c0_27], %80 {strides = array<i32>} : memref<1x16x8x8xf32, #tpu.memory_space<vmem>>, vector<1x1x8x8xf32>,
    %c0_28 = arith.constant 0 : index
    %c13 = arith.constant 13 : index
    %c0_29 = arith.constant 0 : index
    %c0_30 = arith.constant 0 : index
    %161 = vector.load %arg5[%c0_28, %c13, %c0_29, %c0_30] : memref<1x16x8x8xf32, #tpu.memory_space<vmem>>, vector<1x1x8x8xf32>
    tpu.vector_store %arg5[%c0_28, %c13, %c0_29, %c0_30], %103 {strides = array<i32>} : memref<1x16x8x8xf32, #tpu.memory_space<vmem>>, vector<1x1x8x8xf32>,
    %c0_31 = arith.constant 0 : index
    %c14 = arith.constant 14 : index
    %c0_32 = arith.constant 0 : index
    %c0_33 = arith.constant 0 : index
    %162 = vector.load %arg5[%c0_31, %c14, %c0_32, %c0_33] : memref<1x16x8x8xf32, #tpu.memory_space<vmem>>, vector<1x1x8x8xf32>
    tpu.vector_store %arg5[%c0_31, %c14, %c0_32, %c0_33], %126 {strides = array<i32>} : memref<1x16x8x8xf32, #tpu.memory_space<vmem>>, vector<1x1x8x8xf32>,
    %c0_34 = arith.constant 0 : index
    %c15 = arith.constant 15 : index
    %c0_35 = arith.constant 0 : index
    %c0_36 = arith.constant 0 : index
    %163 = vector.load %arg5[%c0_34, %c15, %c0_35, %c0_36] : memref<1x16x8x8xf32, #tpu.memory_space<vmem>>, vector<1x1x8x8xf32>
    tpu.vector_store %arg5[%c0_34, %c15, %c0_35, %c0_36], %157 {strides = array<i32>} : memref<1x16x8x8xf32, #tpu.memory_space<vmem>>, vector<1x1x8x8xf32>,
    return
  }
  func.func @transform_0(%arg0: i32, %arg1: i32) -> (i32, i32) {
    %c0_i32 = arith.constant 0 : i32
    %c0_i32_0 = arith.constant 0 : i32
    %c0_i32_1 = arith.constant 0 : i32
    return %c0_i32, %c0_i32_0 : i32, i32
  }
  func.func @transform_1(%arg0: i32, %arg1: i32) -> (i32, i32) {
    %c0_i32 = arith.constant 0 : i32
    %c0_i32_0 = arith.constant 0 : i32
    %c0_i32_1 = arith.constant 0 : i32
    return %c0_i32, %c0_i32_0 : i32, i32
  }
  func.func @transform_2(%arg0: i32, %arg1: i32) -> (i32, i32, i32, i32) {
    %c0_i32 = arith.constant 0 : i32
    %c0_i32_0 = arith.constant 0 : i32
    %c0_i32_1 = arith.constant 0 : i32
    return %arg0, %c0_i32, %arg1, %c0_i32_0 : i32, i32, i32, i32
  }
  func.func @transform_3(%arg0: i32, %arg1: i32) -> (i32, i32, i32, i32) {
    %c0_i32 = arith.constant 0 : i32
    %c0_i32_0 = arith.constant 0 : i32
    %c0_i32_1 = arith.constant 0 : i32
    return %arg0, %c0_i32, %arg1, %c0_i32_0 : i32, i32, i32, i32
  }
}

</mosaic_0001>

<llo_original>
// kernel: tpu_custom_call.1
$region0: #{tpu_custom_call.1}
  #allocation0 [shape = 'u32[]', space=smem, size = 0x4, offset = 0x4, fixed_abs, tag = 'smem constant byte address 0x4 - core index']
  #allocation1 [shape = 'u32[144,128]{1,0:T(1,128)}', space=vmem, size = 0x12000, scoped, tag = 'internal scratch']
  %s0 = inlined_call_operand.vmem [shape: f32[16,8], index: 0, kind: input, shape index: {}]
  %s1 = inlined_call_operand.vmem [shape: f32[16,8], index: 1, kind: input, shape index: {}]
  %s2 = inlined_call_operand.hbm [shape: f32[2,16,8,32], index: 2, kind: input, shape index: {}]
  %s3 = inlined_call_operand.vmem [shape: f32[2,16,8,8], index: 3, kind: output, shape index: {}]
  %s4 = sld [smem:[#allocation0]]
  $region49: #{tpu_custom_call.1} parent=0
    _
  %s6 = ssub.s32 1, %s4
  %s7 = scalar_select 0, %s6, %s4
  $region1: #{tpu_custom_call.1} parent=0
    #allocation2 [shape = 'u8[131072]{0}', space=vmem, size = 0x20000, scoped, tag = 'input window, operand 2']
    #allocation3 [shape = 's32[2]{0}', space=sflag, size = 0x8, scoped, tag = 'scoped memory for tpu_custom_call.1']
    %8 = vsyncpa [#allocation3], 0
    %s9 = scalar_lea.sflag [#allocation3], 1
    %10 = vsyncpa %s9, 0
    loop: start=0, step=1, limit=4
    $region2: #{tpu_custom_call.1} parent=1 // loop_pre_header
      _
    $region3: #{tpu_custom_call.1} parent=1 // loop_header
      %s12 = sphi 0, %s16
      %p13 = scmp.ge.s32.totalorder %s12, 4
      %s19 = sphi 0, %s31
      %s20 = sphi 0, %s27
      %s21 = sphi 0, %s19
      %s22 = sphi 0, %s20
      %s23 = sphi 0, %s21
      %s24 = sphi 0, %s22
      %s32 = sphi 0, %s32
      %s34 = sphi 0, %s32
      %s35 = sphi 0, %s34
      %s49 = sphi 0, %s35
      %s53 = sphi 0, %s53
      %s55 = sphi 0, %s53
      %s56 = sphi 0, %s55
      %s70 = sphi 0, %s56
      %s78 = sphi 0, %s80
      %s81 = sphi 0, %s78
      %s82 = sphi 0, %s81
      %s98 = sphi 0, %s82
      %s106 = sphi 0, %s108
      %s109 = sphi 0, %s106
      %s110 = sphi 0, %s109
      %s126 = sphi 0, %s110
    $region4: #{tpu_custom_call.1} parent=1 // loop_header_branch
      %15 = sbr.rel (%p13) target = $region8
    $region5: #{tpu_custom_call.1} parent=1 // loop_body
      %s17 = ssub.s32 %s12, 1
      %s18 = ssub.s32 %s12, 2
      %s25 = sadd.s32 1, %s20
      %p26 = scmp.ge.s32.totalorder %s25, 1
      %s27 = scalar_select %p26, 0, %s25
      %s28 = sadd.s32 1, %s19
      %s29 = scalar_select %p26, %s28, %s19
      %p30 = scmp.ge.s32.totalorder %s29, 2
      %s31 = scalar_select %p30, 0, %s29
      %s33 = sadd.s32 %s32, 1
      %p36 = scmp.eq.s32.totalorder %s12, 1
      %p37 = scmp.ne.s32.totalorder %s32, %s34
      %p38 = scmp.eq.s32.totalorder %s12, 0
      %p39 = por %p37, %p38
      %p40 = scmp.ne.s32.totalorder %s32, %s34
      %p41 = scmp.eq.s32.totalorder %s17, 1
      %p42 = por %p40, %p41
      %p43 = scmp.ne.s32.totalorder %s34, %s35
      %p44 = scmp.eq.s32.totalorder %s17, 0
      %p45 = por %p43, %p44
      %p46 = scmp.ne.s32.totalorder %s34, %s35
      %p47 = scmp.eq.s32.totalorder %s18, 1
      %p48 = por %p46, %p47
      %p50 = scmp.ne.s32.totalorder %s35, %s49
      %p51 = scmp.eq.s32.totalorder %s18, 0
      %p52 = por %p50, %p51
      %s54 = sadd.s32 %s53, 1
      %p57 = scmp.eq.s32.totalorder %s12, 1
      %p58 = scmp.ne.s32.totalorder %s53, %s55
      %p59 = scmp.eq.s32.totalorder %s12, 0
      %p60 = por %p58, %p59
      %p61 = scmp.ne.s32.totalorder %s53, %s55
      %p62 = scmp.eq.s32.totalorder %s17, 1
      %p63 = por %p61, %p62
      %p64 = scmp.ne.s32.totalorder %s55, %s56
      %p65 = scmp.eq.s32.totalorder %s17, 0
      %p66 = por %p64, %p65
      %p67 = scmp.ne.s32.totalorder %s55, %s56
      %p68 = scmp.eq.s32.totalorder %s18, 1
      %p69 = por %p67, %p68
      %p71 = scmp.ne.s32.totalorder %s56, %s70
      %p72 = scmp.eq.s32.totalorder %s18, 0
      %p73 = por %p71, %p72
      %s74 = ssub.s32 %s19, %s31
      %s75 = ssub.s32 %s20, %s27
      %s76 = sor.u32 %s74, %s75
      %p77 = scmp.eq.s32.totalorder %s76, 0
      %s79 = sadd.s32 %s78, 1
      %s80 = scalar_select %p77, %s78, %s79
      %p83 = pneg %p77
      %p84 = scmp.eq.s32.totalorder %s12, 1
      %p85 = por %p83, %p84
      %p86 = scmp.ne.s32.totalorder %s78, %s81
      %p87 = scmp.eq.s32.totalorder %s12, 0
      %p88 = por %p86, %p87
      %p89 = scmp.ne.s32.totalorder %s78, %s81
      %p90 = scmp.eq.s32.totalorder %s17, 1
      %p91 = por %p89, %p90
      %p92 = scmp.ne.s32.totalorder %s81, %s82
      %p93 = scmp.eq.s32.totalorder %s17, 0
      %p94 = por %p92, %p93
      %p95 = scmp.ne.s32.totalorder %s81, %s82
      %p96 = scmp.eq.s32.totalorder %s18, 1
      %p97 = por %p95, %p96
      %p99 = scmp.ne.s32.totalorder %s82, %s98
      %p100 = scmp.eq.s32.totalorder %s18, 0
      %p101 = por %p99, %p100
      %s102 = ssub.s32 %s19, %s31
      %s103 = ssub.s32 %s20, %s27
      %s104 = sor.u32 %s102, %s103
      %p105 = scmp.eq.s32.totalorder %s104, 0
      %s107 = sadd.s32 %s106, 1
      %s108 = scalar_select %p105, %s106, %s107
      %p111 = pneg %p105
      %p112 = scmp.eq.s32.totalorder %s12, 1
      %p113 = por %p111, %p112
      %p114 = scmp.ne.s32.totalorder %s106, %s109
      %p115 = scmp.eq.s32.totalorder %s12, 0
      %p116 = por %p114, %p115
      %p117 = scmp.ne.s32.totalorder %s106, %s109
      %p118 = scmp.eq.s32.totalorder %s17, 1
      %p119 = por %p117, %p118
      %p120 = scmp.ne.s32.totalorder %s109, %s110
      %p121 = scmp.eq.s32.totalorder %s17, 0
      %p122 = por %p120, %p121
      %p123 = scmp.ne.s32.totalorder %s109, %s110
      %p124 = scmp.eq.s32.totalorder %s18, 1
      %p125 = por %p123, %p124
      %p127 = scmp.ne.s32.totalorder %s110, %s126
      %p128 = scmp.eq.s32.totalorder %s18, 0
      %p129 = por %p127, %p128
      %p130 = scmp.le.s32.totalorder 1, %s12
      %p131 = scmp.lt.s32.totalorder %s12, 3
      %p132 = pnand %p130, %p131
      %p133 = pneg %p132
      // Predicated region
      $region9: #{tpu_custom_call.1} parent=5 // pred_check
        _
      $region10: #{tpu_custom_call.1} parent=5 // pred_check_branch
        %135 = sbr.rel (%p132) target = $region12
      $region11: #{tpu_custom_call.1} parent=5 // pred_region
        %s136 = ssub.s32 %s12, 1
        // Predicated region
        $region13: #{tpu_custom_call.1} parent=11 // pred_check
          %p137 = pneg %p45
        $region14: #{tpu_custom_call.1} parent=11 // pred_check_branch
          %139 = sbr.rel (%p137) target = $region16
        $region15: #{tpu_custom_call.1} parent=11 // pred_region
          _
        $region16: #{tpu_custom_call.1} parent=11 // pred_fallthru
          _
        // Predicated region
        $region17: #{tpu_custom_call.1} parent=11 // pred_check
          %p140 = pneg %p66
        $region18: #{tpu_custom_call.1} parent=11 // pred_check_branch
          %142 = sbr.rel (%p140) target = $region20
        $region19: #{tpu_custom_call.1} parent=11 // pred_region
          _
        $region20: #{tpu_custom_call.1} parent=11 // pred_fallthru
          _
      $region12: #{tpu_custom_call.1} parent=5 // pred_fallthru
        _
      %p143 = scmp.lt.s32.totalorder %s12, 2
      // Predicated region
      $region21: #{tpu_custom_call.1} parent=5 // pred_check
        %p144 = pneg %p143
      $region22: #{tpu_custom_call.1} parent=5 // pred_check_branch
        %146 = sbr.rel (%p144) target = $region24
      $region23: #{tpu_custom_call.1} parent=5 // pred_region
        // Predicated region
        $region25: #{tpu_custom_call.1} parent=23 // pred_check
          %p147 = pneg %p88
        $region26: #{tpu_custom_call.1} parent=23 // pred_check_branch
          %149 = sbr.rel (%p147) target = $region28
        $region27: #{tpu_custom_call.1} parent=23 // pred_region
          %s150 = sand.u32 %s78, 1
          %s151 = scalar_lea.sflag [#allocation3], %s150
          %s152 = sand.u32 %s78, 1
          %s153 = smul.addr %s152, 128
          %s154 = scalar_lea.vmem [#allocation2], %s153
          %s156 = ssub.s32 2048, 2048
          %157 = vsyncadd %s151, %s156
          %s158 = smul.addr %s19, 16
          %s159 = sadd.s32 %s20, %s158
          %s160 = smul.addr %s159, 128
          %s161 = scalar_lea.hbm %s2, %s160
          %s162 = sshll.u32 %s154, 4
          %s163 = int_to_ptr.vmem [resolvable:$true] %s162
          %168 = dma.hbm_to_vmem [thread:$0]  %s161, 2048, %s163, %s151, 128, 128, 8
        $region28: #{tpu_custom_call.1} parent=23 // pred_fallthru
          _
      $region24: #{tpu_custom_call.1} parent=5 // pred_fallthru
        _
      %p169 = scmp.le.s32.totalorder 1, %s12
      %p170 = scmp.lt.s32.totalorder %s12, 3
      %p171 = pnand %p169, %p170
      %p172 = pneg %p171
      // Predicated region
      $region29: #{tpu_custom_call.1} parent=5 // pred_check
        _
      $region30: #{tpu_custom_call.1} parent=5 // pred_check_branch
        %174 = sbr.rel (%p171) target = $region32
      $region31: #{tpu_custom_call.1} parent=5 // pred_region
        %s175 = ssub.s32 %s12, 1
        %s176 = sand.u32 %s81, 1
        %s177 = scalar_lea.sflag [#allocation3], %s176
        %s178 = sand.u32 %s81, 1
        %s179 = smul.addr %s178, 128
        %s180 = scalar_lea.vmem [#allocation2], %s179
        // Predicated region
        $region33: #{tpu_custom_call.1} parent=31 // pred_check
          %p181 = pneg %p94
        $region34: #{tpu_custom_call.1} parent=31 // pred_check_branch
          %183 = sbr.rel (%p181) target = $region36
        $region35: #{tpu_custom_call.1} parent=31 // pred_region
          %184 = dma.done %s177, 2048
        $region36: #{tpu_custom_call.1} parent=31 // pred_fallthru
          _
        %p185 = pneg %p45
        %p186 = pneg %p42
        %p187 = pneg %p66
        %p188 = pneg %p63
        %s189 = sand.u32 %s81, 1
        %s190 = scalar_lea.sflag [#allocation3], %s189
        %s191 = sand.u32 %s81, 1
        %s192 = smul.addr %s191, 128
        %s193 = scalar_lea.vmem [#allocation2], %s192
        %p194 = pneg %p94
        %p195 = pneg %p91
        %p196 = pneg %p122
        %p197 = pneg %p119
        %p198 = scmp.lt.s32.totalorder %s21, 1
        %s199 = scalar_select %p198, %s21, 1
        %p200 = scmp.lt.s32.totalorder %s22, 0
        %s201 = scalar_select %p200, %s22, 0
        %s202 = smul.addr %s199, 16
        %s203 = sadd.s32 %s201, %s202
        %s204 = smul.addr %s203, 8
        %s205 = scalar_lea.vmem %s3, %s204
        %p206 = scmp.lt.s32.totalorder %s21, 1
        %s207 = scalar_select %p206, %s21, 1
        %p208 = scmp.lt.s32.totalorder %s22, 0
        %s209 = scalar_select %p208, %s22, 0
        %s210 = smul.addr %s207, 16
        %s211 = sadd.s32 %s209, %s210
        %s212 = smul.addr %s211, 8
        %s213 = scalar_lea.vmem %s3, %s212
        %v214 = vld [vmem:[%s0] sm:$0xff]
        %v215 = vld [vmem:[%s0 + $0x8] sm:$0xff]
        %v216 = vld [vmem:[%s1] sm:$0xff]
        %v217 = vld [vmem:[%s1 + $0x8] sm:$0xff]
        %v218 = vld [vmem:[%s180] sm:$0xff]
        %v219 = vld [vmem:[%s180 + $0x8] sm:$0xff]
        %v220 = vld [vmem:[%s180 + $0x10] sm:$0xff]
        %v221 = vld [vmem:[%s180 + $0x18] sm:$0xff]
        %v222 = vld [vmem:[%s180 + $0x20] sm:$0xff]
        %v223 = vld [vmem:[%s180 + $0x28] sm:$0xff]
        %v224 = vld [vmem:[%s180 + $0x30] sm:$0xff]
        %v225 = vld [vmem:[%s180 + $0x38] sm:$0xff]
        %v226 = vld [vmem:[%s180 + $0x40] sm:$0xff]
        %v227 = vld [vmem:[%s180 + $0x48] sm:$0xff]
        %v228 = vld [vmem:[%s180 + $0x50] sm:$0xff]
        %v229 = vld [vmem:[%s180 + $0x58] sm:$0xff]
        %v230 = vld [vmem:[%s180 + $0x60] sm:$0xff]
        %v231 = vld [vmem:[%s180 + $0x68] sm:$0xff]
        %v232 = vld [vmem:[%s180 + $0x70] sm:$0xff]
        %v233 = vld [vmem:[%s180 + $0x78] sm:$0xff]
        %245 = vrot.lane.b32.xlu0 %v218, 112
        %v246 = vpop.permute.xlu0 %245
        %247 = vrot.lane.b32.xlu0 %v219, 112
        %v248 = vpop.permute.xlu0 %247
        %249 = vrot.lane.b32.xlu0 %v220, 112
        %v250 = vpop.permute.xlu0 %249
        %251 = vrot.lane.b32.xlu0 %v221, 112
        %v252 = vpop.permute.xlu0 %251
        %253 = vrot.lane.b32.xlu0 %v222, 112
        %v254 = vpop.permute.xlu0 %253
        %255 = vrot.lane.b32.xlu0 %v223, 112
        %v256 = vpop.permute.xlu0 %255
        %257 = vrot.lane.b32.xlu0 %v224, 112
        %v258 = vpop.permute.xlu0 %257
        %259 = vrot.lane.b32.xlu0 %v225, 112
        %v260 = vpop.permute.xlu0 %259
        %261 = vrot.lane.b32.xlu0 %v226, 112
        %v262 = vpop.permute.xlu0 %261
        %263 = vrot.lane.b32.xlu0 %v227, 112
        %v264 = vpop.permute.xlu0 %263
        %265 = vrot.lane.b32.xlu0 %v228, 112
        %v266 = vpop.permute.xlu0 %265
        %v278 = vmax.f32 %v218, %v246
        %v279 = vmax.f32 %v219, %v248
        %v280 = vmax.f32 %v220, %v250
        %v281 = vmax.f32 %v221, %v252
        %v282 = vmax.f32 %v222, %v254
        %v283 = vmax.f32 %v223, %v256
        %v284 = vmax.f32 %v224, %v258
        %v285 = vmax.f32 %v225, %v260
        %v286 = vmax.f32 %v226, %v262
        %v287 = vmax.f32 %v227, %v264
        %v288 = vmax.f32 %v228, %v266
        %300 = vrot.lane.b32.xlu0 %v278, 127
        %v301 = vpop.permute.xlu0 %300
        %302 = vrot.lane.b32.xlu0 %v279, 127
        %v303 = vpop.permute.xlu0 %302
        %304 = vrot.lane.b32.xlu0 %v280, 127
        %v305 = vpop.permute.xlu0 %304
        %306 = vrot.lane.b32.xlu0 %v281, 127
        %v307 = vpop.permute.xlu0 %306
        %308 = vrot.lane.b32.xlu0 %v282, 127
        %v309 = vpop.permute.xlu0 %308
        %310 = vrot.lane.b32.xlu0 %v283, 127
        %v311 = vpop.permute.xlu0 %310
        %312 = vrot.lane.b32.xlu0 %v284, 127
        %v313 = vpop.permute.xlu0 %312
        %314 = vrot.lane.b32.xlu0 %v285, 127
        %v315 = vpop.permute.xlu0 %314
        %316 = vrot.lane.b32.xlu0 %v286, 127
        %v317 = vpop.permute.xlu0 %316
        %318 = vrot.lane.b32.xlu0 %v287, 127
        %v319 = vpop.permute.xlu0 %318
        %320 = vrot.lane.b32.xlu0 %v288, 127
        %v321 = vpop.permute.xlu0 %320
        %v333 = vmax.f32 %v278, %v301
        %v334 = vmax.f32 %v279, %v303
        %v335 = vmax.f32 %v280, %v305
        %v336 = vmax.f32 %v281, %v307
        %v337 = vmax.f32 %v282, %v309
        %v338 = vmax.f32 %v283, %v311
        %v339 = vmax.f32 %v284, %v313
        %v340 = vmax.f32 %v285, %v315
        %v341 = vmax.f32 %v286, %v317
        %v342 = vmax.f32 %v287, %v319
        %v343 = vmax.f32 %v288, %v321
        %v344 = vld [vmem:[%s0 + $0x8] sm:$0x7f]
        %vm345 = vcmask 121856
        %v347 = vsel %vm345, %v333, 0
        %v350 = vsel %vm345, %v334, 0
        %v353 = vsel %vm345, %v335, 0
        %v356 = vsel %vm345, %v336, 0
        %v359 = vsel %vm345, %v337, 0
        %v362 = vsel %vm345, %v338, 0
        %v365 = vsel %vm345, %v339, 0
        %v368 = vsel %vm345, %v340, 0
        %v371 = vsel %vm345, %v341, 0
        %v374 = vsel %vm345, %v342, 0
        %v377 = vsel %vm345, %v343, 0
        %vm379 = vcmask 1046528
        %v381 = vsel %vm379, %v344, 0
        %383 = vmatprep.subr.mxu0 0.0
        %384 = vmatpush1.msra.mxu0 0.0
        %385 = vmatprep.subr.mxu0 0.0
        %386 = vmatpush1.msra.mxu0 0.0
        %387 = vmatprep.subr.mxu0 0.0
        %388 = vmatpush1.msra.mxu0 0.0
        %389 = vmatprep.subr.mxu0 0.0
        %390 = vmatpush1.msra.mxu0 0.0
        %391 = vmatprep.subr.mxu0 0.0
        %392 = vmatpush1.msra.mxu0 0.0
        %393 = vmatprep.subr.mxu0 0.0
        %394 = vmatpush1.msra.mxu0 0.0
        %395 = vmatprep.subr.mxu0 0.0
        %396 = vmatpush1.msra.mxu0 0.0
        %397 = vmatprep.subr.mxu0 0.0
        %398 = vmatpush1.msra.mxu0 0.0
        %399 = vmatprep.subr.mxu0 0.0
        %400 = vmatpush1.msra.mxu0 0.0
        %401 = vmatprep.subr.mxu0 0.0
        %402 = vmatpush1.msra.mxu0 0.0
        %403 = vmatprep.subr.mxu0 0.0
        %404 = vmatpush1.msra.mxu0 0.0
        %405 = vmatprep.subr.mxu0 0.0
        %406 = vmatpush1.msra.mxu0 0.0
        %407 = vmatprep.subr.mxu0 0.0
        %408 = vmatpush1.msra.mxu0 0.0
        %409 = vmatprep.subr.mxu0 0.0
        %410 = vmatpush1.msra.mxu0 0.0
        %411 = vmatprep.subr.mxu0 0.0
        %v412 = vand.u32 %v381, 4294901760
        %413 = vmatpush1.msra.mxu0 %v412
        %414 = vmatprep.subr.mxu0 0.0
        %v415 = vand.u32 %v214, 4294901760
        %416 = vmatpush1.msra.mxu0 %v415
        %417 = vmatprep.subr.mxu0 0.0
        %418 = vmatpush2.msra.mxu0 0.0
        %419 = vmatprep.subr.mxu0 0.0
        %420 = vmatpush2.msra.mxu0 0.0
        %421 = vmatprep.subr.mxu0 0.0
        %422 = vmatpush2.msra.mxu0 0.0
        %423 = vmatprep.subr.mxu0 0.0
        %424 = vmatpush2.msra.mxu0 0.0
        %425 = vmatprep.subr.mxu0 0.0
        %426 = vmatpush2.msra.mxu0 0.0
        %427 = vmatprep.subr.mxu0 0.0
        %428 = vmatpush2.msra.mxu0 0.0
        %429 = vmatprep.subr.mxu0 0.0
        %430 = vmatpush2.msra.mxu0 0.0
        %431 = vmatprep.subr.mxu0 0.0
        %432 = vmatpush2.msra.mxu0 0.0
        %433 = vmatprep.subr.mxu0 0.0
        %434 = vmatpush2.msra.mxu0 0.0
        %435 = vmatprep.subr.mxu0 0.0
        %436 = vmatpush2.msra.mxu0 0.0
        %437 = vmatprep.subr.mxu0 0.0
        %438 = vmatpush2.msra.mxu0 0.0
        %439 = vmatprep.subr.mxu0 0.0
        %440 = vmatpush2.msra.mxu0 0.0
        %441 = vmatprep.subr.mxu0 0.0
        %442 = vmatpush2.msra.mxu0 0.0
        %443 = vmatprep.subr.mxu0 0.0
        %444 = vmatpush2.msra.mxu0 0.0
        %445 = vmatprep.subr.mxu0 0.0
        %446 = vmatpush2.msra.mxu0 0.0
        %447 = vmatprep.subr.mxu0 0.0
        %448 = vmatpush2.msra.mxu0 0.0
        %449 = vmatprep.mubr.f32.mxu0 0.0
        %v450 = vand.u32 %v347, 4294901760
        %v451 = vsub.f32 %v347, %v450
        %v452 = vand.u32 %v451, 4294901760
        %v453 = vsub.f32 %v451, %v452
        %v454 = vand.u32 %v453, 4294901760
        %455 = vmatmul.mubr.f32.gmra.mxu0 %v454
        %v456 = vpop.f32.mrf.mxu0
        %v457 = vadd.f32 0.0, %v456
        %v458 = vpop.f32.mrf.mxu0
        %459 = vmatprep.mubr.f32.mxu0 0.0
        %v460 = vand.u32 %v350, 4294901760
        %v461 = vsub.f32 %v350, %v460
        %v462 = vand.u32 %v461, 4294901760
        %v463 = vsub.f32 %v461, %v462
        %v464 = vand.u32 %v463, 4294901760
        %465 = vmatmul.mubr.f32.gmra.mxu0 %v464
        %v466 = vpop.f32.mrf.mxu0
        %v467 = vadd.f32 0.0, %v466
        %v468 = vpop.f32.mrf.mxu0
        %469 = vmatprep.mubr.f32.mxu0 0.0
        %v470 = vand.u32 %v353, 4294901760
        %v471 = vsub.f32 %v353, %v470
        %v472 = vand.u32 %v471, 4294901760
        %v473 = vsub.f32 %v471, %v472
        %v474 = vand.u32 %v473, 4294901760
        %475 = vmatmul.mubr.f32.gmra.mxu0 %v474
        %v476 = vpop.f32.mrf.mxu0
        %v477 = vadd.f32 0.0, %v476
        %v478 = vpop.f32.mrf.mxu0
        %479 = vmatprep.mubr.f32.mxu0 0.0
        %v480 = vand.u32 %v356, 4294901760
        %v481 = vsub.f32 %v356, %v480
        %v482 = vand.u32 %v481, 4294901760
        %v483 = vsub.f32 %v481, %v482
        %v484 = vand.u32 %v483, 4294901760
        %485 = vmatmul.mubr.f32.gmra.mxu0 %v484
        %v486 = vpop.f32.mrf.mxu0
        %v487 = vadd.f32 0.0, %v486
        %v488 = vpop.f32.mrf.mxu0
        %489 = vmatprep.mubr.f32.mxu0 0.0
        %v490 = vand.u32 %v359, 4294901760
        %v491 = vsub.f32 %v359, %v490
        %v492 = vand.u32 %v491, 4294901760
        %v493 = vsub.f32 %v491, %v492
        %v494 = vand.u32 %v493, 4294901760
        %495 = vmatmul.mubr.f32.gmra.mxu0 %v494
        %v496 = vpop.f32.mrf.mxu0
        %v497 = vadd.f32 0.0, %v496
        %v498 = vpop.f32.mrf.mxu0
        %499 = vmatprep.mubr.f32.mxu0 0.0
        %v500 = vand.u32 %v362, 4294901760
        %v501 = vsub.f32 %v362, %v500
        %v502 = vand.u32 %v501, 4294901760
        %v503 = vsub.f32 %v501, %v502
        %v504 = vand.u32 %v503, 4294901760
        %505 = vmatmul.mubr.f32.gmra.mxu0 %v504
        %v506 = vpop.f32.mrf.mxu0
        %v507 = vadd.f32 0.0, %v506
        %v508 = vpop.f32.mrf.mxu0
        %509 = vmatprep.mubr.f32.mxu0 0.0
        %v510 = vand.u32 %v365, 4294901760
        %v511 = vsub.f32 %v365, %v510
        %v512 = vand.u32 %v511, 4294901760
        %v513 = vsub.f32 %v511, %v512
        %v514 = vand.u32 %v513, 4294901760
        %515 = vmatmul.mubr.f32.gmra.mxu0 %v514
        %v516 = vpop.f32.mrf.mxu0
        %v517 = vadd.f32 0.0, %v516
        %v518 = vpop.f32.mrf.mxu0
        %519 = vmatprep.mubr.f32.mxu0 0.0
        %v520 = vand.u32 %v368, 4294901760
        %v521 = vsub.f32 %v368, %v520
        %v522 = vand.u32 %v521, 4294901760
        %v523 = vsub.f32 %v521, %v522
        %v524 = vand.u32 %v523, 4294901760
        %525 = vmatmul.mubr.f32.gmra.mxu0 %v524
        %v526 = vpop.f32.mrf.mxu0
        %v527 = vadd.f32 0.0, %v526
        %v528 = vpop.f32.mrf.mxu0
        %529 = vmatprep.mubr.f32.mxu0 0.0
        %v530 = vand.u32 %v371, 4294901760
        %v531 = vsub.f32 %v371, %v530
        %v532 = vand.u32 %v531, 4294901760
        %v533 = vsub.f32 %v531, %v532
        %v534 = vand.u32 %v533, 4294901760
        %535 = vmatmul.mubr.f32.gmra.mxu0 %v534
        %v536 = vpop.f32.mrf.mxu0
        %v537 = vadd.f32 0.0, %v536
        %v538 = vpop.f32.mrf.mxu0
        %539 = vmatprep.mubr.f32.mxu0 0.0
        %v540 = vand.u32 %v374, 4294901760
        %v541 = vsub.f32 %v374, %v540
        %v542 = vand.u32 %v541, 4294901760
        %v543 = vsub.f32 %v541, %v542
        %v544 = vand.u32 %v543, 4294901760
        %545 = vmatmul.mubr.f32.gmra.mxu0 %v544
        %v546 = vpop.f32.mrf.mxu0
        %v547 = vadd.f32 0.0, %v546
        %v548 = vpop.f32.mrf.mxu0
        %549 = vmatprep.mubr.f32.mxu0 0.0
        %v550 = vand.u32 %v377, 4294901760
        %v551 = vsub.f32 %v377, %v550
        %v552 = vand.u32 %v551, 4294901760
        %v553 = vsub.f32 %v551, %v552
        %v554 = vand.u32 %v553, 4294901760
        %555 = vmatmul.mubr.f32.gmra.mxu0 %v554
        %v556 = vpop.f32.mrf.mxu0
        %v557 = vadd.f32 0.0, %v556
        %v558 = vpop.f32.mrf.mxu0
        %559 = vdwg.mxu0
        %560 = vmatprep.subr.mxu0 0.0
        %561 = vmatpush1.msra.mxu0 0.0
        %562 = vmatprep.subr.mxu0 0.0
        %563 = vmatpush1.msra.mxu0 0.0
        %564 = vmatprep.subr.mxu0 0.0
        %565 = vmatpush1.msra.mxu0 0.0
        %566 = vmatprep.subr.mxu0 0.0
        %567 = vmatpush1.msra.mxu0 0.0
        %568 = vmatprep.subr.mxu0 0.0
        %569 = vmatpush1.msra.mxu0 0.0
        %570 = vmatprep.subr.mxu0 0.0
        %571 = vmatpush1.msra.mxu0 0.0
        %572 = vmatprep.subr.mxu0 0.0
        %573 = vmatpush1.msra.mxu0 0.0
        %574 = vmatprep.subr.mxu0 0.0
        %575 = vmatpush1.msra.mxu0 0.0
        %576 = vmatprep.subr.mxu0 0.0
        %577 = vmatpush1.msra.mxu0 0.0
        %578 = vmatprep.subr.mxu0 0.0
        %579 = vmatpush1.msra.mxu0 0.0
        %580 = vmatprep.subr.mxu0 0.0
        %581 = vmatpush1.msra.mxu0 0.0
        %582 = vmatprep.subr.mxu0 0.0
        %583 = vmatpush1.msra.mxu0 0.0
        %584 = vmatprep.subr.mxu0 0.0
        %585 = vmatpush1.msra.mxu0 0.0
        %586 = vmatprep.subr.mxu0 0.0
        %587 = vmatpush1.msra.mxu0 0.0
        %588 = vmatprep.subr.mxu0 0.0
        %v589 = vand.u32 %v381, 4294901760
        %v590 = vsub.f32 %v381, %v589
        %v591 = vand.u32 %v590, 4294901760
        %v592 = vsub.f32 %v590, %v591
        %v593 = vand.u32 %v592, 4294901760
        %594 = vmatpush1.msra.mxu0 %v593
        %595 = vmatprep.subr.mxu0 0.0
        %v596 = vand.u32 %v214, 4294901760
        %v597 = vsub.f32 %v214, %v596
        %v598 = vand.u32 %v597, 4294901760
        %v599 = vsub.f32 %v597, %v598
        %v600 = vand.u32 %v599, 4294901760
        %601 = vmatpush1.msra.mxu0 %v600
        %602 = vmatprep.subr.mxu0 0.0
        %603 = vmatpush2.msra.mxu0 0.0
        %604 = vmatprep.subr.mxu0 0.0
        %605 = vmatpush2.msra.mxu0 0.0
        %606 = vmatprep.subr.mxu0 0.0
        %607 = vmatpush2.msra.mxu0 0.0
        %608 = vmatprep.subr.mxu0 0.0
        %609 = vmatpush2.msra.mxu0 0.0
        %610 = vmatprep.subr.mxu0 0.0
        %611 = vmatpush2.msra.mxu0 0.0
        %612 = vmatprep.subr.mxu0 0.0
        %613 = vmatpush2.msra.mxu0 0.0
        %614 = vmatprep.subr.mxu0 0.0
        %615 = vmatpush2.msra.mxu0 0.0
        %616 = vmatprep.subr.mxu0 0.0
        %617 = vmatpush2.msra.mxu0 0.0
        %618 = vmatprep.subr.mxu0 0.0
        %619 = vmatpush2.msra.mxu0 0.0
        %620 = vmatprep.subr.mxu0 0.0
        %621 = vmatpush2.msra.mxu0 0.0
        %622 = vmatprep.subr.mxu0 0.0
        %623 = vmatpush2.msra.mxu0 0.0
        %624 = vmatprep.subr.mxu0 0.0
        %625 = vmatpush2.msra.mxu0 0.0
        %626 = vmatprep.subr.mxu0 0.0
        %627 = vmatpush2.msra.mxu0 0.0
        %628 = vmatprep.subr.mxu0 0.0
        %629 = vmatpush2.msra.mxu0 0.0
        %630 = vmatprep.subr.mxu0 0.0
        %631 = vmatpush2.msra.mxu0 0.0
        %632 = vmatprep.subr.mxu0 0.0
        %633 = vmatpush2.msra.mxu0 0.0
        %634 = vmatprep.mubr.f32.mxu0 0.0
        %v635 = vand.u32 %v347, 4294901760
        %636 = vmatmul.mubr.f32.gmra.mxu0 %v635
        %v637 = vpop.f32.mrf.mxu0
        %v638 = vadd.f32 %v457, %v637
        %v639 = vpop.f32.mrf.mxu0
        %640 = vmatprep.mubr.f32.mxu0 0.0
        %v641 = vand.u32 %v350, 4294901760
        %642 = vmatmul.mubr.f32.gmra.mxu0 %v641
        %v643 = vpop.f32.mrf.mxu0
        %v644 = vadd.f32 %v467, %v643
        %v645 = vpop.f32.mrf.mxu0
        %646 = vmatprep.mubr.f32.mxu0 0.0
        %v647 = vand.u32 %v353, 4294901760
        %648 = vmatmul.mubr.f32.gmra.mxu0 %v647
        %v649 = vpop.f32.mrf.mxu0
        %v650 = vadd.f32 %v477, %v649
        %v651 = vpop.f32.mrf.mxu0
        %652 = vmatprep.mubr.f32.mxu0 0.0
        %v653 = vand.u32 %v356, 4294901760
        %654 = vmatmul.mubr.f32.gmra.mxu0 %v653
        %v655 = vpop.f32.mrf.mxu0
        %v656 = vadd.f32 %v487, %v655
        %v657 = vpop.f32.mrf.mxu0
        %658 = vmatprep.mubr.f32.mxu0 0.0
        %v659 = vand.u32 %v359, 4294901760
        %660 = vmatmul.mubr.f32.gmra.mxu0 %v659
        %v661 = vpop.f32.mrf.mxu0
        %v662 = vadd.f32 %v497, %v661
        %v663 = vpop.f32.mrf.mxu0
        %664 = vmatprep.mubr.f32.mxu0 0.0
        %v665 = vand.u32 %v362, 4294901760
        %666 = vmatmul.mubr.f32.gmra.mxu0 %v665
        %v667 = vpop.f32.mrf.mxu0
        %v668 = vadd.f32 %v507, %v667
        %v669 = vpop.f32.mrf.mxu0
        %670 = vmatprep.mubr.f32.mxu0 0.0
        %v671 = vand.u32 %v365, 4294901760
        %672 = vmatmul.mubr.f32.gmra.mxu0 %v671
        %v673 = vpop.f32.mrf.mxu0
        %v674 = vadd.f32 %v517, %v673
        %v675 = vpop.f32.mrf.mxu0
        %676 = vmatprep.mubr.f32.mxu0 0.0
        %v677 = vand.u32 %v368, 4294901760
        %678 = vmatmul.mubr.f32.gmra.mxu0 %v677
        %v679 = vpop.f32.mrf.mxu0
        %v680 = vadd.f32 %v527, %v679
        %v681 = vpop.f32.mrf.mxu0
        %682 = vmatprep.mubr.f32.mxu0 0.0
        %v683 = vand.u32 %v371, 4294901760
        %684 = vmatmul.mubr.f32.gmra.mxu0 %v683
        %v685 = vpop.f32.mrf.mxu0
        %v686 = vadd.f32 %v537, %v685
        %v687 = vpop.f32.mrf.mxu0
        %688 = vmatprep.mubr.f32.mxu0 0.0
        %v689 = vand.u32 %v374, 4294901760
        %690 = vmatmul.mubr.f32.gmra.mxu0 %v689
        %v691 = vpop.f32.mrf.mxu0
        %v692 = vadd.f32 %v547, %v691
        %v693 = vpop.f32.mrf.mxu0
        %694 = vmatprep.mubr.f32.mxu0 0.0
        %v695 = vand.u32 %v377, 4294901760
        %696 = vmatmul.mubr.f32.gmra.mxu0 %v695
        %v697 = vpop.f32.mrf.mxu0
        %v698 = vadd.f32 %v557, %v697
        %v699 = vpop.f32.mrf.mxu0
        %700 = vdwg.mxu0
        %701 = vmatprep.subr.mxu0 0.0
        %702 = vmatpush1.msra.mxu0 0.0
        %703 = vmatprep.subr.mxu0 0.0
        %704 = vmatpush1.msra.mxu0 0.0
        %705 = vmatprep.subr.mxu0 0.0
        %706 = vmatpush1.msra.mxu0 0.0
        %707 = vmatprep.subr.mxu0 0.0
        %708 = vmatpush1.msra.mxu0 0.0
        %709 = vmatprep.subr.mxu0 0.0
        %710 = vmatpush1.msra.mxu0 0.0
        %711 = vmatprep.subr.mxu0 0.0
        %712 = vmatpush1.msra.mxu0 0.0
        %713 = vmatprep.subr.mxu0 0.0
        %714 = vmatpush1.msra.mxu0 0.0
        %715 = vmatprep.subr.mxu0 0.0
        %716 = vmatpush1.msra.mxu0 0.0
        %717 = vmatprep.subr.mxu0 0.0
        %718 = vmatpush1.msra.mxu0 0.0
        %719 = vmatprep.subr.mxu0 0.0
        %720 = vmatpush1.msra.mxu0 0.0
        %721 = vmatprep.subr.mxu0 0.0
        %722 = vmatpush1.msra.mxu0 0.0
        %723 = vmatprep.subr.mxu0 0.0
        %724 = vmatpush1.msra.mxu0 0.0
        %725 = vmatprep.subr.mxu0 0.0
        %726 = vmatpush1.msra.mxu0 0.0
        %727 = vmatprep.subr.mxu0 0.0
        %728 = vmatpush1.msra.mxu0 0.0
        %729 = vmatprep.subr.mxu0 0.0
        %v730 = vand.u32 %v381, 4294901760
        %v731 = vsub.f32 %v381, %v730
        %732 = vmatpush1.msra.mxu0 %v731
        %733 = vmatprep.subr.mxu0 0.0
        %v734 = vand.u32 %v214, 4294901760
        %v735 = vsub.f32 %v214, %v734
        %736 = vmatpush1.msra.mxu0 %v735
        %737 = vmatprep.subr.mxu0 0.0
        %738 = vmatpush2.msra.mxu0 0.0
        %739 = vmatprep.subr.mxu0 0.0
        %740 = vmatpush2.msra.mxu0 0.0
        %741 = vmatprep.subr.mxu0 0.0
        %742 = vmatpush2.msra.mxu0 0.0
        %743 = vmatprep.subr.mxu0 0.0
        %744 = vmatpush2.msra.mxu0 0.0
        %745 = vmatprep.subr.mxu0 0.0
        %746 = vmatpush2.msra.mxu0 0.0
        %747 = vmatprep.subr.mxu0 0.0
        %748 = vmatpush2.msra.mxu0 0.0
        %749 = vmatprep.subr.mxu0 0.0
        %750 = vmatpush2.msra.mxu0 0.0
        %751 = vmatprep.subr.mxu0 0.0
        %752 = vmatpush2.msra.mxu0 0.0
        %753 = vmatprep.subr.mxu0 0.0
        %754 = vmatpush2.msra.mxu0 0.0
        %755 = vmatprep.subr.mxu0 0.0
        %756 = vmatpush2.msra.mxu0 0.0
        %757 = vmatprep.subr.mxu0 0.0
        %758 = vmatpush2.msra.mxu0 0.0
        %759 = vmatprep.subr.mxu0 0.0
        %760 = vmatpush2.msra.mxu0 0.0
        %761 = vmatprep.subr.mxu0 0.0
        %762 = vmatpush2.msra.mxu0 0.0
        %763 = vmatprep.subr.mxu0 0.0
        %764 = vmatpush2.msra.mxu0 0.0
        %765 = vmatprep.subr.mxu0 0.0
        %766 = vmatpush2.msra.mxu0 0.0
        %767 = vmatprep.subr.mxu0 0.0
        %768 = vmatpush2.msra.mxu0 0.0
        %769 = vmatprep.mubr.f32.mxu0 0.0
        %v770 = vand.u32 %v347, 4294901760
        %v771 = vsub.f32 %v347, %v770
        %772 = vmatmul.mubr.f32.gmra.mxu0 %v771
        %v773 = vpop.f32.mrf.mxu0
        %v774 = vadd.f32 %v638, %v773
        %v775 = vpop.f32.mrf.mxu0
        %776 = vmatprep.mubr.f32.mxu0 0.0
        %v777 = vand.u32 %v350, 4294901760
        %v778 = vsub.f32 %v350, %v777
        %779 = vmatmul.mubr.f32.gmra.mxu0 %v778
        %v780 = vpop.f32.mrf.mxu0
        %v781 = vadd.f32 %v644, %v780
        %v782 = vpop.f32.mrf.mxu0
        %783 = vmatprep.mubr.f32.mxu0 0.0
        %v784 = vand.u32 %v353, 4294901760
        %v785 = vsub.f32 %v353, %v784
        %786 = vmatmul.mubr.f32.gmra.mxu0 %v785
        %v787 = vpop.f32.mrf.mxu0
        %v788 = vadd.f32 %v650, %v787
        %v789 = vpop.f32.mrf.mxu0
        %790 = vmatprep.mubr.f32.mxu0 0.0
        %v791 = vand.u32 %v356, 4294901760
        %v792 = vsub.f32 %v356, %v791
        %793 = vmatmul.mubr.f32.gmra.mxu0 %v792
        %v794 = vpop.f32.mrf.mxu0
        %v795 = vadd.f32 %v656, %v794
        %v796 = vpop.f32.mrf.mxu0
        %797 = vmatprep.mubr.f32.mxu0 0.0
        %v798 = vand.u32 %v359, 4294901760
        %v799 = vsub.f32 %v359, %v798
        %800 = vmatmul.mubr.f32.gmra.mxu0 %v799
        %v801 = vpop.f32.mrf.mxu0
        %v802 = vadd.f32 %v662, %v801
        %v803 = vpop.f32.mrf.mxu0
        %804 = vmatprep.mubr.f32.mxu0 0.0
        %v805 = vand.u32 %v362, 4294901760
        %v806 = vsub.f32 %v362, %v805
        %807 = vmatmul.mubr.f32.gmra.mxu0 %v806
        %v808 = vpop.f32.mrf.mxu0
        %v809 = vadd.f32 %v668, %v808
        %v810 = vpop.f32.mrf.mxu0
        %811 = vmatprep.mubr.f32.mxu0 0.0
        %v812 = vand.u32 %v365, 4294901760
        %v813 = vsub.f32 %v365, %v812
        %814 = vmatmul.mubr.f32.gmra.mxu0 %v813
        %v815 = vpop.f32.mrf.mxu0
        %v816 = vadd.f32 %v674, %v815
        %v817 = vpop.f32.mrf.mxu0
        %818 = vmatprep.mubr.f32.mxu0 0.0
        %v819 = vand.u32 %v368, 4294901760
        %v820 = vsub.f32 %v368, %v819
        %821 = vmatmul.mubr.f32.gmra.mxu0 %v820
        %v822 = vpop.f32.mrf.mxu0
        %v823 = vadd.f32 %v680, %v822
        %v824 = vpop.f32.mrf.mxu0
        %825 = vmatprep.mubr.f32.mxu0 0.0
        %v826 = vand.u32 %v371, 4294901760
        %v827 = vsub.f32 %v371, %v826
        %828 = vmatmul.mubr.f32.gmra.mxu0 %v827
        %v829 = vpop.f32.mrf.mxu0
        %v830 = vadd.f32 %v686, %v829
        %v831 = vpop.f32.mrf.mxu0
        %832 = vmatprep.mubr.f32.mxu0 0.0
        %v833 = vand.u32 %v374, 4294901760
        %v834 = vsub.f32 %v374, %v833
        %835 = vmatmul.mubr.f32.gmra.mxu0 %v834
        %v836 = vpop.f32.mrf.mxu0
        %v837 = vadd.f32 %v692, %v836
        %v838 = vpop.f32.mrf.mxu0
        %839 = vmatprep.mubr.f32.mxu0 0.0
        %v840 = vand.u32 %v377, 4294901760
        %v841 = vsub.f32 %v377, %v840
        %842 = vmatmul.mubr.f32.gmra.mxu0 %v841
        %v843 = vpop.f32.mrf.mxu0
        %v844 = vadd.f32 %v698, %v843
        %v845 = vpop.f32.mrf.mxu0
        %846 = vdwg.mxu0
        %847 = vmatprep.subr.mxu0 0.0
        %848 = vmatpush1.msra.mxu0 0.0
        %849 = vmatprep.subr.mxu0 0.0
        %850 = vmatpush1.msra.mxu0 0.0
        %851 = vmatprep.subr.mxu0 0.0
        %852 = vmatpush1.msra.mxu0 0.0
        %853 = vmatprep.subr.mxu0 0.0
        %854 = vmatpush1.msra.mxu0 0.0
        %855 = vmatprep.subr.mxu0 0.0
        %856 = vmatpush1.msra.mxu0 0.0
        %857 = vmatprep.subr.mxu0 0.0
        %858 = vmatpush1.msra.mxu0 0.0
        %859 = vmatprep.subr.mxu0 0.0
        %860 = vmatpush1.msra.mxu0 0.0
        %861 = vmatprep.subr.mxu0 0.0
        %862 = vmatpush1.msra.mxu0 0.0
        %863 = vmatprep.subr.mxu0 0.0
        %864 = vmatpush1.msra.mxu0 0.0
        %865 = vmatprep.subr.mxu0 0.0
        %866 = vmatpush1.msra.mxu0 0.0
        %867 = vmatprep.subr.mxu0 0.0
        %868 = vmatpush1.msra.mxu0 0.0
        %869 = vmatprep.subr.mxu0 0.0
        %870 = vmatpush1.msra.mxu0 0.0
        %871 = vmatprep.subr.mxu0 0.0
        %872 = vmatpush1.msra.mxu0 0.0
        %873 = vmatprep.subr.mxu0 0.0
        %874 = vmatpush1.msra.mxu0 0.0
        %875 = vmatprep.subr.mxu0 0.0
        %v876 = vand.u32 %v381, 4294901760
        %877 = vmatpush1.msra.mxu0 %v876
        %878 = vmatprep.subr.mxu0 0.0
        %v879 = vand.u32 %v214, 4294901760
        %880 = vmatpush1.msra.mxu0 %v879
        %881 = vmatprep.subr.mxu0 0.0
        %882 = vmatpush2.msra.mxu0 0.0
        %883 = vmatprep.subr.mxu0 0.0
        %884 = vmatpush2.msra.mxu0 0.0
        %885 = vmatprep.subr.mxu0 0.0
        %886 = vmatpush2.msra.mxu0 0.0
        %887 = vmatprep.subr.mxu0 0.0
        %888 = vmatpush2.msra.mxu0 0.0
        %889 = vmatprep.subr.mxu0 0.0
        %890 = vmatpush2.msra.mxu0 0.0
        %891 = vmatprep.subr.mxu0 0.0
        %892 = vmatpush2.msra.mxu0 0.0
        %893 = vmatprep.subr.mxu0 0.0
        %894 = vmatpush2.msra.mxu0 0.0
        %895 = vmatprep.subr.mxu0 0.0
        %896 = vmatpush2.msra.mxu0 0.0
        %897 = vmatprep.subr.mxu0 0.0
        %898 = vmatpush2.msra.mxu0 0.0
        %899 = vmatprep.subr.mxu0 0.0
        %900 = vmatpush2.msra.mxu0 0.0
        %901 = vmatprep.subr.mxu0 0.0
        %902 = vmatpush2.msra.mxu0 0.0
        %903 = vmatprep.subr.mxu0 0.0
        %904 = vmatpush2.msra.mxu0 0.0
        %905 = vmatprep.subr.mxu0 0.0
        %906 = vmatpush2.msra.mxu0 0.0
        %907 = vmatprep.subr.mxu0 0.0
        %908 = vmatpush2.msra.mxu0 0.0
        %909 = vmatprep.subr.mxu0 0.0
        %910 = vmatpush2.msra.mxu0 0.0
        %911 = vmatprep.subr.mxu0 0.0
        %912 = vmatpush2.msra.mxu0 0.0
        %913 = vmatprep.mubr.f32.mxu0 0.0
        %v914 = vand.u32 %v347, 4294901760
        %v915 = vsub.f32 %v347, %v914
        %v916 = vand.u32 %v915, 4294901760
        %917 = vmatmul.mubr.f32.gmra.mxu0 %v916
        %v918 = vpop.f32.mrf.mxu0
        %v919 = vadd.f32 %v774, %v918
        %v920 = vpop.f32.mrf.mxu0
        %921 = vmatprep.mubr.f32.mxu0 0.0
        %v922 = vand.u32 %v350, 4294901760
        %v923 = vsub.f32 %v350, %v922
        %v924 = vand.u32 %v923, 4294901760
        %925 = vmatmul.mubr.f32.gmra.mxu0 %v924
        %v926 = vpop.f32.mrf.mxu0
        %v927 = vadd.f32 %v781, %v926
        %v928 = vpop.f32.mrf.mxu0
        %929 = vmatprep.mubr.f32.mxu0 0.0
        %v930 = vand.u32 %v353, 4294901760
        %v931 = vsub.f32 %v353, %v930
        %v932 = vand.u32 %v931, 4294901760
        %933 = vmatmul.mubr.f32.gmra.mxu0 %v932
        %v934 = vpop.f32.mrf.mxu0
        %v935 = vadd.f32 %v788, %v934
        %v936 = vpop.f32.mrf.mxu0
        %937 = vmatprep.mubr.f32.mxu0 0.0
        %v938 = vand.u32 %v356, 4294901760
        %v939 = vsub.f32 %v356, %v938
        %v940 = vand.u32 %v939, 4294901760
        %941 = vmatmul.mubr.f32.gmra.mxu0 %v940
        %v942 = vpop.f32.mrf.mxu0
        %v943 = vadd.f32 %v795, %v942
        %v944 = vpop.f32.mrf.mxu0
        %945 = vmatprep.mubr.f32.mxu0 0.0
        %v946 = vand.u32 %v359, 4294901760
        %v947 = vsub.f32 %v359, %v946
        %v948 = vand.u32 %v947, 4294901760
        %949 = vmatmul.mubr.f32.gmra.mxu0 %v948
        %v950 = vpop.f32.mrf.mxu0
        %v951 = vadd.f32 %v802, %v950
        %v952 = vpop.f32.mrf.mxu0
        %953 = vmatprep.mubr.f32.mxu0 0.0
        %v954 = vand.u32 %v362, 4294901760
        %v955 = vsub.f32 %v362, %v954
        %v956 = vand.u32 %v955, 4294901760
        %957 = vmatmul.mubr.f32.gmra.mxu0 %v956
        %v958 = vpop.f32.mrf.mxu0
        %v959 = vadd.f32 %v809, %v958
        %v960 = vpop.f32.mrf.mxu0
        %961 = vmatprep.mubr.f32.mxu0 0.0
        %v962 = vand.u32 %v365, 4294901760
        %v963 = vsub.f32 %v365, %v962
        %v964 = vand.u32 %v963, 4294901760
        %965 = vmatmul.mubr.f32.gmra.mxu0 %v964
        %v966 = vpop.f32.mrf.mxu0
        %v967 = vadd.f32 %v816, %v966
        %v968 = vpop.f32.mrf.mxu0
        %969 = vmatprep.mubr.f32.mxu0 0.0
        %v970 = vand.u32 %v368, 4294901760
        %v971 = vsub.f32 %v368, %v970
        %v972 = vand.u32 %v971, 4294901760
        %973 = vmatmul.mubr.f32.gmra.mxu0 %v972
        %v974 = vpop.f32.mrf.mxu0
        %v975 = vadd.f32 %v823, %v974
        %v976 = vpop.f32.mrf.mxu0
        %977 = vmatprep.mubr.f32.mxu0 0.0
        %v978 = vand.u32 %v371, 4294901760
        %v979 = vsub.f32 %v371, %v978
        %v980 = vand.u32 %v979, 4294901760
        %981 = vmatmul.mubr.f32.gmra.mxu0 %v980
        %v982 = vpop.f32.mrf.mxu0
        %v983 = vadd.f32 %v830, %v982
        %v984 = vpop.f32.mrf.mxu0
        %985 = vmatprep.mubr.f32.mxu0 0.0
        %v986 = vand.u32 %v374, 4294901760
        %v987 = vsub.f32 %v374, %v986
        %v988 = vand.u32 %v987, 4294901760
        %989 = vmatmul.mubr.f32.gmra.mxu0 %v988
        %v990 = vpop.f32.mrf.mxu0
        %v991 = vadd.f32 %v837, %v990
        %v992 = vpop.f32.mrf.mxu0
        %993 = vmatprep.mubr.f32.mxu0 0.0
        %v994 = vand.u32 %v377, 4294901760
        %v995 = vsub.f32 %v377, %v994
        %v996 = vand.u32 %v995, 4294901760
        %997 = vmatmul.mubr.f32.gmra.mxu0 %v996
        %v998 = vpop.f32.mrf.mxu0
        %v999 = vadd.f32 %v844, %v998
        %v1000 = vpop.f32.mrf.mxu0
        %1001 = vdwg.mxu0
        %1002 = vmatprep.subr.mxu0 0.0
        %1003 = vmatpush1.msra.mxu0 0.0
        %1004 = vmatprep.subr.mxu0 0.0
        %1005 = vmatpush1.msra.mxu0 0.0
        %1006 = vmatprep.subr.mxu0 0.0
        %1007 = vmatpush1.msra.mxu0 0.0
        %1008 = vmatprep.subr.mxu0 0.0
        %1009 = vmatpush1.msra.mxu0 0.0
        %1010 = vmatprep.subr.mxu0 0.0
        %1011 = vmatpush1.msra.mxu0 0.0
        %1012 = vmatprep.subr.mxu0 0.0
        %1013 = vmatpush1.msra.mxu0 0.0
        %1014 = vmatprep.subr.mxu0 0.0
        %1015 = vmatpush1.msra.mxu0 0.0
        %1016 = vmatprep.subr.mxu0 0.0
        %1017 = vmatpush1.msra.mxu0 0.0
        %1018 = vmatprep.subr.mxu0 0.0
        %1019 = vmatpush1.msra.mxu0 0.0
        %1020 = vmatprep.subr.mxu0 0.0
        %1021 = vmatpush1.msra.mxu0 0.0
        %1022 = vmatprep.subr.mxu0 0.0
        %1023 = vmatpush1.msra.mxu0 0.0
        %1024 = vmatprep.subr.mxu0 0.0
        %1025 = vmatpush1.msra.mxu0 0.0
        %1026 = vmatprep.subr.mxu0 0.0
        %1027 = vmatpush1.msra.mxu0 0.0
        %1028 = vmatprep.subr.mxu0 0.0
        %1029 = vmatpush1.msra.mxu0 0.0
        %1030 = vmatprep.subr.mxu0 0.0
        %v1031 = vand.u32 %v381, 4294901760
        %v1032 = vsub.f32 %v381, %v1031
        %v1033 = vand.u32 %v1032, 4294901760
        %1034 = vmatpush1.msra.mxu0 %v1033
        %1035 = vmatprep.subr.mxu0 0.0
        %v1036 = vand.u32 %v214, 4294901760
        %v1037 = vsub.f32 %v214, %v1036
        %v1038 = vand.u32 %v1037, 4294901760
        %1039 = vmatpush1.msra.mxu0 %v1038
        %1040 = vmatprep.subr.mxu0 0.0
        %1041 = vmatpush2.msra.mxu0 0.0
        %1042 = vmatprep.subr.mxu0 0.0
        %1043 = vmatpush2.msra.mxu0 0.0
        %1044 = vmatprep.subr.mxu0 0.0
        %1045 = vmatpush2.msra.mxu0 0.0
        %1046 = vmatprep.subr.mxu0 0.0
        %1047 = vmatpush2.msra.mxu0 0.0
        %1048 = vmatprep.subr.mxu0 0.0
        %1049 = vmatpush2.msra.mxu0 0.0
        %1050 = vmatprep.subr.mxu0 0.0
        %1051 = vmatpush2.msra.mxu0 0.0
        %1052 = vmatprep.subr.mxu0 0.0
        %1053 = vmatpush2.msra.mxu0 0.0
        %1054 = vmatprep.subr.mxu0 0.0
        %1055 = vmatpush2.msra.mxu0 0.0
        %1056 = vmatprep.subr.mxu0 0.0
        %1057 = vmatpush2.msra.mxu0 0.0
        %1058 = vmatprep.subr.mxu0 0.0
        %1059 = vmatpush2.msra.mxu0 0.0
        %1060 = vmatprep.subr.mxu0 0.0
        %1061 = vmatpush2.msra.mxu0 0.0
        %1062 = vmatprep.subr.mxu0 0.0
        %1063 = vmatpush2.msra.mxu0 0.0
        %1064 = vmatprep.subr.mxu0 0.0
        %1065 = vmatpush2.msra.mxu0 0.0
        %1066 = vmatprep.subr.mxu0 0.0
        %1067 = vmatpush2.msra.mxu0 0.0
        %1068 = vmatprep.subr.mxu0 0.0
        %1069 = vmatpush2.msra.mxu0 0.0
        %1070 = vmatprep.subr.mxu0 0.0
        %1071 = vmatpush2.msra.mxu0 0.0
        %1072 = vmatprep.mubr.f32.mxu0 0.0
        %v1073 = vand.u32 %v347, 4294901760
        %1074 = vmatmul.mubr.f32.gmra.mxu0 %v1073
        %v1075 = vpop.f32.mrf.mxu0
        %v1076 = vadd.f32 %v919, %v1075
        %v1077 = vpop.f32.mrf.mxu0
        %1078 = vmatprep.mubr.f32.mxu0 0.0
        %v1079 = vand.u32 %v350, 4294901760
        %1080 = vmatmul.mubr.f32.gmra.mxu0 %v1079
        %v1081 = vpop.f32.mrf.mxu0
        %v1082 = vadd.f32 %v927, %v1081
        %v1083 = vpop.f32.mrf.mxu0
        %1084 = vmatprep.mubr.f32.mxu0 0.0
        %v1085 = vand.u32 %v353, 4294901760
        %1086 = vmatmul.mubr.f32.gmra.mxu0 %v1085
        %v1087 = vpop.f32.mrf.mxu0
        %v1088 = vadd.f32 %v935, %v1087
        %v1089 = vpop.f32.mrf.mxu0
        %1090 = vmatprep.mubr.f32.mxu0 0.0
        %v1091 = vand.u32 %v356, 4294901760
        %1092 = vmatmul.mubr.f32.gmra.mxu0 %v1091
        %v1093 = vpop.f32.mrf.mxu0
        %v1094 = vadd.f32 %v943, %v1093
        %v1095 = vpop.f32.mrf.mxu0
        %1096 = vmatprep.mubr.f32.mxu0 0.0
        %v1097 = vand.u32 %v359, 4294901760
        %1098 = vmatmul.mubr.f32.gmra.mxu0 %v1097
        %v1099 = vpop.f32.mrf.mxu0
        %v1100 = vadd.f32 %v951, %v1099
        %v1101 = vpop.f32.mrf.mxu0
        %1102 = vmatprep.mubr.f32.mxu0 0.0
        %v1103 = vand.u32 %v362, 4294901760
        %1104 = vmatmul.mubr.f32.gmra.mxu0 %v1103
        %v1105 = vpop.f32.mrf.mxu0
        %v1106 = vadd.f32 %v959, %v1105
        %v1107 = vpop.f32.mrf.mxu0
        %1108 = vmatprep.mubr.f32.mxu0 0.0
        %v1109 = vand.u32 %v365, 4294901760
        %1110 = vmatmul.mubr.f32.gmra.mxu0 %v1109
        %v1111 = vpop.f32.mrf.mxu0
        %v1112 = vadd.f32 %v967, %v1111
        %v1113 = vpop.f32.mrf.mxu0
        %1114 = vmatprep.mubr.f32.mxu0 0.0
        %v1115 = vand.u32 %v368, 4294901760
        %1116 = vmatmul.mubr.f32.gmra.mxu0 %v1115
        %v1117 = vpop.f32.mrf.mxu0
        %v1118 = vadd.f32 %v975, %v1117
        %v1119 = vpop.f32.mrf.mxu0
        %1120 = vmatprep.mubr.f32.mxu0 0.0
        %v1121 = vand.u32 %v371, 4294901760
        %1122 = vmatmul.mubr.f32.gmra.mxu0 %v1121
        %v1123 = vpop.f32.mrf.mxu0
        %v1124 = vadd.f32 %v983, %v1123
        %v1125 = vpop.f32.mrf.mxu0
        %1126 = vmatprep.mubr.f32.mxu0 0.0
        %v1127 = vand.u32 %v374, 4294901760
        %1128 = vmatmul.mubr.f32.gmra.mxu0 %v1127
        %v1129 = vpop.f32.mrf.mxu0
        %v1130 = vadd.f32 %v991, %v1129
        %v1131 = vpop.f32.mrf.mxu0
        %1132 = vmatprep.mubr.f32.mxu0 0.0
        %v1133 = vand.u32 %v377, 4294901760
        %1134 = vmatmul.mubr.f32.gmra.mxu0 %v1133
        %v1135 = vpop.f32.mrf.mxu0
        %v1136 = vadd.f32 %v999, %v1135
        %v1137 = vpop.f32.mrf.mxu0
        %1138 = vdwg.mxu0
        %1139 = vmatprep.subr.mxu0 0.0
        %1140 = vmatpush1.msra.mxu0 0.0
        %1141 = vmatprep.subr.mxu0 0.0
        %1142 = vmatpush1.msra.mxu0 0.0
        %1143 = vmatprep.subr.mxu0 0.0
        %1144 = vmatpush1.msra.mxu0 0.0
        %1145 = vmatprep.subr.mxu0 0.0
        %1146 = vmatpush1.msra.mxu0 0.0
        %1147 = vmatprep.subr.mxu0 0.0
        %1148 = vmatpush1.msra.mxu0 0.0
        %1149 = vmatprep.subr.mxu0 0.0
        %1150 = vmatpush1.msra.mxu0 0.0
        %1151 = vmatprep.subr.mxu0 0.0
        %1152 = vmatpush1.msra.mxu0 0.0
        %1153 = vmatprep.subr.mxu0 0.0
        %1154 = vmatpush1.msra.mxu0 0.0
        %1155 = vmatprep.subr.mxu0 0.0
        %1156 = vmatpush1.msra.mxu0 0.0
        %1157 = vmatprep.subr.mxu0 0.0
        %1158 = vmatpush1.msra.mxu0 0.0
        %1159 = vmatprep.subr.mxu0 0.0
        %1160 = vmatpush1.msra.mxu0 0.0
        %1161 = vmatprep.subr.mxu0 0.0
        %1162 = vmatpush1.msra.mxu0 0.0
        %1163 = vmatprep.subr.mxu0 0.0
        %1164 = vmatpush1.msra.mxu0 0.0
        %1165 = vmatprep.subr.mxu0 0.0
        %1166 = vmatpush1.msra.mxu0 0.0
        %1167 = vmatprep.subr.mxu0 0.0
        %v1168 = vand.u32 %v381, 4294901760
        %1169 = vmatpush1.msra.mxu0 %v1168
        %1170 = vmatprep.subr.mxu0 0.0
        %v1171 = vand.u32 %v214, 4294901760
        %1172 = vmatpush1.msra.mxu0 %v1171
        %1173 = vmatprep.subr.mxu0 0.0
        %1174 = vmatpush2.msra.mxu0 0.0
        %1175 = vmatprep.subr.mxu0 0.0
        %1176 = vmatpush2.msra.mxu0 0.0
        %1177 = vmatprep.subr.mxu0 0.0
        %1178 = vmatpush2.msra.mxu0 0.0
        %1179 = vmatprep.subr.mxu0 0.0
        %1180 = vmatpush2.msra.mxu0 0.0
        %1181 = vmatprep.subr.mxu0 0.0
        %1182 = vmatpush2.msra.mxu0 0.0
        %1183 = vmatprep.subr.mxu0 0.0
        %1184 = vmatpush2.msra.mxu0 0.0
        %1185 = vmatprep.subr.mxu0 0.0
        %1186 = vmatpush2.msra.mxu0 0.0
        %1187 = vmatprep.subr.mxu0 0.0
        %1188 = vmatpush2.msra.mxu0 0.0
        %1189 = vmatprep.subr.mxu0 0.0
        %1190 = vmatpush2.msra.mxu0 0.0
        %1191 = vmatprep.subr.mxu0 0.0
        %1192 = vmatpush2.msra.mxu0 0.0
        %1193 = vmatprep.subr.mxu0 0.0
        %1194 = vmatpush2.msra.mxu0 0.0
        %1195 = vmatprep.subr.mxu0 0.0
        %1196 = vmatpush2.msra.mxu0 0.0
        %1197 = vmatprep.subr.mxu0 0.0
        %1198 = vmatpush2.msra.mxu0 0.0
        %1199 = vmatprep.subr.mxu0 0.0
        %1200 = vmatpush2.msra.mxu0 0.0
        %1201 = vmatprep.subr.mxu0 0.0
        %1202 = vmatpush2.msra.mxu0 0.0
        %1203 = vmatprep.subr.mxu0 0.0
        %1204 = vmatpush2.msra.mxu0 0.0
        %1205 = vmatprep.mubr.f32.mxu0 0.0
        %v1206 = vand.u32 %v347, 4294901760
        %1207 = vmatmul.mubr.f32.gmra.mxu0 %v1206
        %v1208 = vpop.f32.mrf.mxu0
        %v1209 = vadd.f32 %v1076, %v1208
        %v1210 = vpop.f32.mrf.mxu0
        %1211 = vmatprep.mubr.f32.mxu0 0.0
        %v1212 = vand.u32 %v350, 4294901760
        %1213 = vmatmul.mubr.f32.gmra.mxu0 %v1212
        %v1214 = vpop.f32.mrf.mxu0
        %v1215 = vadd.f32 %v1082, %v1214
        %v1216 = vpop.f32.mrf.mxu0
        %1217 = vmatprep.mubr.f32.mxu0 0.0
        %v1218 = vand.u32 %v353, 4294901760
        %1219 = vmatmul.mubr.f32.gmra.mxu0 %v1218
        %v1220 = vpop.f32.mrf.mxu0
        %v1221 = vadd.f32 %v1088, %v1220
        %v1222 = vpop.f32.mrf.mxu0
        %1223 = vmatprep.mubr.f32.mxu0 0.0
        %v1224 = vand.u32 %v356, 4294901760
        %1225 = vmatmul.mubr.f32.gmra.mxu0 %v1224
        %v1226 = vpop.f32.mrf.mxu0
        %v1227 = vadd.f32 %v1094, %v1226
        %v1228 = vpop.f32.mrf.mxu0
        %1229 = vmatprep.mubr.f32.mxu0 0.0
        %v1230 = vand.u32 %v359, 4294901760
        %1231 = vmatmul.mubr.f32.gmra.mxu0 %v1230
        %v1232 = vpop.f32.mrf.mxu0
        %v1233 = vadd.f32 %v1100, %v1232
        %v1234 = vpop.f32.mrf.mxu0
        %1235 = vmatprep.mubr.f32.mxu0 0.0
        %v1236 = vand.u32 %v362, 4294901760
        %1237 = vmatmul.mubr.f32.gmra.mxu0 %v1236
        %v1238 = vpop.f32.mrf.mxu0
        %v1239 = vadd.f32 %v1106, %v1238
        %v1240 = vpop.f32.mrf.mxu0
        %1241 = vmatprep.mubr.f32.mxu0 0.0
        %v1242 = vand.u32 %v365, 4294901760
        %1243 = vmatmul.mubr.f32.gmra.mxu0 %v1242
        %v1244 = vpop.f32.mrf.mxu0
        %v1245 = vadd.f32 %v1112, %v1244
        %v1246 = vpop.f32.mrf.mxu0
        %1247 = vmatprep.mubr.f32.mxu0 0.0
        %v1248 = vand.u32 %v368, 4294901760
        %1249 = vmatmul.mubr.f32.gmra.mxu0 %v1248
        %v1250 = vpop.f32.mrf.mxu0
        %v1251 = vadd.f32 %v1118, %v1250
        %v1252 = vpop.f32.mrf.mxu0
        %1253 = vmatprep.mubr.f32.mxu0 0.0
        %v1254 = vand.u32 %v371, 4294901760
        %1255 = vmatmul.mubr.f32.gmra.mxu0 %v1254
        %v1256 = vpop.f32.mrf.mxu0
        %v1257 = vadd.f32 %v1124, %v1256
        %v1258 = vpop.f32.mrf.mxu0
        %1259 = vmatprep.mubr.f32.mxu0 0.0
        %v1260 = vand.u32 %v374, 4294901760
        %1261 = vmatmul.mubr.f32.gmra.mxu0 %v1260
        %v1262 = vpop.f32.mrf.mxu0
        %v1263 = vadd.f32 %v1130, %v1262
        %v1264 = vpop.f32.mrf.mxu0
        %1265 = vmatprep.mubr.f32.mxu0 0.0
        %v1266 = vand.u32 %v377, 4294901760
        %1267 = vmatmul.mubr.f32.gmra.mxu0 %v1266
        %v1268 = vpop.f32.mrf.mxu0
        %v1269 = vadd.f32 %v1136, %v1268
        %v1270 = vpop.f32.mrf.mxu0
        %1271 = vdwg.mxu0
        %v1272 = vand.u32 2147483647, %v218
        %v1273 = vand.u32 2147483647, %v219
        %v1274 = vand.u32 2147483647, %v220
        %v1275 = vand.u32 2147483647, %v221
        %v1276 = vand.u32 2147483647, %v222
        %v1277 = vand.u32 2147483647, %v223
        %v1278 = vand.u32 2147483647, %v224
        %v1279 = vand.u32 2147483647, %v225
        %v1280 = vand.u32 2147483647, %v226
        %v1281 = vand.u32 2147483647, %v227
        %v1282 = vand.u32 2147483647, %v228
        %v1283 = vand.u32 2147483647, %v229
        %v1284 = vand.u32 2147483647, %v230
        %v1285 = vand.u32 2147483647, %v231
        %v1286 = vand.u32 2147483647, %v232
        %v1287 = vand.u32 2147483647, %v233
        %vm1288 = vcmask 261120
        %v1289 = vsel %vm1288, %v1272, 0.0
        %v1290 = vsel %vm1288, %v1273, 0.0
        %v1291 = vadd.f32 %v1289, %v1290
        %v1292 = vsel %vm1288, %v1274, 0.0
        %v1293 = vadd.f32 %v1291, %v1292
        %v1294 = vsel %vm1288, %v1275, 0.0
        %v1295 = vadd.f32 %v1293, %v1294
        %v1296 = vsel %vm1288, %v1276, 0.0
        %v1297 = vadd.f32 %v1295, %v1296
        %v1298 = vsel %vm1288, %v1277, 0.0
        %v1299 = vadd.f32 %v1297, %v1298
        %v1300 = vsel %vm1288, %v1278, 0.0
        %v1301 = vadd.f32 %v1299, %v1300
        %v1302 = vsel %vm1288, %v1279, 0.0
        %v1303 = vadd.f32 %v1301, %v1302
        %v1304 = vsel %vm1288, %v1280, 0.0
        %v1305 = vadd.f32 %v1303, %v1304
        %v1306 = vsel %vm1288, %v1281, 0.0
        %v1307 = vadd.f32 %v1305, %v1306
        %v1308 = vsel %vm1288, %v1282, 0.0
        %v1309 = vadd.f32 %v1307, %v1308
        %v1310 = vsel %vm1288, %v1283, 0.0
        %v1311 = vadd.f32 %v1309, %v1310
        %v1312 = vsel %vm1288, %v1284, 0.0
        %v1313 = vadd.f32 %v1311, %v1312
        %v1314 = vsel %vm1288, %v1285, 0.0
        %v1315 = vadd.f32 %v1313, %v1314
        %v1316 = vsel %vm1288, %v1286, 0.0
        %v1317 = vadd.f32 %v1315, %v1316
        %v1318 = vsel %vm1288, %v1287, 0.0
        %v1319 = vadd.f32 %v1317, %v1318
        %vm1320 = vcmask 130048
        %v1322 = vsel %vm1320, %v229, 0
        %v1325 = vsel %vm1320, %v230, 0
        %v1328 = vsel %vm1320, %v231, 0
        %v1331 = vsel %vm1320, %v232, 0
        %v1334 = vsel %vm1320, %v233, 0
        %1336 = vmatprep.subr.mxu0 0.0
        %1337 = vmatpush1.msra.mxu0 0.0
        %1338 = vmatprep.subr.mxu0 0.0
        %1339 = vmatpush1.msra.mxu0 0.0
        %1340 = vmatprep.subr.mxu0 0.0
        %1341 = vmatpush1.msra.mxu0 0.0
        %1342 = vmatprep.subr.mxu0 0.0
        %1343 = vmatpush1.msra.mxu0 0.0
        %1344 = vmatprep.subr.mxu0 0.0
        %1345 = vmatpush1.msra.mxu0 0.0
        %1346 = vmatprep.subr.mxu0 0.0
        %1347 = vmatpush1.msra.mxu0 0.0
        %1348 = vmatprep.subr.mxu0 0.0
        %1349 = vmatpush1.msra.mxu0 0.0
        %1350 = vmatprep.subr.mxu0 0.0
        %1351 = vmatpush1.msra.mxu0 0.0
        %1352 = vmatprep.subr.mxu0 0.0
        %1353 = vmatpush1.msra.mxu0 0.0
        %1354 = vmatprep.subr.mxu0 0.0
        %1355 = vmatpush1.msra.mxu0 0.0
        %1356 = vmatprep.subr.mxu0 0.0
        %1357 = vmatpush1.msra.mxu0 0.0
        %1358 = vmatprep.subr.mxu0 0.0
        %1359 = vmatpush1.msra.mxu0 0.0
        %1360 = vmatprep.subr.mxu0 0.0
        %1361 = vmatpush1.msra.mxu0 0.0
        %1362 = vmatprep.subr.mxu0 0.0
        %1363 = vmatpush1.msra.mxu0 0.0
        %1364 = vmatprep.subr.mxu0 0.0
        %v1365 = vand.u32 %v215, 4294901760
        %1366 = vmatpush1.msra.mxu0 %v1365
        %1367 = vmatprep.subr.mxu0 0.0
        %v1368 = vand.u32 %v214, 4294901760
        %1369 = vmatpush1.msra.mxu0 %v1368
        %1370 = vmatprep.subr.mxu0 0.0
        %1371 = vmatpush2.msra.mxu0 0.0
        %1372 = vmatprep.subr.mxu0 0.0
        %1373 = vmatpush2.msra.mxu0 0.0
        %1374 = vmatprep.subr.mxu0 0.0
        %1375 = vmatpush2.msra.mxu0 0.0
        %1376 = vmatprep.subr.mxu0 0.0
        %1377 = vmatpush2.msra.mxu0 0.0
        %1378 = vmatprep.subr.mxu0 0.0
        %1379 = vmatpush2.msra.mxu0 0.0
        %1380 = vmatprep.subr.mxu0 0.0
        %1381 = vmatpush2.msra.mxu0 0.0
        %1382 = vmatprep.subr.mxu0 0.0
        %1383 = vmatpush2.msra.mxu0 0.0
        %1384 = vmatprep.subr.mxu0 0.0
        %1385 = vmatpush2.msra.mxu0 0.0
        %1386 = vmatprep.subr.mxu0 0.0
        %1387 = vmatpush2.msra.mxu0 0.0
        %1388 = vmatprep.subr.mxu0 0.0
        %1389 = vmatpush2.msra.mxu0 0.0
        %1390 = vmatprep.subr.mxu0 0.0
        %1391 = vmatpush2.msra.mxu0 0.0
        %1392 = vmatprep.subr.mxu0 0.0
        %1393 = vmatpush2.msra.mxu0 0.0
        %1394 = vmatprep.subr.mxu0 0.0
        %1395 = vmatpush2.msra.mxu0 0.0
        %1396 = vmatprep.subr.mxu0 0.0
        %1397 = vmatpush2.msra.mxu0 0.0
        %1398 = vmatprep.subr.mxu0 0.0
        %1399 = vmatpush2.msra.mxu0 0.0
        %1400 = vmatprep.subr.mxu0 0.0
        %1401 = vmatpush2.msra.mxu0 0.0
        %1402 = vmatprep.mubr.f32.mxu0 0.0
        %v1403 = vand.u32 %v1322, 4294901760
        %v1404 = vsub.f32 %v1322, %v1403
        %v1405 = vand.u32 %v1404, 4294901760
        %v1406 = vsub.f32 %v1404, %v1405
        %v1407 = vand.u32 %v1406, 4294901760
        %1408 = vmatmul.mubr.f32.gmra.mxu0 %v1407
        %v1409 = vpop.f32.mrf.mxu0
        %v1410 = vadd.f32 0.0, %v1409
        %v1411 = vpop.f32.mrf.mxu0
        %1412 = vmatprep.mubr.f32.mxu0 0.0
        %v1413 = vand.u32 %v1325, 4294901760
        %v1414 = vsub.f32 %v1325, %v1413
        %v1415 = vand.u32 %v1414, 4294901760
        %v1416 = vsub.f32 %v1414, %v1415
        %v1417 = vand.u32 %v1416, 4294901760
        %1418 = vmatmul.mubr.f32.gmra.mxu0 %v1417
        %v1419 = vpop.f32.mrf.mxu0
        %v1420 = vadd.f32 0.0, %v1419
        %v1421 = vpop.f32.mrf.mxu0
        %1422 = vmatprep.mubr.f32.mxu0 0.0
        %v1423 = vand.u32 %v1328, 4294901760
        %v1424 = vsub.f32 %v1328, %v1423
        %v1425 = vand.u32 %v1424, 4294901760
        %v1426 = vsub.f32 %v1424, %v1425
        %v1427 = vand.u32 %v1426, 4294901760
        %1428 = vmatmul.mubr.f32.gmra.mxu0 %v1427
        %v1429 = vpop.f32.mrf.mxu0
        %v1430 = vadd.f32 0.0, %v1429
        %v1431 = vpop.f32.mrf.mxu0
        %1432 = vmatprep.mubr.f32.mxu0 0.0
        %v1433 = vand.u32 %v1331, 4294901760
        %v1434 = vsub.f32 %v1331, %v1433
        %v1435 = vand.u32 %v1434, 4294901760
        %v1436 = vsub.f32 %v1434, %v1435
        %v1437 = vand.u32 %v1436, 4294901760
        %1438 = vmatmul.mubr.f32.gmra.mxu0 %v1437
        %v1439 = vpop.f32.mrf.mxu0
        %v1440 = vadd.f32 0.0, %v1439
        %v1441 = vpop.f32.mrf.mxu0
        %1442 = vmatprep.mubr.f32.mxu0 0.0
        %v1443 = vand.u32 %v1334, 4294901760
        %v1444 = vsub.f32 %v1334, %v1443
        %v1445 = vand.u32 %v1444, 4294901760
        %v1446 = vsub.f32 %v1444, %v1445
        %v1447 = vand.u32 %v1446, 4294901760
        %1448 = vmatmul.mubr.f32.gmra.mxu0 %v1447
        %v1449 = vpop.f32.mrf.mxu0
        %v1450 = vadd.f32 0.0, %v1449
        %v1451 = vpop.f32.mrf.mxu0
        %1452 = vdwg.mxu0
        %1453 = vmatprep.subr.mxu0 0.0
        %1454 = vmatpush1.msra.mxu0 0.0
        %1455 = vmatprep.subr.mxu0 0.0
        %1456 = vmatpush1.msra.mxu0 0.0
        %1457 = vmatprep.subr.mxu0 0.0
        %1458 = vmatpush1.msra.mxu0 0.0
        %1459 = vmatprep.subr.mxu0 0.0
        %1460 = vmatpush1.msra.mxu0 0.0
        %1461 = vmatprep.subr.mxu0 0.0
        %1462 = vmatpush1.msra.mxu0 0.0
        %1463 = vmatprep.subr.mxu0 0.0
        %1464 = vmatpush1.msra.mxu0 0.0
        %1465 = vmatprep.subr.mxu0 0.0
        %1466 = vmatpush1.msra.mxu0 0.0
        %1467 = vmatprep.subr.mxu0 0.0
        %1468 = vmatpush1.msra.mxu0 0.0
        %1469 = vmatprep.subr.mxu0 0.0
        %1470 = vmatpush1.msra.mxu0 0.0
        %1471 = vmatprep.subr.mxu0 0.0
        %1472 = vmatpush1.msra.mxu0 0.0
        %1473 = vmatprep.subr.mxu0 0.0
        %1474 = vmatpush1.msra.mxu0 0.0
        %1475 = vmatprep.subr.mxu0 0.0
        %1476 = vmatpush1.msra.mxu0 0.0
        %1477 = vmatprep.subr.mxu0 0.0
        %1478 = vmatpush1.msra.mxu0 0.0
        %1479 = vmatprep.subr.mxu0 0.0
        %1480 = vmatpush1.msra.mxu0 0.0
        %1481 = vmatprep.subr.mxu0 0.0
        %v1482 = vand.u32 %v215, 4294901760
        %v1483 = vsub.f32 %v215, %v1482
        %v1484 = vand.u32 %v1483, 4294901760
        %v1485 = vsub.f32 %v1483, %v1484
        %v1486 = vand.u32 %v1485, 4294901760
        %1487 = vmatpush1.msra.mxu0 %v1486
        %1488 = vmatprep.subr.mxu0 0.0
        %v1489 = vand.u32 %v214, 4294901760
        %v1490 = vsub.f32 %v214, %v1489
        %v1491 = vand.u32 %v1490, 4294901760
        %v1492 = vsub.f32 %v1490, %v1491
        %v1493 = vand.u32 %v1492, 4294901760
        %1494 = vmatpush1.msra.mxu0 %v1493
        %1495 = vmatprep.subr.mxu0 0.0
        %1496 = vmatpush2.msra.mxu0 0.0
        %1497 = vmatprep.subr.mxu0 0.0
        %1498 = vmatpush2.msra.mxu0 0.0
        %1499 = vmatprep.subr.mxu0 0.0
        %1500 = vmatpush2.msra.mxu0 0.0
        %1501 = vmatprep.subr.mxu0 0.0
        %1502 = vmatpush2.msra.mxu0 0.0
        %1503 = vmatprep.subr.mxu0 0.0
        %1504 = vmatpush2.msra.mxu0 0.0
        %1505 = vmatprep.subr.mxu0 0.0
        %1506 = vmatpush2.msra.mxu0 0.0
        %1507 = vmatprep.subr.mxu0 0.0
        %1508 = vmatpush2.msra.mxu0 0.0
        %1509 = vmatprep.subr.mxu0 0.0
        %1510 = vmatpush2.msra.mxu0 0.0
        %1511 = vmatprep.subr.mxu0 0.0
        %1512 = vmatpush2.msra.mxu0 0.0
        %1513 = vmatprep.subr.mxu0 0.0
        %1514 = vmatpush2.msra.mxu0 0.0
        %1515 = vmatprep.subr.mxu0 0.0
        %1516 = vmatpush2.msra.mxu0 0.0
        %1517 = vmatprep.subr.mxu0 0.0
        %1518 = vmatpush2.msra.mxu0 0.0
        %1519 = vmatprep.subr.mxu0 0.0
        %1520 = vmatpush2.msra.mxu0 0.0
        %1521 = vmatprep.subr.mxu0 0.0
        %1522 = vmatpush2.msra.mxu0 0.0
        %1523 = vmatprep.subr.mxu0 0.0
        %1524 = vmatpush2.msra.mxu0 0.0
        %1525 = vmatprep.subr.mxu0 0.0
        %1526 = vmatpush2.msra.mxu0 0.0
        %1527 = vmatprep.mubr.f32.mxu0 0.0
        %v1528 = vand.u32 %v1322, 4294901760
        %1529 = vmatmul.mubr.f32.gmra.mxu0 %v1528
        %v1530 = vpop.f32.mrf.mxu0
        %v1531 = vadd.f32 %v1410, %v1530
        %v1532 = vpop.f32.mrf.mxu0
        %1533 = vmatprep.mubr.f32.mxu0 0.0
        %v1534 = vand.u32 %v1325, 4294901760
        %1535 = vmatmul.mubr.f32.gmra.mxu0 %v1534
        %v1536 = vpop.f32.mrf.mxu0
        %v1537 = vadd.f32 %v1420, %v1536
        %v1538 = vpop.f32.mrf.mxu0
        %1539 = vmatprep.mubr.f32.mxu0 0.0
        %v1540 = vand.u32 %v1328, 4294901760
        %1541 = vmatmul.mubr.f32.gmra.mxu0 %v1540
        %v1542 = vpop.f32.mrf.mxu0
        %v1543 = vadd.f32 %v1430, %v1542
        %v1544 = vpop.f32.mrf.mxu0
        %1545 = vmatprep.mubr.f32.mxu0 0.0
        %v1546 = vand.u32 %v1331, 4294901760
        %1547 = vmatmul.mubr.f32.gmra.mxu0 %v1546
        %v1548 = vpop.f32.mrf.mxu0
        %v1549 = vadd.f32 %v1440, %v1548
        %v1550 = vpop.f32.mrf.mxu0
        %1551 = vmatprep.mubr.f32.mxu0 0.0
        %v1552 = vand.u32 %v1334, 4294901760
        %1553 = vmatmul.mubr.f32.gmra.mxu0 %v1552
        %v1554 = vpop.f32.mrf.mxu0
        %v1555 = vadd.f32 %v1450, %v1554
        %v1556 = vpop.f32.mrf.mxu0
        %1557 = vdwg.mxu0
        %1558 = vmatprep.subr.mxu0 0.0
        %1559 = vmatpush1.msra.mxu0 0.0
        %1560 = vmatprep.subr.mxu0 0.0
        %1561 = vmatpush1.msra.mxu0 0.0
        %1562 = vmatprep.subr.mxu0 0.0
        %1563 = vmatpush1.msra.mxu0 0.0
        %1564 = vmatprep.subr.mxu0 0.0
        %1565 = vmatpush1.msra.mxu0 0.0
        %1566 = vmatprep.subr.mxu0 0.0
        %1567 = vmatpush1.msra.mxu0 0.0
        %1568 = vmatprep.subr.mxu0 0.0
        %1569 = vmatpush1.msra.mxu0 0.0
        %1570 = vmatprep.subr.mxu0 0.0
        %1571 = vmatpush1.msra.mxu0 0.0
        %1572 = vmatprep.subr.mxu0 0.0
        %1573 = vmatpush1.msra.mxu0 0.0
        %1574 = vmatprep.subr.mxu0 0.0
        %1575 = vmatpush1.msra.mxu0 0.0
        %1576 = vmatprep.subr.mxu0 0.0
        %1577 = vmatpush1.msra.mxu0 0.0
        %1578 = vmatprep.subr.mxu0 0.0
        %1579 = vmatpush1.msra.mxu0 0.0
        %1580 = vmatprep.subr.mxu0 0.0
        %1581 = vmatpush1.msra.mxu0 0.0
        %1582 = vmatprep.subr.mxu0 0.0
        %1583 = vmatpush1.msra.mxu0 0.0
        %1584 = vmatprep.subr.mxu0 0.0
        %1585 = vmatpush1.msra.mxu0 0.0
        %1586 = vmatprep.subr.mxu0 0.0
        %v1587 = vand.u32 %v215, 4294901760
        %v1588 = vsub.f32 %v215, %v1587
        %1589 = vmatpush1.msra.mxu0 %v1588
        %1590 = vmatprep.subr.mxu0 0.0
        %v1591 = vand.u32 %v214, 4294901760
        %v1592 = vsub.f32 %v214, %v1591
        %1593 = vmatpush1.msra.mxu0 %v1592
        %1594 = vmatprep.subr.mxu0 0.0
        %1595 = vmatpush2.msra.mxu0 0.0
        %1596 = vmatprep.subr.mxu0 0.0
        %1597 = vmatpush2.msra.mxu0 0.0
        %1598 = vmatprep.subr.mxu0 0.0
        %1599 = vmatpush2.msra.mxu0 0.0
        %1600 = vmatprep.subr.mxu0 0.0
        %1601 = vmatpush2.msra.mxu0 0.0
        %1602 = vmatprep.subr.mxu0 0.0
        %1603 = vmatpush2.msra.mxu0 0.0
        %1604 = vmatprep.subr.mxu0 0.0
        %1605 = vmatpush2.msra.mxu0 0.0
        %1606 = vmatprep.subr.mxu0 0.0
        %1607 = vmatpush2.msra.mxu0 0.0
        %1608 = vmatprep.subr.mxu0 0.0
        %1609 = vmatpush2.msra.mxu0 0.0
        %1610 = vmatprep.subr.mxu0 0.0
        %1611 = vmatpush2.msra.mxu0 0.0
        %1612 = vmatprep.subr.mxu0 0.0
        %1613 = vmatpush2.msra.mxu0 0.0
        %1614 = vmatprep.subr.mxu0 0.0
        %1615 = vmatpush2.msra.mxu0 0.0
        %1616 = vmatprep.subr.mxu0 0.0
        %1617 = vmatpush2.msra.mxu0 0.0
        %1618 = vmatprep.subr.mxu0 0.0
        %1619 = vmatpush2.msra.mxu0 0.0
        %1620 = vmatprep.subr.mxu0 0.0
        %1621 = vmatpush2.msra.mxu0 0.0
        %1622 = vmatprep.subr.mxu0 0.0
        %1623 = vmatpush2.msra.mxu0 0.0
        %1624 = vmatprep.subr.mxu0 0.0
        %1625 = vmatpush2.msra.mxu0 0.0
        %1626 = vmatprep.mubr.f32.mxu0 0.0
        %v1627 = vand.u32 %v1322, 4294901760
        %v1628 = vsub.f32 %v1322, %v1627
        %1629 = vmatmul.mubr.f32.gmra.mxu0 %v1628
        %v1630 = vpop.f32.mrf.mxu0
        %v1631 = vadd.f32 %v1531, %v1630
        %v1632 = vpop.f32.mrf.mxu0
        %1633 = vmatprep.mubr.f32.mxu0 0.0
        %v1634 = vand.u32 %v1325, 4294901760
        %v1635 = vsub.f32 %v1325, %v1634
        %1636 = vmatmul.mubr.f32.gmra.mxu0 %v1635
        %v1637 = vpop.f32.mrf.mxu0
        %v1638 = vadd.f32 %v1537, %v1637
        %v1639 = vpop.f32.mrf.mxu0
        %1640 = vmatprep.mubr.f32.mxu0 0.0
        %v1641 = vand.u32 %v1328, 4294901760
        %v1642 = vsub.f32 %v1328, %v1641
        %1643 = vmatmul.mubr.f32.gmra.mxu0 %v1642
        %v1644 = vpop.f32.mrf.mxu0
        %v1645 = vadd.f32 %v1543, %v1644
        %v1646 = vpop.f32.mrf.mxu0
        %1647 = vmatprep.mubr.f32.mxu0 0.0
        %v1648 = vand.u32 %v1331, 4294901760
        %v1649 = vsub.f32 %v1331, %v1648
        %1650 = vmatmul.mubr.f32.gmra.mxu0 %v1649
        %v1651 = vpop.f32.mrf.mxu0
        %v1652 = vadd.f32 %v1549, %v1651
        %v1653 = vpop.f32.mrf.mxu0
        %1654 = vmatprep.mubr.f32.mxu0 0.0
        %v1655 = vand.u32 %v1334, 4294901760
        %v1656 = vsub.f32 %v1334, %v1655
        %1657 = vmatmul.mubr.f32.gmra.mxu0 %v1656
        %v1658 = vpop.f32.mrf.mxu0
        %v1659 = vadd.f32 %v1555, %v1658
        %v1660 = vpop.f32.mrf.mxu0
        %1661 = vdwg.mxu0
        %1662 = vmatprep.subr.mxu0 0.0
        %1663 = vmatpush1.msra.mxu0 0.0
        %1664 = vmatprep.subr.mxu0 0.0
        %1665 = vmatpush1.msra.mxu0 0.0
        %1666 = vmatprep.subr.mxu0 0.0
        %1667 = vmatpush1.msra.mxu0 0.0
        %1668 = vmatprep.subr.mxu0 0.0
        %1669 = vmatpush1.msra.mxu0 0.0
        %1670 = vmatprep.subr.mxu0 0.0
        %1671 = vmatpush1.msra.mxu0 0.0
        %1672 = vmatprep.subr.mxu0 0.0
        %1673 = vmatpush1.msra.mxu0 0.0
        %1674 = vmatprep.subr.mxu0 0.0
        %1675 = vmatpush1.msra.mxu0 0.0
        %1676 = vmatprep.subr.mxu0 0.0
        %1677 = vmatpush1.msra.mxu0 0.0
        %1678 = vmatprep.subr.mxu0 0.0
        %1679 = vmatpush1.msra.mxu0 0.0
        %1680 = vmatprep.subr.mxu0 0.0
        %1681 = vmatpush1.msra.mxu0 0.0
        %1682 = vmatprep.subr.mxu0 0.0
        %1683 = vmatpush1.msra.mxu0 0.0
        %1684 = vmatprep.subr.mxu0 0.0
        %1685 = vmatpush1.msra.mxu0 0.0
        %1686 = vmatprep.subr.mxu0 0.0
        %1687 = vmatpush1.msra.mxu0 0.0
        %1688 = vmatprep.subr.mxu0 0.0
        %1689 = vmatpush1.msra.mxu0 0.0
        %1690 = vmatprep.subr.mxu0 0.0
        %v1691 = vand.u32 %v215, 4294901760
        %1692 = vmatpush1.msra.mxu0 %v1691
        %1693 = vmatprep.subr.mxu0 0.0
        %v1694 = vand.u32 %v214, 4294901760
        %1695 = vmatpush1.msra.mxu0 %v1694
        %1696 = vmatprep.subr.mxu0 0.0
        %1697 = vmatpush2.msra.mxu0 0.0
        %1698 = vmatprep.subr.mxu0 0.0
        %1699 = vmatpush2.msra.mxu0 0.0
        %1700 = vmatprep.subr.mxu0 0.0
        %1701 = vmatpush2.msra.mxu0 0.0
        %1702 = vmatprep.subr.mxu0 0.0
        %1703 = vmatpush2.msra.mxu0 0.0
        %1704 = vmatprep.subr.mxu0 0.0
        %1705 = vmatpush2.msra.mxu0 0.0
        %1706 = vmatprep.subr.mxu0 0.0
        %1707 = vmatpush2.msra.mxu0 0.0
        %1708 = vmatprep.subr.mxu0 0.0
        %1709 = vmatpush2.msra.mxu0 0.0
        %1710 = vmatprep.subr.mxu0 0.0
        %1711 = vmatpush2.msra.mxu0 0.0
        %1712 = vmatprep.subr.mxu0 0.0
        %1713 = vmatpush2.msra.mxu0 0.0
        %1714 = vmatprep.subr.mxu0 0.0
        %1715 = vmatpush2.msra.mxu0 0.0
        %1716 = vmatprep.subr.mxu0 0.0
        %1717 = vmatpush2.msra.mxu0 0.0
        %1718 = vmatprep.subr.mxu0 0.0
        %1719 = vmatpush2.msra.mxu0 0.0
        %1720 = vmatprep.subr.mxu0 0.0
        %1721 = vmatpush2.msra.mxu0 0.0
        %1722 = vmatprep.subr.mxu0 0.0
        %1723 = vmatpush2.msra.mxu0 0.0
        %1724 = vmatprep.subr.mxu0 0.0
        %1725 = vmatpush2.msra.mxu0 0.0
        %1726 = vmatprep.subr.mxu0 0.0
        %1727 = vmatpush2.msra.mxu0 0.0
        %1728 = vmatprep.mubr.f32.mxu0 0.0
        %v1729 = vand.u32 %v1322, 4294901760
        %v1730 = vsub.f32 %v1322, %v1729
        %v1731 = vand.u32 %v1730, 4294901760
        %1732 = vmatmul.mubr.f32.gmra.mxu0 %v1731
        %v1733 = vpop.f32.mrf.mxu0
        %v1734 = vadd.f32 %v1631, %v1733
        %v1735 = vpop.f32.mrf.mxu0
        %1736 = vmatprep.mubr.f32.mxu0 0.0
        %v1737 = vand.u32 %v1325, 4294901760
        %v1738 = vsub.f32 %v1325, %v1737
        %v1739 = vand.u32 %v1738, 4294901760
        %1740 = vmatmul.mubr.f32.gmra.mxu0 %v1739
        %v1741 = vpop.f32.mrf.mxu0
        %v1742 = vadd.f32 %v1638, %v1741
        %v1743 = vpop.f32.mrf.mxu0
        %1744 = vmatprep.mubr.f32.mxu0 0.0
        %v1745 = vand.u32 %v1328, 4294901760
        %v1746 = vsub.f32 %v1328, %v1745
        %v1747 = vand.u32 %v1746, 4294901760
        %1748 = vmatmul.mubr.f32.gmra.mxu0 %v1747
        %v1749 = vpop.f32.mrf.mxu0
        %v1750 = vadd.f32 %v1645, %v1749
        %v1751 = vpop.f32.mrf.mxu0
        %1752 = vmatprep.mubr.f32.mxu0 0.0
        %v1753 = vand.u32 %v1331, 4294901760
        %v1754 = vsub.f32 %v1331, %v1753
        %v1755 = vand.u32 %v1754, 4294901760
        %1756 = vmatmul.mubr.f32.gmra.mxu0 %v1755
        %v1757 = vpop.f32.mrf.mxu0
        %v1758 = vadd.f32 %v1652, %v1757
        %v1759 = vpop.f32.mrf.mxu0
        %1760 = vmatprep.mubr.f32.mxu0 0.0
        %v1761 = vand.u32 %v1334, 4294901760
        %v1762 = vsub.f32 %v1334, %v1761
        %v1763 = vand.u32 %v1762, 4294901760
        %1764 = vmatmul.mubr.f32.gmra.mxu0 %v1763
        %v1765 = vpop.f32.mrf.mxu0
        %v1766 = vadd.f32 %v1659, %v1765
        %v1767 = vpop.f32.mrf.mxu0
        %1768 = vdwg.mxu0
        %1769 = vmatprep.subr.mxu0 0.0
        %1770 = vmatpush1.msra.mxu0 0.0
        %1771 = vmatprep.subr.mxu0 0.0
        %1772 = vmatpush1.msra.mxu0 0.0
        %1773 = vmatprep.subr.mxu0 0.0
        %1774 = vmatpush1.msra.mxu0 0.0
        %1775 = vmatprep.subr.mxu0 0.0
        %1776 = vmatpush1.msra.mxu0 0.0
        %1777 = vmatprep.subr.mxu0 0.0
        %1778 = vmatpush1.msra.mxu0 0.0
        %1779 = vmatprep.subr.mxu0 0.0
        %1780 = vmatpush1.msra.mxu0 0.0
        %1781 = vmatprep.subr.mxu0 0.0
        %1782 = vmatpush1.msra.mxu0 0.0
        %1783 = vmatprep.subr.mxu0 0.0
        %1784 = vmatpush1.msra.mxu0 0.0
        %1785 = vmatprep.subr.mxu0 0.0
        %1786 = vmatpush1.msra.mxu0 0.0
        %1787 = vmatprep.subr.mxu0 0.0
        %1788 = vmatpush1.msra.mxu0 0.0
        %1789 = vmatprep.subr.mxu0 0.0
        %1790 = vmatpush1.msra.mxu0 0.0
        %1791 = vmatprep.subr.mxu0 0.0
        %1792 = vmatpush1.msra.mxu0 0.0
        %1793 = vmatprep.subr.mxu0 0.0
        %1794 = vmatpush1.msra.mxu0 0.0
        %1795 = vmatprep.subr.mxu0 0.0
        %1796 = vmatpush1.msra.mxu0 0.0
        %1797 = vmatprep.subr.mxu0 0.0
        %v1798 = vand.u32 %v215, 4294901760
        %v1799 = vsub.f32 %v215, %v1798
        %v1800 = vand.u32 %v1799, 4294901760
        %1801 = vmatpush1.msra.mxu0 %v1800
        %1802 = vmatprep.subr.mxu0 0.0
        %v1803 = vand.u32 %v214, 4294901760
        %v1804 = vsub.f32 %v214, %v1803
        %v1805 = vand.u32 %v1804, 4294901760
        %1806 = vmatpush1.msra.mxu0 %v1805
        %1807 = vmatprep.subr.mxu0 0.0
        %1808 = vmatpush2.msra.mxu0 0.0
        %1809 = vmatprep.subr.mxu0 0.0
        %1810 = vmatpush2.msra.mxu0 0.0
        %1811 = vmatprep.subr.mxu0 0.0
        %1812 = vmatpush2.msra.mxu0 0.0
        %1813 = vmatprep.subr.mxu0 0.0
        %1814 = vmatpush2.msra.mxu0 0.0
        %1815 = vmatprep.subr.mxu0 0.0
        %1816 = vmatpush2.msra.mxu0 0.0
        %1817 = vmatprep.subr.mxu0 0.0
        %1818 = vmatpush2.msra.mxu0 0.0
        %1819 = vmatprep.subr.mxu0 0.0
        %1820 = vmatpush2.msra.mxu0 0.0
        %1821 = vmatprep.subr.mxu0 0.0
        %1822 = vmatpush2.msra.mxu0 0.0
        %1823 = vmatprep.subr.mxu0 0.0
        %1824 = vmatpush2.msra.mxu0 0.0
        %1825 = vmatprep.subr.mxu0 0.0
        %1826 = vmatpush2.msra.mxu0 0.0
        %1827 = vmatprep.subr.mxu0 0.0
        %1828 = vmatpush2.msra.mxu0 0.0
        %1829 = vmatprep.subr.mxu0 0.0
        %1830 = vmatpush2.msra.mxu0 0.0
        %1831 = vmatprep.subr.mxu0 0.0
        %1832 = vmatpush2.msra.mxu0 0.0
        %1833 = vmatprep.subr.mxu0 0.0
        %1834 = vmatpush2.msra.mxu0 0.0
        %1835 = vmatprep.subr.mxu0 0.0
        %1836 = vmatpush2.msra.mxu0 0.0
        %1837 = vmatprep.subr.mxu0 0.0
        %1838 = vmatpush2.msra.mxu0 0.0
        %1839 = vmatprep.mubr.f32.mxu0 0.0
        %v1840 = vand.u32 %v1322, 4294901760
        %1841 = vmatmul.mubr.f32.gmra.mxu0 %v1840
        %v1842 = vpop.f32.mrf.mxu0
        %v1843 = vadd.f32 %v1734, %v1842
        %v1844 = vpop.f32.mrf.mxu0
        %1845 = vmatprep.mubr.f32.mxu0 0.0
        %v1846 = vand.u32 %v1325, 4294901760
        %1847 = vmatmul.mubr.f32.gmra.mxu0 %v1846
        %v1848 = vpop.f32.mrf.mxu0
        %v1849 = vadd.f32 %v1742, %v1848
        %v1850 = vpop.f32.mrf.mxu0
        %1851 = vmatprep.mubr.f32.mxu0 0.0
        %v1852 = vand.u32 %v1328, 4294901760
        %1853 = vmatmul.mubr.f32.gmra.mxu0 %v1852
        %v1854 = vpop.f32.mrf.mxu0
        %v1855 = vadd.f32 %v1750, %v1854
        %v1856 = vpop.f32.mrf.mxu0
        %1857 = vmatprep.mubr.f32.mxu0 0.0
        %v1858 = vand.u32 %v1331, 4294901760
        %1859 = vmatmul.mubr.f32.gmra.mxu0 %v1858
        %v1860 = vpop.f32.mrf.mxu0
        %v1861 = vadd.f32 %v1758, %v1860
        %v1862 = vpop.f32.mrf.mxu0
        %1863 = vmatprep.mubr.f32.mxu0 0.0
        %v1864 = vand.u32 %v1334, 4294901760
        %1865 = vmatmul.mubr.f32.gmra.mxu0 %v1864
        %v1866 = vpop.f32.mrf.mxu0
        %v1867 = vadd.f32 %v1766, %v1866
        %v1868 = vpop.f32.mrf.mxu0
        %1869 = vdwg.mxu0
        %1870 = vmatprep.subr.mxu0 0.0
        %1871 = vmatpush1.msra.mxu0 0.0
        %1872 = vmatprep.subr.mxu0 0.0
        %1873 = vmatpush1.msra.mxu0 0.0
        %1874 = vmatprep.subr.mxu0 0.0
        %1875 = vmatpush1.msra.mxu0 0.0
        %1876 = vmatprep.subr.mxu0 0.0
        %1877 = vmatpush1.msra.mxu0 0.0
        %1878 = vmatprep.subr.mxu0 0.0
        %1879 = vmatpush1.msra.mxu0 0.0
        %1880 = vmatprep.subr.mxu0 0.0
        %1881 = vmatpush1.msra.mxu0 0.0
        %1882 = vmatprep.subr.mxu0 0.0
        %1883 = vmatpush1.msra.mxu0 0.0
        %1884 = vmatprep.subr.mxu0 0.0
        %1885 = vmatpush1.msra.mxu0 0.0
        %1886 = vmatprep.subr.mxu0 0.0
        %1887 = vmatpush1.msra.mxu0 0.0
        %1888 = vmatprep.subr.mxu0 0.0
        %1889 = vmatpush1.msra.mxu0 0.0
        %1890 = vmatprep.subr.mxu0 0.0
        %1891 = vmatpush1.msra.mxu0 0.0
        %1892 = vmatprep.subr.mxu0 0.0
        %1893 = vmatpush1.msra.mxu0 0.0
        %1894 = vmatprep.subr.mxu0 0.0
        %1895 = vmatpush1.msra.mxu0 0.0
        %1896 = vmatprep.subr.mxu0 0.0
        %1897 = vmatpush1.msra.mxu0 0.0
        %1898 = vmatprep.subr.mxu0 0.0
        %v1899 = vand.u32 %v215, 4294901760
        %1900 = vmatpush1.msra.mxu0 %v1899
        %1901 = vmatprep.subr.mxu0 0.0
        %v1902 = vand.u32 %v214, 4294901760
        %1903 = vmatpush1.msra.mxu0 %v1902
        %1904 = vmatprep.subr.mxu0 0.0
        %1905 = vmatpush2.msra.mxu0 0.0
        %1906 = vmatprep.subr.mxu0 0.0
        %1907 = vmatpush2.msra.mxu0 0.0
        %1908 = vmatprep.subr.mxu0 0.0
        %1909 = vmatpush2.msra.mxu0 0.0
        %1910 = vmatprep.subr.mxu0 0.0
        %1911 = vmatpush2.msra.mxu0 0.0
        %1912 = vmatprep.subr.mxu0 0.0
        %1913 = vmatpush2.msra.mxu0 0.0
        %1914 = vmatprep.subr.mxu0 0.0
        %1915 = vmatpush2.msra.mxu0 0.0
        %1916 = vmatprep.subr.mxu0 0.0
        %1917 = vmatpush2.msra.mxu0 0.0
        %1918 = vmatprep.subr.mxu0 0.0
        %1919 = vmatpush2.msra.mxu0 0.0
        %1920 = vmatprep.subr.mxu0 0.0
        %1921 = vmatpush2.msra.mxu0 0.0
        %1922 = vmatprep.subr.mxu0 0.0
        %1923 = vmatpush2.msra.mxu0 0.0
        %1924 = vmatprep.subr.mxu0 0.0
        %1925 = vmatpush2.msra.mxu0 0.0
        %1926 = vmatprep.subr.mxu0 0.0
        %1927 = vmatpush2.msra.mxu0 0.0
        %1928 = vmatprep.subr.mxu0 0.0
        %1929 = vmatpush2.msra.mxu0 0.0
        %1930 = vmatprep.subr.mxu0 0.0
        %1931 = vmatpush2.msra.mxu0 0.0
        %1932 = vmatprep.subr.mxu0 0.0
        %1933 = vmatpush2.msra.mxu0 0.0
        %1934 = vmatprep.subr.mxu0 0.0
        %1935 = vmatpush2.msra.mxu0 0.0
        %1936 = vmatprep.mubr.f32.mxu0 0.0
        %v1937 = vand.u32 %v1322, 4294901760
        %1938 = vmatmul.mubr.f32.gmra.mxu0 %v1937
        %v1939 = vpop.f32.mrf.mxu0
        %v1940 = vadd.f32 %v1843, %v1939
        %v1941 = vpop.f32.mrf.mxu0
        %1942 = vmatprep.mubr.f32.mxu0 0.0
        %v1943 = vand.u32 %v1325, 4294901760
        %1944 = vmatmul.mubr.f32.gmra.mxu0 %v1943
        %v1945 = vpop.f32.mrf.mxu0
        %v1946 = vadd.f32 %v1849, %v1945
        %v1947 = vpop.f32.mrf.mxu0
        %1948 = vmatprep.mubr.f32.mxu0 0.0
        %v1949 = vand.u32 %v1328, 4294901760
        %1950 = vmatmul.mubr.f32.gmra.mxu0 %v1949
        %v1951 = vpop.f32.mrf.mxu0
        %v1952 = vadd.f32 %v1855, %v1951
        %v1953 = vpop.f32.mrf.mxu0
        %1954 = vmatprep.mubr.f32.mxu0 0.0
        %v1955 = vand.u32 %v1331, 4294901760
        %1956 = vmatmul.mubr.f32.gmra.mxu0 %v1955
        %v1957 = vpop.f32.mrf.mxu0
        %v1958 = vadd.f32 %v1861, %v1957
        %v1959 = vpop.f32.mrf.mxu0
        %1960 = vmatprep.mubr.f32.mxu0 0.0
        %v1961 = vand.u32 %v1334, 4294901760
        %1962 = vmatmul.mubr.f32.gmra.mxu0 %v1961
        %v1963 = vpop.f32.mrf.mxu0
        %v1964 = vadd.f32 %v1867, %v1963
        %v1965 = vpop.f32.mrf.mxu0
        %1966 = vdwg.mxu0
        %v1968 = vsel %vm1320, %v1319, 0
        %1970 = vmatprep.subr.mxu0 0.0
        %1971 = vmatpush1.msra.mxu0 0.0
        %1972 = vmatprep.subr.mxu0 0.0
        %1973 = vmatpush1.msra.mxu0 0.0
        %1974 = vmatprep.subr.mxu0 0.0
        %1975 = vmatpush1.msra.mxu0 0.0
        %1976 = vmatprep.subr.mxu0 0.0
        %1977 = vmatpush1.msra.mxu0 0.0
        %1978 = vmatprep.subr.mxu0 0.0
        %1979 = vmatpush1.msra.mxu0 0.0
        %1980 = vmatprep.subr.mxu0 0.0
        %1981 = vmatpush1.msra.mxu0 0.0
        %1982 = vmatprep.subr.mxu0 0.0
        %1983 = vmatpush1.msra.mxu0 0.0
        %1984 = vmatprep.subr.mxu0 0.0
        %1985 = vmatpush1.msra.mxu0 0.0
        %1986 = vmatprep.subr.mxu0 0.0
        %1987 = vmatpush1.msra.mxu0 0.0
        %1988 = vmatprep.subr.mxu0 0.0
        %1989 = vmatpush1.msra.mxu0 0.0
        %1990 = vmatprep.subr.mxu0 0.0
        %1991 = vmatpush1.msra.mxu0 0.0
        %1992 = vmatprep.subr.mxu0 0.0
        %1993 = vmatpush1.msra.mxu0 0.0
        %1994 = vmatprep.subr.mxu0 0.0
        %1995 = vmatpush1.msra.mxu0 0.0
        %1996 = vmatprep.subr.mxu0 0.0
        %1997 = vmatpush1.msra.mxu0 0.0
        %1998 = vmatprep.subr.mxu0 0.0
        %v1999 = vand.u32 %v215, 4294901760
        %2000 = vmatpush1.msra.mxu0 %v1999
        %2001 = vmatprep.subr.mxu0 0.0
        %v2002 = vand.u32 %v214, 4294901760
        %2003 = vmatpush1.msra.mxu0 %v2002
        %2004 = vmatprep.subr.mxu0 0.0
        %2005 = vmatpush2.msra.mxu0 0.0
        %2006 = vmatprep.subr.mxu0 0.0
        %2007 = vmatpush2.msra.mxu0 0.0
        %2008 = vmatprep.subr.mxu0 0.0
        %2009 = vmatpush2.msra.mxu0 0.0
        %2010 = vmatprep.subr.mxu0 0.0
        %2011 = vmatpush2.msra.mxu0 0.0
        %2012 = vmatprep.subr.mxu0 0.0
        %2013 = vmatpush2.msra.mxu0 0.0
        %2014 = vmatprep.subr.mxu0 0.0
        %2015 = vmatpush2.msra.mxu0 0.0
        %2016 = vmatprep.subr.mxu0 0.0
        %2017 = vmatpush2.msra.mxu0 0.0
        %2018 = vmatprep.subr.mxu0 0.0
        %2019 = vmatpush2.msra.mxu0 0.0
        %2020 = vmatprep.subr.mxu0 0.0
        %2021 = vmatpush2.msra.mxu0 0.0
        %2022 = vmatprep.subr.mxu0 0.0
        %2023 = vmatpush2.msra.mxu0 0.0
        %2024 = vmatprep.subr.mxu0 0.0
        %2025 = vmatpush2.msra.mxu0 0.0
        %2026 = vmatprep.subr.mxu0 0.0
        %2027 = vmatpush2.msra.mxu0 0.0
        %2028 = vmatprep.subr.mxu0 0.0
        %2029 = vmatpush2.msra.mxu0 0.0
        %2030 = vmatprep.subr.mxu0 0.0
        %2031 = vmatpush2.msra.mxu0 0.0
        %2032 = vmatprep.subr.mxu0 0.0
        %2033 = vmatpush2.msra.mxu0 0.0
        %2034 = vmatprep.subr.mxu0 0.0
        %2035 = vmatpush2.msra.mxu0 0.0
        %2036 = vmatprep.mubr.f32.mxu0 0.0
        %v2037 = vand.u32 %v1968, 4294901760
        %v2038 = vsub.f32 %v1968, %v2037
        %v2039 = vand.u32 %v2038, 4294901760
        %v2040 = vsub.f32 %v2038, %v2039
        %v2041 = vand.u32 %v2040, 4294901760
        %2042 = vmatmul.mubr.f32.gmra.mxu0 %v2041
        %v2043 = vpop.f32.mrf.mxu0
        %v2044 = vadd.f32 0.0, %v2043
        %v2045 = vpop.f32.mrf.mxu0
        %2046 = vdwg.mxu0
        %2047 = vmatprep.subr.mxu0 0.0
        %2048 = vmatpush1.msra.mxu0 0.0
        %2049 = vmatprep.subr.mxu0 0.0
        %2050 = vmatpush1.msra.mxu0 0.0
        %2051 = vmatprep.subr.mxu0 0.0
        %2052 = vmatpush1.msra.mxu0 0.0
        %2053 = vmatprep.subr.mxu0 0.0
        %2054 = vmatpush1.msra.mxu0 0.0
        %2055 = vmatprep.subr.mxu0 0.0
        %2056 = vmatpush1.msra.mxu0 0.0
        %2057 = vmatprep.subr.mxu0 0.0
        %2058 = vmatpush1.msra.mxu0 0.0
        %2059 = vmatprep.subr.mxu0 0.0
        %2060 = vmatpush1.msra.mxu0 0.0
        %2061 = vmatprep.subr.mxu0 0.0
        %2062 = vmatpush1.msra.mxu0 0.0
        %2063 = vmatprep.subr.mxu0 0.0
        %2064 = vmatpush1.msra.mxu0 0.0
        %2065 = vmatprep.subr.mxu0 0.0
        %2066 = vmatpush1.msra.mxu0 0.0
        %2067 = vmatprep.subr.mxu0 0.0
        %2068 = vmatpush1.msra.mxu0 0.0
        %2069 = vmatprep.subr.mxu0 0.0
        %2070 = vmatpush1.msra.mxu0 0.0
        %2071 = vmatprep.subr.mxu0 0.0
        %2072 = vmatpush1.msra.mxu0 0.0
        %2073 = vmatprep.subr.mxu0 0.0
        %2074 = vmatpush1.msra.mxu0 0.0
        %2075 = vmatprep.subr.mxu0 0.0
        %v2076 = vand.u32 %v215, 4294901760
        %v2077 = vsub.f32 %v215, %v2076
        %v2078 = vand.u32 %v2077, 4294901760
        %v2079 = vsub.f32 %v2077, %v2078
        %v2080 = vand.u32 %v2079, 4294901760
        %2081 = vmatpush1.msra.mxu0 %v2080
        %2082 = vmatprep.subr.mxu0 0.0
        %v2083 = vand.u32 %v214, 4294901760
        %v2084 = vsub.f32 %v214, %v2083
        %v2085 = vand.u32 %v2084, 4294901760
        %v2086 = vsub.f32 %v2084, %v2085
        %v2087 = vand.u32 %v2086, 4294901760
        %2088 = vmatpush1.msra.mxu0 %v2087
        %2089 = vmatprep.subr.mxu0 0.0
        %2090 = vmatpush2.msra.mxu0 0.0
        %2091 = vmatprep.subr.mxu0 0.0
        %2092 = vmatpush2.msra.mxu0 0.0
        %2093 = vmatprep.subr.mxu0 0.0
        %2094 = vmatpush2.msra.mxu0 0.0
        %2095 = vmatprep.subr.mxu0 0.0
        %2096 = vmatpush2.msra.mxu0 0.0
        %2097 = vmatprep.subr.mxu0 0.0
        %2098 = vmatpush2.msra.mxu0 0.0
        %2099 = vmatprep.subr.mxu0 0.0
        %2100 = vmatpush2.msra.mxu0 0.0
        %2101 = vmatprep.subr.mxu0 0.0
        %2102 = vmatpush2.msra.mxu0 0.0
        %2103 = vmatprep.subr.mxu0 0.0
        %2104 = vmatpush2.msra.mxu0 0.0
        %2105 = vmatprep.subr.mxu0 0.0
        %2106 = vmatpush2.msra.mxu0 0.0
        %2107 = vmatprep.subr.mxu0 0.0
        %2108 = vmatpush2.msra.mxu0 0.0
        %2109 = vmatprep.subr.mxu0 0.0
        %2110 = vmatpush2.msra.mxu0 0.0
        %2111 = vmatprep.subr.mxu0 0.0
        %2112 = vmatpush2.msra.mxu0 0.0
        %2113 = vmatprep.subr.mxu0 0.0
        %2114 = vmatpush2.msra.mxu0 0.0
        %2115 = vmatprep.subr.mxu0 0.0
        %2116 = vmatpush2.msra.mxu0 0.0
        %2117 = vmatprep.subr.mxu0 0.0
        %2118 = vmatpush2.msra.mxu0 0.0
        %2119 = vmatprep.subr.mxu0 0.0
        %2120 = vmatpush2.msra.mxu0 0.0
        %2121 = vmatprep.mubr.f32.mxu0 0.0
        %v2122 = vand.u32 %v1968, 4294901760
        %2123 = vmatmul.mubr.f32.gmra.mxu0 %v2122
        %v2124 = vpop.f32.mrf.mxu0
        %v2125 = vadd.f32 %v2044, %v2124
        %v2126 = vpop.f32.mrf.mxu0
        %2127 = vdwg.mxu0
        %2128 = vmatprep.subr.mxu0 0.0
        %2129 = vmatpush1.msra.mxu0 0.0
        %2130 = vmatprep.subr.mxu0 0.0
        %2131 = vmatpush1.msra.mxu0 0.0
        %2132 = vmatprep.subr.mxu0 0.0
        %2133 = vmatpush1.msra.mxu0 0.0
        %2134 = vmatprep.subr.mxu0 0.0
        %2135 = vmatpush1.msra.mxu0 0.0
        %2136 = vmatprep.subr.mxu0 0.0
        %2137 = vmatpush1.msra.mxu0 0.0
        %2138 = vmatprep.subr.mxu0 0.0
        %2139 = vmatpush1.msra.mxu0 0.0
        %2140 = vmatprep.subr.mxu0 0.0
        %2141 = vmatpush1.msra.mxu0 0.0
        %2142 = vmatprep.subr.mxu0 0.0
        %2143 = vmatpush1.msra.mxu0 0.0
        %2144 = vmatprep.subr.mxu0 0.0
        %2145 = vmatpush1.msra.mxu0 0.0
        %2146 = vmatprep.subr.mxu0 0.0
        %2147 = vmatpush1.msra.mxu0 0.0
        %2148 = vmatprep.subr.mxu0 0.0
        %2149 = vmatpush1.msra.mxu0 0.0
        %2150 = vmatprep.subr.mxu0 0.0
        %2151 = vmatpush1.msra.mxu0 0.0
        %2152 = vmatprep.subr.mxu0 0.0
        %2153 = vmatpush1.msra.mxu0 0.0
        %2154 = vmatprep.subr.mxu0 0.0
        %2155 = vmatpush1.msra.mxu0 0.0
        %2156 = vmatprep.subr.mxu0 0.0
        %v2157 = vand.u32 %v215, 4294901760
        %v2158 = vsub.f32 %v215, %v2157
        %2159 = vmatpush1.msra.mxu0 %v2158
        %2160 = vmatprep.subr.mxu0 0.0
        %v2161 = vand.u32 %v214, 4294901760
        %v2162 = vsub.f32 %v214, %v2161
        %2163 = vmatpush1.msra.mxu0 %v2162
        %2164 = vmatprep.subr.mxu0 0.0
        %2165 = vmatpush2.msra.mxu0 0.0
        %2166 = vmatprep.subr.mxu0 0.0
        %2167 = vmatpush2.msra.mxu0 0.0
        %2168 = vmatprep.subr.mxu0 0.0
        %2169 = vmatpush2.msra.mxu0 0.0
        %2170 = vmatprep.subr.mxu0 0.0
        %2171 = vmatpush2.msra.mxu0 0.0
        %2172 = vmatprep.subr.mxu0 0.0
        %2173 = vmatpush2.msra.mxu0 0.0
        %2174 = vmatprep.subr.mxu0 0.0
        %2175 = vmatpush2.msra.mxu0 0.0
        %2176 = vmatprep.subr.mxu0 0.0
        %2177 = vmatpush2.msra.mxu0 0.0
        %2178 = vmatprep.subr.mxu0 0.0
        %2179 = vmatpush2.msra.mxu0 0.0
        %2180 = vmatprep.subr.mxu0 0.0
        %2181 = vmatpush2.msra.mxu0 0.0
        %2182 = vmatprep.subr.mxu0 0.0
        %2183 = vmatpush2.msra.mxu0 0.0
        %2184 = vmatprep.subr.mxu0 0.0
        %2185 = vmatpush2.msra.mxu0 0.0
        %2186 = vmatprep.subr.mxu0 0.0
        %2187 = vmatpush2.msra.mxu0 0.0
        %2188 = vmatprep.subr.mxu0 0.0
        %2189 = vmatpush2.msra.mxu0 0.0
        %2190 = vmatprep.subr.mxu0 0.0
        %2191 = vmatpush2.msra.mxu0 0.0
        %2192 = vmatprep.subr.mxu0 0.0
        %2193 = vmatpush2.msra.mxu0 0.0
        %2194 = vmatprep.subr.mxu0 0.0
        %2195 = vmatpush2.msra.mxu0 0.0
        %2196 = vmatprep.mubr.f32.mxu0 0.0
        %v2197 = vand.u32 %v1968, 4294901760
        %v2198 = vsub.f32 %v1968, %v2197
        %2199 = vmatmul.mubr.f32.gmra.mxu0 %v2198
        %v2200 = vpop.f32.mrf.mxu0
        %v2201 = vadd.f32 %v2125, %v2200
        %v2202 = vpop.f32.mrf.mxu0
        %2203 = vdwg.mxu0
        %2204 = vmatprep.subr.mxu0 0.0
        %2205 = vmatpush1.msra.mxu0 0.0
        %2206 = vmatprep.subr.mxu0 0.0
        %2207 = vmatpush1.msra.mxu0 0.0
        %2208 = vmatprep.subr.mxu0 0.0
        %2209 = vmatpush1.msra.mxu0 0.0
        %2210 = vmatprep.subr.mxu0 0.0
        %2211 = vmatpush1.msra.mxu0 0.0
        %2212 = vmatprep.subr.mxu0 0.0
        %2213 = vmatpush1.msra.mxu0 0.0
        %2214 = vmatprep.subr.mxu0 0.0
        %2215 = vmatpush1.msra.mxu0 0.0
        %2216 = vmatprep.subr.mxu0 0.0
        %2217 = vmatpush1.msra.mxu0 0.0
        %2218 = vmatprep.subr.mxu0 0.0
        %2219 = vmatpush1.msra.mxu0 0.0
        %2220 = vmatprep.subr.mxu0 0.0
        %2221 = vmatpush1.msra.mxu0 0.0
        %2222 = vmatprep.subr.mxu0 0.0
        %2223 = vmatpush1.msra.mxu0 0.0
        %2224 = vmatprep.subr.mxu0 0.0
        %2225 = vmatpush1.msra.mxu0 0.0
        %2226 = vmatprep.subr.mxu0 0.0
        %2227 = vmatpush1.msra.mxu0 0.0
        %2228 = vmatprep.subr.mxu0 0.0
        %2229 = vmatpush1.msra.mxu0 0.0
        %2230 = vmatprep.subr.mxu0 0.0
        %2231 = vmatpush1.msra.mxu0 0.0
        %2232 = vmatprep.subr.mxu0 0.0
        %v2233 = vand.u32 %v215, 4294901760
        %2234 = vmatpush1.msra.mxu0 %v2233
        %2235 = vmatprep.subr.mxu0 0.0
        %v2236 = vand.u32 %v214, 4294901760
        %2237 = vmatpush1.msra.mxu0 %v2236
        %2238 = vmatprep.subr.mxu0 0.0
        %2239 = vmatpush2.msra.mxu0 0.0
        %2240 = vmatprep.subr.mxu0 0.0
        %2241 = vmatpush2.msra.mxu0 0.0
        %2242 = vmatprep.subr.mxu0 0.0
        %2243 = vmatpush2.msra.mxu0 0.0
        %2244 = vmatprep.subr.mxu0 0.0
        %2245 = vmatpush2.msra.mxu0 0.0
        %2246 = vmatprep.subr.mxu0 0.0
        %2247 = vmatpush2.msra.mxu0 0.0
        %2248 = vmatprep.subr.mxu0 0.0
        %2249 = vmatpush2.msra.mxu0 0.0
        %2250 = vmatprep.subr.mxu0 0.0
        %2251 = vmatpush2.msra.mxu0 0.0
        %2252 = vmatprep.subr.mxu0 0.0
        %2253 = vmatpush2.msra.mxu0 0.0
        %2254 = vmatprep.subr.mxu0 0.0
        %2255 = vmatpush2.msra.mxu0 0.0
        %2256 = vmatprep.subr.mxu0 0.0
        %2257 = vmatpush2.msra.mxu0 0.0
        %2258 = vmatprep.subr.mxu0 0.0
        %2259 = vmatpush2.msra.mxu0 0.0
        %2260 = vmatprep.subr.mxu0 0.0
        %2261 = vmatpush2.msra.mxu0 0.0
        %2262 = vmatprep.subr.mxu0 0.0
        %2263 = vmatpush2.msra.mxu0 0.0
        %2264 = vmatprep.subr.mxu0 0.0
        %2265 = vmatpush2.msra.mxu0 0.0
        %2266 = vmatprep.subr.mxu0 0.0
        %2267 = vmatpush2.msra.mxu0 0.0
        %2268 = vmatprep.subr.mxu0 0.0
        %2269 = vmatpush2.msra.mxu0 0.0
        %2270 = vmatprep.mubr.f32.mxu0 0.0
        %v2271 = vand.u32 %v1968, 4294901760
        %v2272 = vsub.f32 %v1968, %v2271
        %v2273 = vand.u32 %v2272, 4294901760
        %2274 = vmatmul.mubr.f32.gmra.mxu0 %v2273
        %v2275 = vpop.f32.mrf.mxu0
        %v2276 = vadd.f32 %v2201, %v2275
        %v2277 = vpop.f32.mrf.mxu0
        %2278 = vdwg.mxu0
        %2279 = vmatprep.subr.mxu0 0.0
        %2280 = vmatpush1.msra.mxu0 0.0
        %2281 = vmatprep.subr.mxu0 0.0
        %2282 = vmatpush1.msra.mxu0 0.0
        %2283 = vmatprep.subr.mxu0 0.0
        %2284 = vmatpush1.msra.mxu0 0.0
        %2285 = vmatprep.subr.mxu0 0.0
        %2286 = vmatpush1.msra.mxu0 0.0
        %2287 = vmatprep.subr.mxu0 0.0
        %2288 = vmatpush1.msra.mxu0 0.0
        %2289 = vmatprep.subr.mxu0 0.0
        %2290 = vmatpush1.msra.mxu0 0.0
        %2291 = vmatprep.subr.mxu0 0.0
        %2292 = vmatpush1.msra.mxu0 0.0
        %2293 = vmatprep.subr.mxu0 0.0
        %2294 = vmatpush1.msra.mxu0 0.0
        %2295 = vmatprep.subr.mxu0 0.0
        %2296 = vmatpush1.msra.mxu0 0.0
        %2297 = vmatprep.subr.mxu0 0.0
        %2298 = vmatpush1.msra.mxu0 0.0
        %2299 = vmatprep.subr.mxu0 0.0
        %2300 = vmatpush1.msra.mxu0 0.0
        %2301 = vmatprep.subr.mxu0 0.0
        %2302 = vmatpush1.msra.mxu0 0.0
        %2303 = vmatprep.subr.mxu0 0.0
        %2304 = vmatpush1.msra.mxu0 0.0
        %2305 = vmatprep.subr.mxu0 0.0
        %2306 = vmatpush1.msra.mxu0 0.0
        %2307 = vmatprep.subr.mxu0 0.0
        %v2308 = vand.u32 %v215, 4294901760
        %v2309 = vsub.f32 %v215, %v2308
        %v2310 = vand.u32 %v2309, 4294901760
        %2311 = vmatpush1.msra.mxu0 %v2310
        %2312 = vmatprep.subr.mxu0 0.0
        %v2313 = vand.u32 %v214, 4294901760
        %v2314 = vsub.f32 %v214, %v2313
        %v2315 = vand.u32 %v2314, 4294901760
        %2316 = vmatpush1.msra.mxu0 %v2315
        %2317 = vmatprep.subr.mxu0 0.0
        %2318 = vmatpush2.msra.mxu0 0.0
        %2319 = vmatprep.subr.mxu0 0.0
        %2320 = vmatpush2.msra.mxu0 0.0
        %2321 = vmatprep.subr.mxu0 0.0
        %2322 = vmatpush2.msra.mxu0 0.0
        %2323 = vmatprep.subr.mxu0 0.0
        %2324 = vmatpush2.msra.mxu0 0.0
        %2325 = vmatprep.subr.mxu0 0.0
        %2326 = vmatpush2.msra.mxu0 0.0
        %2327 = vmatprep.subr.mxu0 0.0
        %2328 = vmatpush2.msra.mxu0 0.0
        %2329 = vmatprep.subr.mxu0 0.0
        %2330 = vmatpush2.msra.mxu0 0.0
        %2331 = vmatprep.subr.mxu0 0.0
        %2332 = vmatpush2.msra.mxu0 0.0
        %2333 = vmatprep.subr.mxu0 0.0
        %2334 = vmatpush2.msra.mxu0 0.0
        %2335 = vmatprep.subr.mxu0 0.0
        %2336 = vmatpush2.msra.mxu0 0.0
        %2337 = vmatprep.subr.mxu0 0.0
        %2338 = vmatpush2.msra.mxu0 0.0
        %2339 = vmatprep.subr.mxu0 0.0
        %2340 = vmatpush2.msra.mxu0 0.0
        %2341 = vmatprep.subr.mxu0 0.0
        %2342 = vmatpush2.msra.mxu0 0.0
        %2343 = vmatprep.subr.mxu0 0.0
        %2344 = vmatpush2.msra.mxu0 0.0
        %2345 = vmatprep.subr.mxu0 0.0
        %2346 = vmatpush2.msra.mxu0 0.0
        %2347 = vmatprep.subr.mxu0 0.0
        %2348 = vmatpush2.msra.mxu0 0.0
        %2349 = vmatprep.mubr.f32.mxu0 0.0
        %v2350 = vand.u32 %v1968, 4294901760
        %2351 = vmatmul.mubr.f32.gmra.mxu0 %v2350
        %v2352 = vpop.f32.mrf.mxu0
        %v2353 = vadd.f32 %v2276, %v2352
        %v2354 = vpop.f32.mrf.mxu0
        %2355 = vdwg.mxu0
        %2356 = vmatprep.subr.mxu0 0.0
        %2357 = vmatpush1.msra.mxu0 0.0
        %2358 = vmatprep.subr.mxu0 0.0
        %2359 = vmatpush1.msra.mxu0 0.0
        %2360 = vmatprep.subr.mxu0 0.0
        %2361 = vmatpush1.msra.mxu0 0.0
        %2362 = vmatprep.subr.mxu0 0.0
        %2363 = vmatpush1.msra.mxu0 0.0
        %2364 = vmatprep.subr.mxu0 0.0
        %2365 = vmatpush1.msra.mxu0 0.0
        %2366 = vmatprep.subr.mxu0 0.0
        %2367 = vmatpush1.msra.mxu0 0.0
        %2368 = vmatprep.subr.mxu0 0.0
        %2369 = vmatpush1.msra.mxu0 0.0
        %2370 = vmatprep.subr.mxu0 0.0
        %2371 = vmatpush1.msra.mxu0 0.0
        %2372 = vmatprep.subr.mxu0 0.0
        %2373 = vmatpush1.msra.mxu0 0.0
        %2374 = vmatprep.subr.mxu0 0.0
        %2375 = vmatpush1.msra.mxu0 0.0
        %2376 = vmatprep.subr.mxu0 0.0
        %2377 = vmatpush1.msra.mxu0 0.0
        %2378 = vmatprep.subr.mxu0 0.0
        %2379 = vmatpush1.msra.mxu0 0.0
        %2380 = vmatprep.subr.mxu0 0.0
        %2381 = vmatpush1.msra.mxu0 0.0
        %2382 = vmatprep.subr.mxu0 0.0
        %2383 = vmatpush1.msra.mxu0 0.0
        %2384 = vmatprep.subr.mxu0 0.0
        %v2385 = vand.u32 %v215, 4294901760
        %2386 = vmatpush1.msra.mxu0 %v2385
        %2387 = vmatprep.subr.mxu0 0.0
        %v2388 = vand.u32 %v214, 4294901760
        %2389 = vmatpush1.msra.mxu0 %v2388
        %2390 = vmatprep.subr.mxu0 0.0
        %2391 = vmatpush2.msra.mxu0 0.0
        %2392 = vmatprep.subr.mxu0 0.0
        %2393 = vmatpush2.msra.mxu0 0.0
        %2394 = vmatprep.subr.mxu0 0.0
        %2395 = vmatpush2.msra.mxu0 0.0
        %2396 = vmatprep.subr.mxu0 0.0
        %2397 = vmatpush2.msra.mxu0 0.0
        %2398 = vmatprep.subr.mxu0 0.0
        %2399 = vmatpush2.msra.mxu0 0.0
        %2400 = vmatprep.subr.mxu0 0.0
        %2401 = vmatpush2.msra.mxu0 0.0
        %2402 = vmatprep.subr.mxu0 0.0
        %2403 = vmatpush2.msra.mxu0 0.0
        %2404 = vmatprep.subr.mxu0 0.0
        %2405 = vmatpush2.msra.mxu0 0.0
        %2406 = vmatprep.subr.mxu0 0.0
        %2407 = vmatpush2.msra.mxu0 0.0
        %2408 = vmatprep.subr.mxu0 0.0
        %2409 = vmatpush2.msra.mxu0 0.0
        %2410 = vmatprep.subr.mxu0 0.0
        %2411 = vmatpush2.msra.mxu0 0.0
        %2412 = vmatprep.subr.mxu0 0.0
        %2413 = vmatpush2.msra.mxu0 0.0
        %2414 = vmatprep.subr.mxu0 0.0
        %2415 = vmatpush2.msra.mxu0 0.0
        %2416 = vmatprep.subr.mxu0 0.0
        %2417 = vmatpush2.msra.mxu0 0.0
        %2418 = vmatprep.subr.mxu0 0.0
        %2419 = vmatpush2.msra.mxu0 0.0
        %2420 = vmatprep.subr.mxu0 0.0
        %2421 = vmatpush2.msra.mxu0 0.0
        %2422 = vmatprep.mubr.f32.mxu0 0.0
        %v2423 = vand.u32 %v1968, 4294901760
        %2424 = vmatmul.mubr.f32.gmra.mxu0 %v2423
        %v2425 = vpop.f32.mrf.mxu0
        %v2426 = vadd.f32 %v2353, %v2425
        %v2427 = vpop.f32.mrf.mxu0
        %2428 = vdwg.mxu0
        %2429 = vmatprep.subr.mxu0 0.0
        %2430 = vmatpush1.msra.mxu0 0.0
        %2431 = vmatprep.subr.mxu0 0.0
        %2432 = vmatpush1.msra.mxu0 0.0
        %2433 = vmatprep.subr.mxu0 0.0
        %2434 = vmatpush1.msra.mxu0 0.0
        %2435 = vmatprep.subr.mxu0 0.0
        %2436 = vmatpush1.msra.mxu0 0.0
        %2437 = vmatprep.subr.mxu0 0.0
        %2438 = vmatpush1.msra.mxu0 0.0
        %2439 = vmatprep.subr.mxu0 0.0
        %2440 = vmatpush1.msra.mxu0 0.0
        %2441 = vmatprep.subr.mxu0 0.0
        %2442 = vmatpush1.msra.mxu0 0.0
        %2443 = vmatprep.subr.mxu0 0.0
        %2444 = vmatpush1.msra.mxu0 0.0
        %2445 = vmatprep.subr.mxu0 0.0
        %2446 = vmatpush1.msra.mxu0 0.0
        %2447 = vmatprep.subr.mxu0 0.0
        %2448 = vmatpush1.msra.mxu0 0.0
        %2449 = vmatprep.subr.mxu0 0.0
        %2450 = vmatpush1.msra.mxu0 0.0
        %2451 = vmatprep.subr.mxu0 0.0
        %2452 = vmatpush1.msra.mxu0 0.0
        %2453 = vmatprep.subr.mxu0 0.0
        %2454 = vmatpush1.msra.mxu0 0.0
        %2455 = vmatprep.subr.mxu0 0.0
        %2456 = vmatpush1.msra.mxu0 0.0
        %2457 = vmatprep.subr.mxu0 0.0
        %v2458 = vand.u32 %v217, 4294901760
        %2459 = vmatpush1.msra.mxu0 %v2458
        %2460 = vmatprep.subr.mxu0 0.0
        %v2461 = vand.u32 %v216, 4294901760
        %2462 = vmatpush1.msra.mxu0 %v2461
        %2463 = vmatprep.subr.mxu0 0.0
        %2464 = vmatpush2.msra.mxu0 0.0
        %2465 = vmatprep.subr.mxu0 0.0
        %2466 = vmatpush2.msra.mxu0 0.0
        %2467 = vmatprep.subr.mxu0 0.0
        %2468 = vmatpush2.msra.mxu0 0.0
        %2469 = vmatprep.subr.mxu0 0.0
        %2470 = vmatpush2.msra.mxu0 0.0
        %2471 = vmatprep.subr.mxu0 0.0
        %2472 = vmatpush2.msra.mxu0 0.0
        %2473 = vmatprep.subr.mxu0 0.0
        %2474 = vmatpush2.msra.mxu0 0.0
        %2475 = vmatprep.subr.mxu0 0.0
        %2476 = vmatpush2.msra.mxu0 0.0
        %2477 = vmatprep.subr.mxu0 0.0
        %2478 = vmatpush2.msra.mxu0 0.0
        %2479 = vmatprep.subr.mxu0 0.0
        %2480 = vmatpush2.msra.mxu0 0.0
        %2481 = vmatprep.subr.mxu0 0.0
        %2482 = vmatpush2.msra.mxu0 0.0
        %2483 = vmatprep.subr.mxu0 0.0
        %2484 = vmatpush2.msra.mxu0 0.0
        %2485 = vmatprep.subr.mxu0 0.0
        %2486 = vmatpush2.msra.mxu0 0.0
        %2487 = vmatprep.subr.mxu0 0.0
        %2488 = vmatpush2.msra.mxu0 0.0
        %2489 = vmatprep.subr.mxu0 0.0
        %2490 = vmatpush2.msra.mxu0 0.0
        %2491 = vmatprep.subr.mxu0 0.0
        %2492 = vmatpush2.msra.mxu0 0.0
        %2493 = vmatprep.subr.mxu0 0.0
        %2494 = vmatpush2.msra.mxu0 0.0
        %2495 = vmatprep.mubr.f32.mxu0 0.0
        %v2496 = vand.u32 %v1322, 4294901760
        %v2497 = vsub.f32 %v1322, %v2496
        %v2498 = vand.u32 %v2497, 4294901760
        %v2499 = vsub.f32 %v2497, %v2498
        %v2500 = vand.u32 %v2499, 4294901760
        %2501 = vmatmul.mubr.f32.gmra.mxu0 %v2500
        %v2502 = vpop.f32.mrf.mxu0
        %v2503 = vadd.f32 0.0, %v2502
        %v2504 = vpop.f32.mrf.mxu0
        %2505 = vmatprep.mubr.f32.mxu0 0.0
        %v2506 = vand.u32 %v1325, 4294901760
        %v2507 = vsub.f32 %v1325, %v2506
        %v2508 = vand.u32 %v2507, 4294901760
        %v2509 = vsub.f32 %v2507, %v2508
        %v2510 = vand.u32 %v2509, 4294901760
        %2511 = vmatmul.mubr.f32.gmra.mxu0 %v2510
        %v2512 = vpop.f32.mrf.mxu0
        %v2513 = vadd.f32 0.0, %v2512
        %v2514 = vpop.f32.mrf.mxu0
        %2515 = vmatprep.mubr.f32.mxu0 0.0
        %v2516 = vand.u32 %v1328, 4294901760
        %v2517 = vsub.f32 %v1328, %v2516
        %v2518 = vand.u32 %v2517, 4294901760
        %v2519 = vsub.f32 %v2517, %v2518
        %v2520 = vand.u32 %v2519, 4294901760
        %2521 = vmatmul.mubr.f32.gmra.mxu0 %v2520
        %v2522 = vpop.f32.mrf.mxu0
        %v2523 = vadd.f32 0.0, %v2522
        %v2524 = vpop.f32.mrf.mxu0
        %2525 = vmatprep.mubr.f32.mxu0 0.0
        %v2526 = vand.u32 %v1331, 4294901760
        %v2527 = vsub.f32 %v1331, %v2526
        %v2528 = vand.u32 %v2527, 4294901760
        %v2529 = vsub.f32 %v2527, %v2528
        %v2530 = vand.u32 %v2529, 4294901760
        %2531 = vmatmul.mubr.f32.gmra.mxu0 %v2530
        %v2532 = vpop.f32.mrf.mxu0
        %v2533 = vadd.f32 0.0, %v2532
        %v2534 = vpop.f32.mrf.mxu0
        %2535 = vmatprep.mubr.f32.mxu0 0.0
        %v2536 = vand.u32 %v1334, 4294901760
        %v2537 = vsub.f32 %v1334, %v2536
        %v2538 = vand.u32 %v2537, 4294901760
        %v2539 = vsub.f32 %v2537, %v2538
        %v2540 = vand.u32 %v2539, 4294901760
        %2541 = vmatmul.mubr.f32.gmra.mxu0 %v2540
        %v2542 = vpop.f32.mrf.mxu0
        %v2543 = vadd.f32 0.0, %v2542
        %v2544 = vpop.f32.mrf.mxu0
        %2545 = vdwg.mxu0
        %2546 = vmatprep.subr.mxu0 0.0
        %2547 = vmatpush1.msra.mxu0 0.0
        %2548 = vmatprep.subr.mxu0 0.0
        %2549 = vmatpush1.msra.mxu0 0.0
        %2550 = vmatprep.subr.mxu0 0.0
        %2551 = vmatpush1.msra.mxu0 0.0
        %2552 = vmatprep.subr.mxu0 0.0
        %2553 = vmatpush1.msra.mxu0 0.0
        %2554 = vmatprep.subr.mxu0 0.0
        %2555 = vmatpush1.msra.mxu0 0.0
        %2556 = vmatprep.subr.mxu0 0.0
        %2557 = vmatpush1.msra.mxu0 0.0
        %2558 = vmatprep.subr.mxu0 0.0
        %2559 = vmatpush1.msra.mxu0 0.0
        %2560 = vmatprep.subr.mxu0 0.0
        %2561 = vmatpush1.msra.mxu0 0.0
        %2562 = vmatprep.subr.mxu0 0.0
        %2563 = vmatpush1.msra.mxu0 0.0
        %2564 = vmatprep.subr.mxu0 0.0
        %2565 = vmatpush1.msra.mxu0 0.0
        %2566 = vmatprep.subr.mxu0 0.0
        %2567 = vmatpush1.msra.mxu0 0.0
        %2568 = vmatprep.subr.mxu0 0.0
        %2569 = vmatpush1.msra.mxu0 0.0
        %2570 = vmatprep.subr.mxu0 0.0
        %2571 = vmatpush1.msra.mxu0 0.0
        %2572 = vmatprep.subr.mxu0 0.0
        %2573 = vmatpush1.msra.mxu0 0.0
        %2574 = vmatprep.subr.mxu0 0.0
        %v2575 = vand.u32 %v217, 4294901760
        %v2576 = vsub.f32 %v217, %v2575
        %v2577 = vand.u32 %v2576, 4294901760
        %v2578 = vsub.f32 %v2576, %v2577
        %v2579 = vand.u32 %v2578, 4294901760
        %2580 = vmatpush1.msra.mxu0 %v2579
        %2581 = vmatprep.subr.mxu0 0.0
        %v2582 = vand.u32 %v216, 4294901760
        %v2583 = vsub.f32 %v216, %v2582
        %v2584 = vand.u32 %v2583, 4294901760
        %v2585 = vsub.f32 %v2583, %v2584
        %v2586 = vand.u32 %v2585, 4294901760
        %2587 = vmatpush1.msra.mxu0 %v2586
        %2588 = vmatprep.subr.mxu0 0.0
        %2589 = vmatpush2.msra.mxu0 0.0
        %2590 = vmatprep.subr.mxu0 0.0
        %2591 = vmatpush2.msra.mxu0 0.0
        %2592 = vmatprep.subr.mxu0 0.0
        %2593 = vmatpush2.msra.mxu0 0.0
        %2594 = vmatprep.subr.mxu0 0.0
        %2595 = vmatpush2.msra.mxu0 0.0
        %2596 = vmatprep.subr.mxu0 0.0
        %2597 = vmatpush2.msra.mxu0 0.0
        %2598 = vmatprep.subr.mxu0 0.0
        %2599 = vmatpush2.msra.mxu0 0.0
        %2600 = vmatprep.subr.mxu0 0.0
        %2601 = vmatpush2.msra.mxu0 0.0
        %2602 = vmatprep.subr.mxu0 0.0
        %2603 = vmatpush2.msra.mxu0 0.0
        %2604 = vmatprep.subr.mxu0 0.0
        %2605 = vmatpush2.msra.mxu0 0.0
        %2606 = vmatprep.subr.mxu0 0.0
        %2607 = vmatpush2.msra.mxu0 0.0
        %2608 = vmatprep.subr.mxu0 0.0
        %2609 = vmatpush2.msra.mxu0 0.0
        %2610 = vmatprep.subr.mxu0 0.0
        %2611 = vmatpush2.msra.mxu0 0.0
        %2612 = vmatprep.subr.mxu0 0.0
        %2613 = vmatpush2.msra.mxu0 0.0
        %2614 = vmatprep.subr.mxu0 0.0
        %2615 = vmatpush2.msra.mxu0 0.0
        %2616 = vmatprep.subr.mxu0 0.0
        %2617 = vmatpush2.msra.mxu0 0.0
        %2618 = vmatprep.subr.mxu0 0.0
        %2619 = vmatpush2.msra.mxu0 0.0
        %2620 = vmatprep.mubr.f32.mxu0 0.0
        %v2621 = vand.u32 %v1322, 4294901760
        %2622 = vmatmul.mubr.f32.gmra.mxu0 %v2621
        %v2623 = vpop.f32.mrf.mxu0
        %v2624 = vadd.f32 %v2503, %v2623
        %v2625 = vpop.f32.mrf.mxu0
        %2626 = vmatprep.mubr.f32.mxu0 0.0
        %v2627 = vand.u32 %v1325, 4294901760
        %2628 = vmatmul.mubr.f32.gmra.mxu0 %v2627
        %v2629 = vpop.f32.mrf.mxu0
        %v2630 = vadd.f32 %v2513, %v2629
        %v2631 = vpop.f32.mrf.mxu0
        %2632 = vmatprep.mubr.f32.mxu0 0.0
        %v2633 = vand.u32 %v1328, 4294901760
        %2634 = vmatmul.mubr.f32.gmra.mxu0 %v2633
        %v2635 = vpop.f32.mrf.mxu0
        %v2636 = vadd.f32 %v2523, %v2635
        %v2637 = vpop.f32.mrf.mxu0
        %2638 = vmatprep.mubr.f32.mxu0 0.0
        %v2639 = vand.u32 %v1331, 4294901760
        %2640 = vmatmul.mubr.f32.gmra.mxu0 %v2639
        %v2641 = vpop.f32.mrf.mxu0
        %v2642 = vadd.f32 %v2533, %v2641
        %v2643 = vpop.f32.mrf.mxu0
        %2644 = vmatprep.mubr.f32.mxu0 0.0
        %v2645 = vand.u32 %v1334, 4294901760
        %2646 = vmatmul.mubr.f32.gmra.mxu0 %v2645
        %v2647 = vpop.f32.mrf.mxu0
        %v2648 = vadd.f32 %v2543, %v2647
        %v2649 = vpop.f32.mrf.mxu0
        %2650 = vdwg.mxu0
        %2651 = vmatprep.subr.mxu0 0.0
        %2652 = vmatpush1.msra.mxu0 0.0
        %2653 = vmatprep.subr.mxu0 0.0
        %2654 = vmatpush1.msra.mxu0 0.0
        %2655 = vmatprep.subr.mxu0 0.0
        %2656 = vmatpush1.msra.mxu0 0.0
        %2657 = vmatprep.subr.mxu0 0.0
        %2658 = vmatpush1.msra.mxu0 0.0
        %2659 = vmatprep.subr.mxu0 0.0
        %2660 = vmatpush1.msra.mxu0 0.0
        %2661 = vmatprep.subr.mxu0 0.0
        %2662 = vmatpush1.msra.mxu0 0.0
        %2663 = vmatprep.subr.mxu0 0.0
        %2664 = vmatpush1.msra.mxu0 0.0
        %2665 = vmatprep.subr.mxu0 0.0
        %2666 = vmatpush1.msra.mxu0 0.0
        %2667 = vmatprep.subr.mxu0 0.0
        %2668 = vmatpush1.msra.mxu0 0.0
        %2669 = vmatprep.subr.mxu0 0.0
        %2670 = vmatpush1.msra.mxu0 0.0
        %2671 = vmatprep.subr.mxu0 0.0
        %2672 = vmatpush1.msra.mxu0 0.0
        %2673 = vmatprep.subr.mxu0 0.0
        %2674 = vmatpush1.msra.mxu0 0.0
        %2675 = vmatprep.subr.mxu0 0.0
        %2676 = vmatpush1.msra.mxu0 0.0
        %2677 = vmatprep.subr.mxu0 0.0
        %2678 = vmatpush1.msra.mxu0 0.0
        %2679 = vmatprep.subr.mxu0 0.0
        %v2680 = vand.u32 %v217, 4294901760
        %v2681 = vsub.f32 %v217, %v2680
        %2682 = vmatpush1.msra.mxu0 %v2681
        %2683 = vmatprep.subr.mxu0 0.0
        %v2684 = vand.u32 %v216, 4294901760
        %v2685 = vsub.f32 %v216, %v2684
        %2686 = vmatpush1.msra.mxu0 %v2685
        %2687 = vmatprep.subr.mxu0 0.0
        %2688 = vmatpush2.msra.mxu0 0.0
        %2689 = vmatprep.subr.mxu0 0.0
        %2690 = vmatpush2.msra.mxu0 0.0
        %2691 = vmatprep.subr.mxu0 0.0
        %2692 = vmatpush2.msra.mxu0 0.0
        %2693 = vmatprep.subr.mxu0 0.0
        %2694 = vmatpush2.msra.mxu0 0.0
        %2695 = vmatprep.subr.mxu0 0.0
        %2696 = vmatpush2.msra.mxu0 0.0
        %2697 = vmatprep.subr.mxu0 0.0
        %2698 = vmatpush2.msra.mxu0 0.0
        %2699 = vmatprep.subr.mxu0 0.0
        %2700 = vmatpush2.msra.mxu0 0.0
        %2701 = vmatprep.subr.mxu0 0.0
        %2702 = vmatpush2.msra.mxu0 0.0
        %2703 = vmatprep.subr.mxu0 0.0
        %2704 = vmatpush2.msra.mxu0 0.0
        %2705 = vmatprep.subr.mxu0 0.0
        %2706 = vmatpush2.msra.mxu0 0.0
        %2707 = vmatprep.subr.mxu0 0.0
        %2708 = vmatpush2.msra.mxu0 0.0
        %2709 = vmatprep.subr.mxu0 0.0
        %2710 = vmatpush2.msra.mxu0 0.0
        %2711 = vmatprep.subr.mxu0 0.0
        %2712 = vmatpush2.msra.mxu0 0.0
        %2713 = vmatprep.subr.mxu0 0.0
        %2714 = vmatpush2.msra.mxu0 0.0
        %2715 = vmatprep.subr.mxu0 0.0
        %2716 = vmatpush2.msra.mxu0 0.0
        %2717 = vmatprep.subr.mxu0 0.0
        %2718 = vmatpush2.msra.mxu0 0.0
        %2719 = vmatprep.mubr.f32.mxu0 0.0
        %v2720 = vand.u32 %v1322, 4294901760
        %v2721 = vsub.f32 %v1322, %v2720
        %2722 = vmatmul.mubr.f32.gmra.mxu0 %v2721
        %v2723 = vpop.f32.mrf.mxu0
        %v2724 = vadd.f32 %v2624, %v2723
        %v2725 = vpop.f32.mrf.mxu0
        %2726 = vmatprep.mubr.f32.mxu0 0.0
        %v2727 = vand.u32 %v1325, 4294901760
        %v2728 = vsub.f32 %v1325, %v2727
        %2729 = vmatmul.mubr.f32.gmra.mxu0 %v2728
        %v2730 = vpop.f32.mrf.mxu0
        %v2731 = vadd.f32 %v2630, %v2730
        %v2732 = vpop.f32.mrf.mxu0
        %2733 = vmatprep.mubr.f32.mxu0 0.0
        %v2734 = vand.u32 %v1328, 4294901760
        %v2735 = vsub.f32 %v1328, %v2734
        %2736 = vmatmul.mubr.f32.gmra.mxu0 %v2735
        %v2737 = vpop.f32.mrf.mxu0
        %v2738 = vadd.f32 %v2636, %v2737
        %v2739 = vpop.f32.mrf.mxu0
        %2740 = vmatprep.mubr.f32.mxu0 0.0
        %v2741 = vand.u32 %v1331, 4294901760
        %v2742 = vsub.f32 %v1331, %v2741
        %2743 = vmatmul.mubr.f32.gmra.mxu0 %v2742
        %v2744 = vpop.f32.mrf.mxu0
        %v2745 = vadd.f32 %v2642, %v2744
        %v2746 = vpop.f32.mrf.mxu0
        %2747 = vmatprep.mubr.f32.mxu0 0.0
        %v2748 = vand.u32 %v1334, 4294901760
        %v2749 = vsub.f32 %v1334, %v2748
        %2750 = vmatmul.mubr.f32.gmra.mxu0 %v2749
        %v2751 = vpop.f32.mrf.mxu0
        %v2752 = vadd.f32 %v2648, %v2751
        %v2753 = vpop.f32.mrf.mxu0
        %2754 = vdwg.mxu0
        %2755 = vmatprep.subr.mxu0 0.0
        %2756 = vmatpush1.msra.mxu0 0.0
        %2757 = vmatprep.subr.mxu0 0.0
        %2758 = vmatpush1.msra.mxu0 0.0
        %2759 = vmatprep.subr.mxu0 0.0
        %2760 = vmatpush1.msra.mxu0 0.0
        %2761 = vmatprep.subr.mxu0 0.0
        %2762 = vmatpush1.msra.mxu0 0.0
        %2763 = vmatprep.subr.mxu0 0.0
        %2764 = vmatpush1.msra.mxu0 0.0
        %2765 = vmatprep.subr.mxu0 0.0
        %2766 = vmatpush1.msra.mxu0 0.0
        %2767 = vmatprep.subr.mxu0 0.0
        %2768 = vmatpush1.msra.mxu0 0.0
        %2769 = vmatprep.subr.mxu0 0.0
        %2770 = vmatpush1.msra.mxu0 0.0
        %2771 = vmatprep.subr.mxu0 0.0
        %2772 = vmatpush1.msra.mxu0 0.0
        %2773 = vmatprep.subr.mxu0 0.0
        %2774 = vmatpush1.msra.mxu0 0.0
        %2775 = vmatprep.subr.mxu0 0.0
        %2776 = vmatpush1.msra.mxu0 0.0
        %2777 = vmatprep.subr.mxu0 0.0
        %2778 = vmatpush1.msra.mxu0 0.0
        %2779 = vmatprep.subr.mxu0 0.0
        %2780 = vmatpush1.msra.mxu0 0.0
        %2781 = vmatprep.subr.mxu0 0.0
        %2782 = vmatpush1.msra.mxu0 0.0
        %2783 = vmatprep.subr.mxu0 0.0
        %v2784 = vand.u32 %v217, 4294901760
        %2785 = vmatpush1.msra.mxu0 %v2784
        %2786 = vmatprep.subr.mxu0 0.0
        %v2787 = vand.u32 %v216, 4294901760
        %2788 = vmatpush1.msra.mxu0 %v2787
        %2789 = vmatprep.subr.mxu0 0.0
        %2790 = vmatpush2.msra.mxu0 0.0
        %2791 = vmatprep.subr.mxu0 0.0
        %2792 = vmatpush2.msra.mxu0 0.0
        %2793 = vmatprep.subr.mxu0 0.0
        %2794 = vmatpush2.msra.mxu0 0.0
        %2795 = vmatprep.subr.mxu0 0.0
        %2796 = vmatpush2.msra.mxu0 0.0
        %2797 = vmatprep.subr.mxu0 0.0
        %2798 = vmatpush2.msra.mxu0 0.0
        %2799 = vmatprep.subr.mxu0 0.0
        %2800 = vmatpush2.msra.mxu0 0.0
        %2801 = vmatprep.subr.mxu0 0.0
        %2802 = vmatpush2.msra.mxu0 0.0
        %2803 = vmatprep.subr.mxu0 0.0
        %2804 = vmatpush2.msra.mxu0 0.0
        %2805 = vmatprep.subr.mxu0 0.0
        %2806 = vmatpush2.msra.mxu0 0.0
        %2807 = vmatprep.subr.mxu0 0.0
        %2808 = vmatpush2.msra.mxu0 0.0
        %2809 = vmatprep.subr.mxu0 0.0
        %2810 = vmatpush2.msra.mxu0 0.0
        %2811 = vmatprep.subr.mxu0 0.0
        %2812 = vmatpush2.msra.mxu0 0.0
        %2813 = vmatprep.subr.mxu0 0.0
        %2814 = vmatpush2.msra.mxu0 0.0
        %2815 = vmatprep.subr.mxu0 0.0
        %2816 = vmatpush2.msra.mxu0 0.0
        %2817 = vmatprep.subr.mxu0 0.0
        %2818 = vmatpush2.msra.mxu0 0.0
        %2819 = vmatprep.subr.mxu0 0.0
        %2820 = vmatpush2.msra.mxu0 0.0
        %2821 = vmatprep.mubr.f32.mxu0 0.0
        %v2822 = vand.u32 %v1322, 4294901760
        %v2823 = vsub.f32 %v1322, %v2822
        %v2824 = vand.u32 %v2823, 4294901760
        %2825 = vmatmul.mubr.f32.gmra.mxu0 %v2824
        %v2826 = vpop.f32.mrf.mxu0
        %v2827 = vadd.f32 %v2724, %v2826
        %v2828 = vpop.f32.mrf.mxu0
        %2829 = vmatprep.mubr.f32.mxu0 0.0
        %v2830 = vand.u32 %v1325, 4294901760
        %v2831 = vsub.f32 %v1325, %v2830
        %v2832 = vand.u32 %v2831, 4294901760
        %2833 = vmatmul.mubr.f32.gmra.mxu0 %v2832
        %v2834 = vpop.f32.mrf.mxu0
        %v2835 = vadd.f32 %v2731, %v2834
        %v2836 = vpop.f32.mrf.mxu0
        %2837 = vmatprep.mubr.f32.mxu0 0.0
        %v2838 = vand.u32 %v1328, 4294901760
        %v2839 = vsub.f32 %v1328, %v2838
        %v2840 = vand.u32 %v2839, 4294901760
        %2841 = vmatmul.mubr.f32.gmra.mxu0 %v2840
        %v2842 = vpop.f32.mrf.mxu0
        %v2843 = vadd.f32 %v2738, %v2842
        %v2844 = vpop.f32.mrf.mxu0
        %2845 = vmatprep.mubr.f32.mxu0 0.0
        %v2846 = vand.u32 %v1331, 4294901760
        %v2847 = vsub.f32 %v1331, %v2846
        %v2848 = vand.u32 %v2847, 4294901760
        %2849 = vmatmul.mubr.f32.gmra.mxu0 %v2848
        %v2850 = vpop.f32.mrf.mxu0
        %v2851 = vadd.f32 %v2745, %v2850
        %v2852 = vpop.f32.mrf.mxu0
        %2853 = vmatprep.mubr.f32.mxu0 0.0
        %v2854 = vand.u32 %v1334, 4294901760
        %v2855 = vsub.f32 %v1334, %v2854
        %v2856 = vand.u32 %v2855, 4294901760
        %2857 = vmatmul.mubr.f32.gmra.mxu0 %v2856
        %v2858 = vpop.f32.mrf.mxu0
        %v2859 = vadd.f32 %v2752, %v2858
        %v2860 = vpop.f32.mrf.mxu0
        %2861 = vdwg.mxu0
        %2862 = vmatprep.subr.mxu0 0.0
        %2863 = vmatpush1.msra.mxu0 0.0
        %2864 = vmatprep.subr.mxu0 0.0
        %2865 = vmatpush1.msra.mxu0 0.0
        %2866 = vmatprep.subr.mxu0 0.0
        %2867 = vmatpush1.msra.mxu0 0.0
        %2868 = vmatprep.subr.mxu0 0.0
        %2869 = vmatpush1.msra.mxu0 0.0
        %2870 = vmatprep.subr.mxu0 0.0
        %2871 = vmatpush1.msra.mxu0 0.0
        %2872 = vmatprep.subr.mxu0 0.0
        %2873 = vmatpush1.msra.mxu0 0.0
        %2874 = vmatprep.subr.mxu0 0.0
        %2875 = vmatpush1.msra.mxu0 0.0
        %2876 = vmatprep.subr.mxu0 0.0
        %2877 = vmatpush1.msra.mxu0 0.0
        %2878 = vmatprep.subr.mxu0 0.0
        %2879 = vmatpush1.msra.mxu0 0.0
        %2880 = vmatprep.subr.mxu0 0.0
        %2881 = vmatpush1.msra.mxu0 0.0
        %2882 = vmatprep.subr.mxu0 0.0
        %2883 = vmatpush1.msra.mxu0 0.0
        %2884 = vmatprep.subr.mxu0 0.0
        %2885 = vmatpush1.msra.mxu0 0.0
        %2886 = vmatprep.subr.mxu0 0.0
        %2887 = vmatpush1.msra.mxu0 0.0
        %2888 = vmatprep.subr.mxu0 0.0
        %2889 = vmatpush1.msra.mxu0 0.0
        %2890 = vmatprep.subr.mxu0 0.0
        %v2891 = vand.u32 %v217, 4294901760
        %v2892 = vsub.f32 %v217, %v2891
        %v2893 = vand.u32 %v2892, 4294901760
        %2894 = vmatpush1.msra.mxu0 %v2893
        %2895 = vmatprep.subr.mxu0 0.0
        %v2896 = vand.u32 %v216, 4294901760
        %v2897 = vsub.f32 %v216, %v2896
        %v2898 = vand.u32 %v2897, 4294901760
        %2899 = vmatpush1.msra.mxu0 %v2898
        %2900 = vmatprep.subr.mxu0 0.0
        %2901 = vmatpush2.msra.mxu0 0.0
        %2902 = vmatprep.subr.mxu0 0.0
        %2903 = vmatpush2.msra.mxu0 0.0
        %2904 = vmatprep.subr.mxu0 0.0
        %2905 = vmatpush2.msra.mxu0 0.0
        %2906 = vmatprep.subr.mxu0 0.0
        %2907 = vmatpush2.msra.mxu0 0.0
        %2908 = vmatprep.subr.mxu0 0.0
        %2909 = vmatpush2.msra.mxu0 0.0
        %2910 = vmatprep.subr.mxu0 0.0
        %2911 = vmatpush2.msra.mxu0 0.0
        %2912 = vmatprep.subr.mxu0 0.0
        %2913 = vmatpush2.msra.mxu0 0.0
        %2914 = vmatprep.subr.mxu0 0.0
        %2915 = vmatpush2.msra.mxu0 0.0
        %2916 = vmatprep.subr.mxu0 0.0
        %2917 = vmatpush2.msra.mxu0 0.0
        %2918 = vmatprep.subr.mxu0 0.0
        %2919 = vmatpush2.msra.mxu0 0.0
        %2920 = vmatprep.subr.mxu0 0.0
        %2921 = vmatpush2.msra.mxu0 0.0
        %2922 = vmatprep.subr.mxu0 0.0
        %2923 = vmatpush2.msra.mxu0 0.0
        %2924 = vmatprep.subr.mxu0 0.0
        %2925 = vmatpush2.msra.mxu0 0.0
        %2926 = vmatprep.subr.mxu0 0.0
        %2927 = vmatpush2.msra.mxu0 0.0
        %2928 = vmatprep.subr.mxu0 0.0
        %2929 = vmatpush2.msra.mxu0 0.0
        %2930 = vmatprep.subr.mxu0 0.0
        %2931 = vmatpush2.msra.mxu0 0.0
        %2932 = vmatprep.mubr.f32.mxu0 0.0
        %v2933 = vand.u32 %v1322, 4294901760
        %2934 = vmatmul.mubr.f32.gmra.mxu0 %v2933
        %v2935 = vpop.f32.mrf.mxu0
        %v2936 = vadd.f32 %v2827, %v2935
        %v2937 = vpop.f32.mrf.mxu0
        %2938 = vmatprep.mubr.f32.mxu0 0.0
        %v2939 = vand.u32 %v1325, 4294901760
        %2940 = vmatmul.mubr.f32.gmra.mxu0 %v2939
        %v2941 = vpop.f32.mrf.mxu0
        %v2942 = vadd.f32 %v2835, %v2941
        %v2943 = vpop.f32.mrf.mxu0
        %2944 = vmatprep.mubr.f32.mxu0 0.0
        %v2945 = vand.u32 %v1328, 4294901760
        %2946 = vmatmul.mubr.f32.gmra.mxu0 %v2945
        %v2947 = vpop.f32.mrf.mxu0
        %v2948 = vadd.f32 %v2843, %v2947
        %v2949 = vpop.f32.mrf.mxu0
        %2950 = vmatprep.mubr.f32.mxu0 0.0
        %v2951 = vand.u32 %v1331, 4294901760
        %2952 = vmatmul.mubr.f32.gmra.mxu0 %v2951
        %v2953 = vpop.f32.mrf.mxu0
        %v2954 = vadd.f32 %v2851, %v2953
        %v2955 = vpop.f32.mrf.mxu0
        %2956 = vmatprep.mubr.f32.mxu0 0.0
        %v2957 = vand.u32 %v1334, 4294901760
        %2958 = vmatmul.mubr.f32.gmra.mxu0 %v2957
        %v2959 = vpop.f32.mrf.mxu0
        %v2960 = vadd.f32 %v2859, %v2959
        %v2961 = vpop.f32.mrf.mxu0
        %2962 = vdwg.mxu0
        %2963 = vmatprep.subr.mxu0 0.0
        %2964 = vmatpush1.msra.mxu0 0.0
        %2965 = vmatprep.subr.mxu0 0.0
        %2966 = vmatpush1.msra.mxu0 0.0
        %2967 = vmatprep.subr.mxu0 0.0
        %2968 = vmatpush1.msra.mxu0 0.0
        %2969 = vmatprep.subr.mxu0 0.0
        %2970 = vmatpush1.msra.mxu0 0.0
        %2971 = vmatprep.subr.mxu0 0.0
        %2972 = vmatpush1.msra.mxu0 0.0
        %2973 = vmatprep.subr.mxu0 0.0
        %2974 = vmatpush1.msra.mxu0 0.0
        %2975 = vmatprep.subr.mxu0 0.0
        %2976 = vmatpush1.msra.mxu0 0.0
        %2977 = vmatprep.subr.mxu0 0.0
        %2978 = vmatpush1.msra.mxu0 0.0
        %2979 = vmatprep.subr.mxu0 0.0
        %2980 = vmatpush1.msra.mxu0 0.0
        %2981 = vmatprep.subr.mxu0 0.0
        %2982 = vmatpush1.msra.mxu0 0.0
        %2983 = vmatprep.subr.mxu0 0.0
        %2984 = vmatpush1.msra.mxu0 0.0
        %2985 = vmatprep.subr.mxu0 0.0
        %2986 = vmatpush1.msra.mxu0 0.0
        %2987 = vmatprep.subr.mxu0 0.0
        %2988 = vmatpush1.msra.mxu0 0.0
        %2989 = vmatprep.subr.mxu0 0.0
        %2990 = vmatpush1.msra.mxu0 0.0
        %2991 = vmatprep.subr.mxu0 0.0
        %v2992 = vand.u32 %v217, 4294901760
        %2993 = vmatpush1.msra.mxu0 %v2992
        %2994 = vmatprep.subr.mxu0 0.0
        %v2995 = vand.u32 %v216, 4294901760
        %2996 = vmatpush1.msra.mxu0 %v2995
        %2997 = vmatprep.subr.mxu0 0.0
        %2998 = vmatpush2.msra.mxu0 0.0
        %2999 = vmatprep.subr.mxu0 0.0
        %3000 = vmatpush2.msra.mxu0 0.0
        %3001 = vmatprep.subr.mxu0 0.0
        %3002 = vmatpush2.msra.mxu0 0.0
        %3003 = vmatprep.subr.mxu0 0.0
        %3004 = vmatpush2.msra.mxu0 0.0
        %3005 = vmatprep.subr.mxu0 0.0
        %3006 = vmatpush2.msra.mxu0 0.0
        %3007 = vmatprep.subr.mxu0 0.0
        %3008 = vmatpush2.msra.mxu0 0.0
        %3009 = vmatprep.subr.mxu0 0.0
        %3010 = vmatpush2.msra.mxu0 0.0
        %3011 = vmatprep.subr.mxu0 0.0
        %3012 = vmatpush2.msra.mxu0 0.0
        %3013 = vmatprep.subr.mxu0 0.0
        %3014 = vmatpush2.msra.mxu0 0.0
        %3015 = vmatprep.subr.mxu0 0.0
        %3016 = vmatpush2.msra.mxu0 0.0
        %3017 = vmatprep.subr.mxu0 0.0
        %3018 = vmatpush2.msra.mxu0 0.0
        %3019 = vmatprep.subr.mxu0 0.0
        %3020 = vmatpush2.msra.mxu0 0.0
        %3021 = vmatprep.subr.mxu0 0.0
        %3022 = vmatpush2.msra.mxu0 0.0
        %3023 = vmatprep.subr.mxu0 0.0
        %3024 = vmatpush2.msra.mxu0 0.0
        %3025 = vmatprep.subr.mxu0 0.0
        %3026 = vmatpush2.msra.mxu0 0.0
        %3027 = vmatprep.subr.mxu0 0.0
        %3028 = vmatpush2.msra.mxu0 0.0
        %3029 = vmatprep.mubr.f32.mxu0 0.0
        %v3030 = vand.u32 %v1322, 4294901760
        %3031 = vmatmul.mubr.f32.gmra.mxu0 %v3030
        %v3032 = vpop.f32.mrf.mxu0
        %v3033 = vadd.f32 %v2936, %v3032
        %v3034 = vpop.f32.mrf.mxu0
        %3035 = vmatprep.mubr.f32.mxu0 0.0
        %v3036 = vand.u32 %v1325, 4294901760
        %3037 = vmatmul.mubr.f32.gmra.mxu0 %v3036
        %v3038 = vpop.f32.mrf.mxu0
        %v3039 = vadd.f32 %v2942, %v3038
        %v3040 = vpop.f32.mrf.mxu0
        %3041 = vmatprep.mubr.f32.mxu0 0.0
        %v3042 = vand.u32 %v1328, 4294901760
        %3043 = vmatmul.mubr.f32.gmra.mxu0 %v3042
        %v3044 = vpop.f32.mrf.mxu0
        %v3045 = vadd.f32 %v2948, %v3044
        %v3046 = vpop.f32.mrf.mxu0
        %3047 = vmatprep.mubr.f32.mxu0 0.0
        %v3048 = vand.u32 %v1331, 4294901760
        %3049 = vmatmul.mubr.f32.gmra.mxu0 %v3048
        %v3050 = vpop.f32.mrf.mxu0
        %v3051 = vadd.f32 %v2954, %v3050
        %v3052 = vpop.f32.mrf.mxu0
        %3053 = vmatprep.mubr.f32.mxu0 0.0
        %v3054 = vand.u32 %v1334, 4294901760
        %3055 = vmatmul.mubr.f32.gmra.mxu0 %v3054
        %v3056 = vpop.f32.mrf.mxu0
        %v3057 = vadd.f32 %v2960, %v3056
        %v3058 = vpop.f32.mrf.mxu0
        %3059 = vdwg.mxu0
        %3060 = vmatprep.subr.mxu0 0.0
        %3061 = vmatpush1.msra.mxu0 0.0
        %3062 = vmatprep.subr.mxu0 0.0
        %3063 = vmatpush1.msra.mxu0 0.0
        %3064 = vmatprep.subr.mxu0 0.0
        %3065 = vmatpush1.msra.mxu0 0.0
        %3066 = vmatprep.subr.mxu0 0.0
        %3067 = vmatpush1.msra.mxu0 0.0
        %3068 = vmatprep.subr.mxu0 0.0
        %3069 = vmatpush1.msra.mxu0 0.0
        %3070 = vmatprep.subr.mxu0 0.0
        %3071 = vmatpush1.msra.mxu0 0.0
        %3072 = vmatprep.subr.mxu0 0.0
        %3073 = vmatpush1.msra.mxu0 0.0
        %3074 = vmatprep.subr.mxu0 0.0
        %3075 = vmatpush1.msra.mxu0 0.0
        %3076 = vmatprep.subr.mxu0 0.0
        %3077 = vmatpush1.msra.mxu0 0.0
        %3078 = vmatprep.subr.mxu0 0.0
        %3079 = vmatpush1.msra.mxu0 0.0
        %3080 = vmatprep.subr.mxu0 0.0
        %3081 = vmatpush1.msra.mxu0 0.0
        %3082 = vmatprep.subr.mxu0 0.0
        %3083 = vmatpush1.msra.mxu0 0.0
        %3084 = vmatprep.subr.mxu0 0.0
        %3085 = vmatpush1.msra.mxu0 0.0
        %3086 = vmatprep.subr.mxu0 0.0
        %3087 = vmatpush1.msra.mxu0 0.0
        %3088 = vmatprep.subr.mxu0 0.0
        %v3089 = vand.u32 %v217, 4294901760
        %3090 = vmatpush1.msra.mxu0 %v3089
        %3091 = vmatprep.subr.mxu0 0.0
        %v3092 = vand.u32 %v216, 4294901760
        %3093 = vmatpush1.msra.mxu0 %v3092
        %3094 = vmatprep.subr.mxu0 0.0
        %3095 = vmatpush2.msra.mxu0 0.0
        %3096 = vmatprep.subr.mxu0 0.0
        %3097 = vmatpush2.msra.mxu0 0.0
        %3098 = vmatprep.subr.mxu0 0.0
        %3099 = vmatpush2.msra.mxu0 0.0
        %3100 = vmatprep.subr.mxu0 0.0
        %3101 = vmatpush2.msra.mxu0 0.0
        %3102 = vmatprep.subr.mxu0 0.0
        %3103 = vmatpush2.msra.mxu0 0.0
        %3104 = vmatprep.subr.mxu0 0.0
        %3105 = vmatpush2.msra.mxu0 0.0
        %3106 = vmatprep.subr.mxu0 0.0
        %3107 = vmatpush2.msra.mxu0 0.0
        %3108 = vmatprep.subr.mxu0 0.0
        %3109 = vmatpush2.msra.mxu0 0.0
        %3110 = vmatprep.subr.mxu0 0.0
        %3111 = vmatpush2.msra.mxu0 0.0
        %3112 = vmatprep.subr.mxu0 0.0
        %3113 = vmatpush2.msra.mxu0 0.0
        %3114 = vmatprep.subr.mxu0 0.0
        %3115 = vmatpush2.msra.mxu0 0.0
        %3116 = vmatprep.subr.mxu0 0.0
        %3117 = vmatpush2.msra.mxu0 0.0
        %3118 = vmatprep.subr.mxu0 0.0
        %3119 = vmatpush2.msra.mxu0 0.0
        %3120 = vmatprep.subr.mxu0 0.0
        %3121 = vmatpush2.msra.mxu0 0.0
        %3122 = vmatprep.subr.mxu0 0.0
        %3123 = vmatpush2.msra.mxu0 0.0
        %3124 = vmatprep.subr.mxu0 0.0
        %3125 = vmatpush2.msra.mxu0 0.0
        %3126 = vmatprep.mubr.f32.mxu0 0.0
        %v3127 = vand.u32 %v1968, 4294901760
        %v3128 = vsub.f32 %v1968, %v3127
        %v3129 = vand.u32 %v3128, 4294901760
        %v3130 = vsub.f32 %v3128, %v3129
        %v3131 = vand.u32 %v3130, 4294901760
        %3132 = vmatmul.mubr.f32.gmra.mxu0 %v3131
        %v3133 = vpop.f32.mrf.mxu0
        %v3134 = vadd.f32 0.0, %v3133
        %v3135 = vpop.f32.mrf.mxu0
        %3136 = vdwg.mxu0
        %3137 = vmatprep.subr.mxu0 0.0
        %3138 = vmatpush1.msra.mxu0 0.0
        %3139 = vmatprep.subr.mxu0 0.0
        %3140 = vmatpush1.msra.mxu0 0.0
        %3141 = vmatprep.subr.mxu0 0.0
        %3142 = vmatpush1.msra.mxu0 0.0
        %3143 = vmatprep.subr.mxu0 0.0
        %3144 = vmatpush1.msra.mxu0 0.0
        %3145 = vmatprep.subr.mxu0 0.0
        %3146 = vmatpush1.msra.mxu0 0.0
        %3147 = vmatprep.subr.mxu0 0.0
        %3148 = vmatpush1.msra.mxu0 0.0
        %3149 = vmatprep.subr.mxu0 0.0
        %3150 = vmatpush1.msra.mxu0 0.0
        %3151 = vmatprep.subr.mxu0 0.0
        %3152 = vmatpush1.msra.mxu0 0.0
        %3153 = vmatprep.subr.mxu0 0.0
        %3154 = vmatpush1.msra.mxu0 0.0
        %3155 = vmatprep.subr.mxu0 0.0
        %3156 = vmatpush1.msra.mxu0 0.0
        %3157 = vmatprep.subr.mxu0 0.0
        %3158 = vmatpush1.msra.mxu0 0.0
        %3159 = vmatprep.subr.mxu0 0.0
        %3160 = vmatpush1.msra.mxu0 0.0
        %3161 = vmatprep.subr.mxu0 0.0
        %3162 = vmatpush1.msra.mxu0 0.0
        %3163 = vmatprep.subr.mxu0 0.0
        %3164 = vmatpush1.msra.mxu0 0.0
        %3165 = vmatprep.subr.mxu0 0.0
        %v3166 = vand.u32 %v217, 4294901760
        %v3167 = vsub.f32 %v217, %v3166
        %v3168 = vand.u32 %v3167, 4294901760
        %v3169 = vsub.f32 %v3167, %v3168
        %v3170 = vand.u32 %v3169, 4294901760
        %3171 = vmatpush1.msra.mxu0 %v3170
        %3172 = vmatprep.subr.mxu0 0.0
        %v3173 = vand.u32 %v216, 4294901760
        %v3174 = vsub.f32 %v216, %v3173
        %v3175 = vand.u32 %v3174, 4294901760
        %v3176 = vsub.f32 %v3174, %v3175
        %v3177 = vand.u32 %v3176, 4294901760
        %3178 = vmatpush1.msra.mxu0 %v3177
        %3179 = vmatprep.subr.mxu0 0.0
        %3180 = vmatpush2.msra.mxu0 0.0
        %3181 = vmatprep.subr.mxu0 0.0
        %3182 = vmatpush2.msra.mxu0 0.0
        %3183 = vmatprep.subr.mxu0 0.0
        %3184 = vmatpush2.msra.mxu0 0.0
        %3185 = vmatprep.subr.mxu0 0.0
        %3186 = vmatpush2.msra.mxu0 0.0
        %3187 = vmatprep.subr.mxu0 0.0
        %3188 = vmatpush2.msra.mxu0 0.0
        %3189 = vmatprep.subr.mxu0 0.0
        %3190 = vmatpush2.msra.mxu0 0.0
        %3191 = vmatprep.subr.mxu0 0.0
        %3192 = vmatpush2.msra.mxu0 0.0
        %3193 = vmatprep.subr.mxu0 0.0
        %3194 = vmatpush2.msra.mxu0 0.0
        %3195 = vmatprep.subr.mxu0 0.0
        %3196 = vmatpush2.msra.mxu0 0.0
        %3197 = vmatprep.subr.mxu0 0.0
        %3198 = vmatpush2.msra.mxu0 0.0
        %3199 = vmatprep.subr.mxu0 0.0
        %3200 = vmatpush2.msra.mxu0 0.0
        %3201 = vmatprep.subr.mxu0 0.0
        %3202 = vmatpush2.msra.mxu0 0.0
        %3203 = vmatprep.subr.mxu0 0.0
        %3204 = vmatpush2.msra.mxu0 0.0
        %3205 = vmatprep.subr.mxu0 0.0
        %3206 = vmatpush2.msra.mxu0 0.0
        %3207 = vmatprep.subr.mxu0 0.0
        %3208 = vmatpush2.msra.mxu0 0.0
        %3209 = vmatprep.subr.mxu0 0.0
        %3210 = vmatpush2.msra.mxu0 0.0
        %3211 = vmatprep.mubr.f32.mxu0 0.0
        %v3212 = vand.u32 %v1968, 4294901760
        %3213 = vmatmul.mubr.f32.gmra.mxu0 %v3212
        %v3214 = vpop.f32.mrf.mxu0
        %v3215 = vadd.f32 %v3134, %v3214
        %v3216 = vpop.f32.mrf.mxu0
        %3217 = vdwg.mxu0
        %3218 = vmatprep.subr.mxu0 0.0
        %3219 = vmatpush1.msra.mxu0 0.0
        %3220 = vmatprep.subr.mxu0 0.0
        %3221 = vmatpush1.msra.mxu0 0.0
        %3222 = vmatprep.subr.mxu0 0.0
        %3223 = vmatpush1.msra.mxu0 0.0
        %3224 = vmatprep.subr.mxu0 0.0
        %3225 = vmatpush1.msra.mxu0 0.0
        %3226 = vmatprep.subr.mxu0 0.0
        %3227 = vmatpush1.msra.mxu0 0.0
        %3228 = vmatprep.subr.mxu0 0.0
        %3229 = vmatpush1.msra.mxu0 0.0
        %3230 = vmatprep.subr.mxu0 0.0
        %3231 = vmatpush1.msra.mxu0 0.0
        %3232 = vmatprep.subr.mxu0 0.0
        %3233 = vmatpush1.msra.mxu0 0.0
        %3234 = vmatprep.subr.mxu0 0.0
        %3235 = vmatpush1.msra.mxu0 0.0
        %3236 = vmatprep.subr.mxu0 0.0
        %3237 = vmatpush1.msra.mxu0 0.0
        %3238 = vmatprep.subr.mxu0 0.0
        %3239 = vmatpush1.msra.mxu0 0.0
        %3240 = vmatprep.subr.mxu0 0.0
        %3241 = vmatpush1.msra.mxu0 0.0
        %3242 = vmatprep.subr.mxu0 0.0
        %3243 = vmatpush1.msra.mxu0 0.0
        %3244 = vmatprep.subr.mxu0 0.0
        %3245 = vmatpush1.msra.mxu0 0.0
        %3246 = vmatprep.subr.mxu0 0.0
        %v3247 = vand.u32 %v217, 4294901760
        %v3248 = vsub.f32 %v217, %v3247
        %3249 = vmatpush1.msra.mxu0 %v3248
        %3250 = vmatprep.subr.mxu0 0.0
        %v3251 = vand.u32 %v216, 4294901760
        %v3252 = vsub.f32 %v216, %v3251
        %3253 = vmatpush1.msra.mxu0 %v3252
        %3254 = vmatprep.subr.mxu0 0.0
        %3255 = vmatpush2.msra.mxu0 0.0
        %3256 = vmatprep.subr.mxu0 0.0
        %3257 = vmatpush2.msra.mxu0 0.0
        %3258 = vmatprep.subr.mxu0 0.0
        %3259 = vmatpush2.msra.mxu0 0.0
        %3260 = vmatprep.subr.mxu0 0.0
        %3261 = vmatpush2.msra.mxu0 0.0
        %3262 = vmatprep.subr.mxu0 0.0
        %3263 = vmatpush2.msra.mxu0 0.0
        %3264 = vmatprep.subr.mxu0 0.0
        %3265 = vmatpush2.msra.mxu0 0.0
        %3266 = vmatprep.subr.mxu0 0.0
        %3267 = vmatpush2.msra.mxu0 0.0
        %3268 = vmatprep.subr.mxu0 0.0
        %3269 = vmatpush2.msra.mxu0 0.0
        %3270 = vmatprep.subr.mxu0 0.0
        %3271 = vmatpush2.msra.mxu0 0.0
        %3272 = vmatprep.subr.mxu0 0.0
        %3273 = vmatpush2.msra.mxu0 0.0
        %3274 = vmatprep.subr.mxu0 0.0
        %3275 = vmatpush2.msra.mxu0 0.0
        %3276 = vmatprep.subr.mxu0 0.0
        %3277 = vmatpush2.msra.mxu0 0.0
        %3278 = vmatprep.subr.mxu0 0.0
        %3279 = vmatpush2.msra.mxu0 0.0
        %3280 = vmatprep.subr.mxu0 0.0
        %3281 = vmatpush2.msra.mxu0 0.0
        %3282 = vmatprep.subr.mxu0 0.0
        %3283 = vmatpush2.msra.mxu0 0.0
        %3284 = vmatprep.subr.mxu0 0.0
        %3285 = vmatpush2.msra.mxu0 0.0
        %3286 = vmatprep.mubr.f32.mxu0 0.0
        %v3287 = vand.u32 %v1968, 4294901760
        %v3288 = vsub.f32 %v1968, %v3287
        %3289 = vmatmul.mubr.f32.gmra.mxu0 %v3288
        %v3290 = vpop.f32.mrf.mxu0
        %v3291 = vadd.f32 %v3215, %v3290
        %v3292 = vpop.f32.mrf.mxu0
        %3293 = vdwg.mxu0
        %3294 = vmatprep.subr.mxu0 0.0
        %3295 = vmatpush1.msra.mxu0 0.0
        %3296 = vmatprep.subr.mxu0 0.0
        %3297 = vmatpush1.msra.mxu0 0.0
        %3298 = vmatprep.subr.mxu0 0.0
        %3299 = vmatpush1.msra.mxu0 0.0
        %3300 = vmatprep.subr.mxu0 0.0
        %3301 = vmatpush1.msra.mxu0 0.0
        %3302 = vmatprep.subr.mxu0 0.0
        %3303 = vmatpush1.msra.mxu0 0.0
        %3304 = vmatprep.subr.mxu0 0.0
        %3305 = vmatpush1.msra.mxu0 0.0
        %3306 = vmatprep.subr.mxu0 0.0
        %3307 = vmatpush1.msra.mxu0 0.0
        %3308 = vmatprep.subr.mxu0 0.0
        %3309 = vmatpush1.msra.mxu0 0.0
        %3310 = vmatprep.subr.mxu0 0.0
        %3311 = vmatpush1.msra.mxu0 0.0
        %3312 = vmatprep.subr.mxu0 0.0
        %3313 = vmatpush1.msra.mxu0 0.0
        %3314 = vmatprep.subr.mxu0 0.0
        %3315 = vmatpush1.msra.mxu0 0.0
        %3316 = vmatprep.subr.mxu0 0.0
        %3317 = vmatpush1.msra.mxu0 0.0
        %3318 = vmatprep.subr.mxu0 0.0
        %3319 = vmatpush1.msra.mxu0 0.0
        %3320 = vmatprep.subr.mxu0 0.0
        %3321 = vmatpush1.msra.mxu0 0.0
        %3322 = vmatprep.subr.mxu0 0.0
        %v3323 = vand.u32 %v217, 4294901760
        %3324 = vmatpush1.msra.mxu0 %v3323
        %3325 = vmatprep.subr.mxu0 0.0
        %v3326 = vand.u32 %v216, 4294901760
        %3327 = vmatpush1.msra.mxu0 %v3326
        %3328 = vmatprep.subr.mxu0 0.0
        %3329 = vmatpush2.msra.mxu0 0.0
        %3330 = vmatprep.subr.mxu0 0.0
        %3331 = vmatpush2.msra.mxu0 0.0
        %3332 = vmatprep.subr.mxu0 0.0
        %3333 = vmatpush2.msra.mxu0 0.0
        %3334 = vmatprep.subr.mxu0 0.0
        %3335 = vmatpush2.msra.mxu0 0.0
        %3336 = vmatprep.subr.mxu0 0.0
        %3337 = vmatpush2.msra.mxu0 0.0
        %3338 = vmatprep.subr.mxu0 0.0
        %3339 = vmatpush2.msra.mxu0 0.0
        %3340 = vmatprep.subr.mxu0 0.0
        %3341 = vmatpush2.msra.mxu0 0.0
        %3342 = vmatprep.subr.mxu0 0.0
        %3343 = vmatpush2.msra.mxu0 0.0
        %3344 = vmatprep.subr.mxu0 0.0
        %3345 = vmatpush2.msra.mxu0 0.0
        %3346 = vmatprep.subr.mxu0 0.0
        %3347 = vmatpush2.msra.mxu0 0.0
        %3348 = vmatprep.subr.mxu0 0.0
        %3349 = vmatpush2.msra.mxu0 0.0
        %3350 = vmatprep.subr.mxu0 0.0
        %3351 = vmatpush2.msra.mxu0 0.0
        %3352 = vmatprep.subr.mxu0 0.0
        %3353 = vmatpush2.msra.mxu0 0.0
        %3354 = vmatprep.subr.mxu0 0.0
        %3355 = vmatpush2.msra.mxu0 0.0
        %3356 = vmatprep.subr.mxu0 0.0
        %3357 = vmatpush2.msra.mxu0 0.0
        %3358 = vmatprep.subr.mxu0 0.0
        %3359 = vmatpush2.msra.mxu0 0.0
        %3360 = vmatprep.mubr.f32.mxu0 0.0
        %v3361 = vand.u32 %v1968, 4294901760
        %v3362 = vsub.f32 %v1968, %v3361
        %v3363 = vand.u32 %v3362, 4294901760
        %3364 = vmatmul.mubr.f32.gmra.mxu0 %v3363
        %v3365 = vpop.f32.mrf.mxu0
        %v3366 = vadd.f32 %v3291, %v3365
        %v3367 = vpop.f32.mrf.mxu0
        %3368 = vdwg.mxu0
        %3369 = vmatprep.subr.mxu0 0.0
        %3370 = vmatpush1.msra.mxu0 0.0
        %3371 = vmatprep.subr.mxu0 0.0
        %3372 = vmatpush1.msra.mxu0 0.0
        %3373 = vmatprep.subr.mxu0 0.0
        %3374 = vmatpush1.msra.mxu0 0.0
        %3375 = vmatprep.subr.mxu0 0.0
        %3376 = vmatpush1.msra.mxu0 0.0
        %3377 = vmatprep.subr.mxu0 0.0
        %3378 = vmatpush1.msra.mxu0 0.0
        %3379 = vmatprep.subr.mxu0 0.0
        %3380 = vmatpush1.msra.mxu0 0.0
        %3381 = vmatprep.subr.mxu0 0.0
        %3382 = vmatpush1.msra.mxu0 0.0
        %3383 = vmatprep.subr.mxu0 0.0
        %3384 = vmatpush1.msra.mxu0 0.0
        %3385 = vmatprep.subr.mxu0 0.0
        %3386 = vmatpush1.msra.mxu0 0.0
        %3387 = vmatprep.subr.mxu0 0.0
        %3388 = vmatpush1.msra.mxu0 0.0
        %3389 = vmatprep.subr.mxu0 0.0
        %3390 = vmatpush1.msra.mxu0 0.0
        %3391 = vmatprep.subr.mxu0 0.0
        %3392 = vmatpush1.msra.mxu0 0.0
        %3393 = vmatprep.subr.mxu0 0.0
        %3394 = vmatpush1.msra.mxu0 0.0
        %3395 = vmatprep.subr.mxu0 0.0
        %3396 = vmatpush1.msra.mxu0 0.0
        %3397 = vmatprep.subr.mxu0 0.0
        %v3398 = vand.u32 %v217, 4294901760
        %v3399 = vsub.f32 %v217, %v3398
        %v3400 = vand.u32 %v3399, 4294901760
        %3401 = vmatpush1.msra.mxu0 %v3400
        %3402 = vmatprep.subr.mxu0 0.0
        %v3403 = vand.u32 %v216, 4294901760
        %v3404 = vsub.f32 %v216, %v3403
        %v3405 = vand.u32 %v3404, 4294901760
        %3406 = vmatpush1.msra.mxu0 %v3405
        %3407 = vmatprep.subr.mxu0 0.0
        %3408 = vmatpush2.msra.mxu0 0.0
        %3409 = vmatprep.subr.mxu0 0.0
        %3410 = vmatpush2.msra.mxu0 0.0
        %3411 = vmatprep.subr.mxu0 0.0
        %3412 = vmatpush2.msra.mxu0 0.0
        %3413 = vmatprep.subr.mxu0 0.0
        %3414 = vmatpush2.msra.mxu0 0.0
        %3415 = vmatprep.subr.mxu0 0.0
        %3416 = vmatpush2.msra.mxu0 0.0
        %3417 = vmatprep.subr.mxu0 0.0
        %3418 = vmatpush2.msra.mxu0 0.0
        %3419 = vmatprep.subr.mxu0 0.0
        %3420 = vmatpush2.msra.mxu0 0.0
        %3421 = vmatprep.subr.mxu0 0.0
        %3422 = vmatpush2.msra.mxu0 0.0
        %3423 = vmatprep.subr.mxu0 0.0
        %3424 = vmatpush2.msra.mxu0 0.0
        %3425 = vmatprep.subr.mxu0 0.0
        %3426 = vmatpush2.msra.mxu0 0.0
        %3427 = vmatprep.subr.mxu0 0.0
        %3428 = vmatpush2.msra.mxu0 0.0
        %3429 = vmatprep.subr.mxu0 0.0
        %3430 = vmatpush2.msra.mxu0 0.0
        %3431 = vmatprep.subr.mxu0 0.0
        %3432 = vmatpush2.msra.mxu0 0.0
        %3433 = vmatprep.subr.mxu0 0.0
        %3434 = vmatpush2.msra.mxu0 0.0
        %3435 = vmatprep.subr.mxu0 0.0
        %3436 = vmatpush2.msra.mxu0 0.0
        %3437 = vmatprep.subr.mxu0 0.0
        %3438 = vmatpush2.msra.mxu0 0.0
        %3439 = vmatprep.mubr.f32.mxu0 0.0
        %v3440 = vand.u32 %v1968, 4294901760
        %3441 = vmatmul.mubr.f32.gmra.mxu0 %v3440
        %v3442 = vpop.f32.mrf.mxu0
        %v3443 = vadd.f32 %v3366, %v3442
        %v3444 = vpop.f32.mrf.mxu0
        %3445 = vdwg.mxu0
        %3446 = vmatprep.subr.mxu0 0.0
        %3447 = vmatpush1.msra.mxu0 0.0
        %3448 = vmatprep.subr.mxu0 0.0
        %3449 = vmatpush1.msra.mxu0 0.0
        %3450 = vmatprep.subr.mxu0 0.0
        %3451 = vmatpush1.msra.mxu0 0.0
        %3452 = vmatprep.subr.mxu0 0.0
        %3453 = vmatpush1.msra.mxu0 0.0
        %3454 = vmatprep.subr.mxu0 0.0
        %3455 = vmatpush1.msra.mxu0 0.0
        %3456 = vmatprep.subr.mxu0 0.0
        %3457 = vmatpush1.msra.mxu0 0.0
        %3458 = vmatprep.subr.mxu0 0.0
        %3459 = vmatpush1.msra.mxu0 0.0
        %3460 = vmatprep.subr.mxu0 0.0
        %3461 = vmatpush1.msra.mxu0 0.0
        %3462 = vmatprep.subr.mxu0 0.0
        %3463 = vmatpush1.msra.mxu0 0.0
        %3464 = vmatprep.subr.mxu0 0.0
        %3465 = vmatpush1.msra.mxu0 0.0
        %3466 = vmatprep.subr.mxu0 0.0
        %3467 = vmatpush1.msra.mxu0 0.0
        %3468 = vmatprep.subr.mxu0 0.0
        %3469 = vmatpush1.msra.mxu0 0.0
        %3470 = vmatprep.subr.mxu0 0.0
        %3471 = vmatpush1.msra.mxu0 0.0
        %3472 = vmatprep.subr.mxu0 0.0
        %3473 = vmatpush1.msra.mxu0 0.0
        %3474 = vmatprep.subr.mxu0 0.0
        %v3475 = vand.u32 %v217, 4294901760
        %3476 = vmatpush1.msra.mxu0 %v3475
        %3477 = vmatprep.subr.mxu0 0.0
        %v3478 = vand.u32 %v216, 4294901760
        %3479 = vmatpush1.msra.mxu0 %v3478
        %3480 = vmatprep.subr.mxu0 0.0
        %3481 = vmatpush2.msra.mxu0 0.0
        %3482 = vmatprep.subr.mxu0 0.0
        %3483 = vmatpush2.msra.mxu0 0.0
        %3484 = vmatprep.subr.mxu0 0.0
        %3485 = vmatpush2.msra.mxu0 0.0
        %3486 = vmatprep.subr.mxu0 0.0
        %3487 = vmatpush2.msra.mxu0 0.0
        %3488 = vmatprep.subr.mxu0 0.0
        %3489 = vmatpush2.msra.mxu0 0.0
        %3490 = vmatprep.subr.mxu0 0.0
        %3491 = vmatpush2.msra.mxu0 0.0
        %3492 = vmatprep.subr.mxu0 0.0
        %3493 = vmatpush2.msra.mxu0 0.0
        %3494 = vmatprep.subr.mxu0 0.0
        %3495 = vmatpush2.msra.mxu0 0.0
        %3496 = vmatprep.subr.mxu0 0.0
        %3497 = vmatpush2.msra.mxu0 0.0
        %3498 = vmatprep.subr.mxu0 0.0
        %3499 = vmatpush2.msra.mxu0 0.0
        %3500 = vmatprep.subr.mxu0 0.0
        %3501 = vmatpush2.msra.mxu0 0.0
        %3502 = vmatprep.subr.mxu0 0.0
        %3503 = vmatpush2.msra.mxu0 0.0
        %3504 = vmatprep.subr.mxu0 0.0
        %3505 = vmatpush2.msra.mxu0 0.0
        %3506 = vmatprep.subr.mxu0 0.0
        %3507 = vmatpush2.msra.mxu0 0.0
        %3508 = vmatprep.subr.mxu0 0.0
        %3509 = vmatpush2.msra.mxu0 0.0
        %3510 = vmatprep.subr.mxu0 0.0
        %3511 = vmatpush2.msra.mxu0 0.0
        %3512 = vmatprep.mubr.f32.mxu0 0.0
        %v3513 = vand.u32 %v1968, 4294901760
        %3514 = vmatmul.mubr.f32.gmra.mxu0 %v3513
        %v3515 = vpop.f32.mrf.mxu0
        %v3516 = vadd.f32 %v3443, %v3515
        %v3517 = vpop.f32.mrf.mxu0
        %3518 = vdwg.mxu0
        %3519 = vrot.lane.b32.xlu0 %v229, 112
        %v3520 = vpop.permute.xlu0 %3519
        %3521 = vrot.lane.b32.xlu0 %v230, 112
        %v3522 = vpop.permute.xlu0 %3521
        %3523 = vrot.lane.b32.xlu0 %v231, 112
        %v3524 = vpop.permute.xlu0 %3523
        %3525 = vrot.lane.b32.xlu0 %v232, 112
        %v3526 = vpop.permute.xlu0 %3525
        %3527 = vrot.lane.b32.xlu0 %v233, 112
        %v3528 = vpop.permute.xlu0 %3527
        %v3529 = vsel %vm1320, %v3520, 0
        %v3531 = vsel %vm1320, %v3522, 0
        %v3533 = vsel %vm1320, %v3524, 0
        %v3535 = vsel %vm1320, %v3526, 0
        %v3537 = vsel %vm1320, %v3528, 0
        %3539 = vmatprep.subr.mxu0 0.0
        %3540 = vmatpush1.msra.mxu0 0.0
        %3541 = vmatprep.subr.mxu0 0.0
        %3542 = vmatpush1.msra.mxu0 0.0
        %3543 = vmatprep.subr.mxu0 0.0
        %3544 = vmatpush1.msra.mxu0 0.0
        %3545 = vmatprep.subr.mxu0 0.0
        %3546 = vmatpush1.msra.mxu0 0.0
        %3547 = vmatprep.subr.mxu0 0.0
        %3548 = vmatpush1.msra.mxu0 0.0
        %3549 = vmatprep.subr.mxu0 0.0
        %3550 = vmatpush1.msra.mxu0 0.0
        %3551 = vmatprep.subr.mxu0 0.0
        %3552 = vmatpush1.msra.mxu0 0.0
        %3553 = vmatprep.subr.mxu0 0.0
        %3554 = vmatpush1.msra.mxu0 0.0
        %3555 = vmatprep.subr.mxu0 0.0
        %3556 = vmatpush1.msra.mxu0 0.0
        %3557 = vmatprep.subr.mxu0 0.0
        %3558 = vmatpush1.msra.mxu0 0.0
        %3559 = vmatprep.subr.mxu0 0.0
        %3560 = vmatpush1.msra.mxu0 0.0
        %3561 = vmatprep.subr.mxu0 0.0
        %3562 = vmatpush1.msra.mxu0 0.0
        %3563 = vmatprep.subr.mxu0 0.0
        %3564 = vmatpush1.msra.mxu0 0.0
        %3565 = vmatprep.subr.mxu0 0.0
        %3566 = vmatpush1.msra.mxu0 0.0
        %3567 = vmatprep.subr.mxu0 0.0
        %v3568 = vand.u32 %v215, 4294901760
        %3569 = vmatpush1.msra.mxu0 %v3568
        %3570 = vmatprep.subr.mxu0 0.0
        %v3571 = vand.u32 %v214, 4294901760
        %3572 = vmatpush1.msra.mxu0 %v3571
        %3573 = vmatprep.subr.mxu0 0.0
        %3574 = vmatpush2.msra.mxu0 0.0
        %3575 = vmatprep.subr.mxu0 0.0
        %3576 = vmatpush2.msra.mxu0 0.0
        %3577 = vmatprep.subr.mxu0 0.0
        %3578 = vmatpush2.msra.mxu0 0.0
        %3579 = vmatprep.subr.mxu0 0.0
        %3580 = vmatpush2.msra.mxu0 0.0
        %3581 = vmatprep.subr.mxu0 0.0
        %3582 = vmatpush2.msra.mxu0 0.0
        %3583 = vmatprep.subr.mxu0 0.0
        %3584 = vmatpush2.msra.mxu0 0.0
        %3585 = vmatprep.subr.mxu0 0.0
        %3586 = vmatpush2.msra.mxu0 0.0
        %3587 = vmatprep.subr.mxu0 0.0
        %3588 = vmatpush2.msra.mxu0 0.0
        %3589 = vmatprep.subr.mxu0 0.0
        %3590 = vmatpush2.msra.mxu0 0.0
        %3591 = vmatprep.subr.mxu0 0.0
        %3592 = vmatpush2.msra.mxu0 0.0
        %3593 = vmatprep.subr.mxu0 0.0
        %3594 = vmatpush2.msra.mxu0 0.0
        %3595 = vmatprep.subr.mxu0 0.0
        %3596 = vmatpush2.msra.mxu0 0.0
        %3597 = vmatprep.subr.mxu0 0.0
        %3598 = vmatpush2.msra.mxu0 0.0
        %3599 = vmatprep.subr.mxu0 0.0
        %3600 = vmatpush2.msra.mxu0 0.0
        %3601 = vmatprep.subr.mxu0 0.0
        %3602 = vmatpush2.msra.mxu0 0.0
        %3603 = vmatprep.subr.mxu0 0.0
        %3604 = vmatpush2.msra.mxu0 0.0
        %3605 = vmatprep.mubr.f32.mxu0 0.0
        %v3606 = vand.u32 %v3529, 4294901760
        %v3607 = vsub.f32 %v3529, %v3606
        %v3608 = vand.u32 %v3607, 4294901760
        %v3609 = vsub.f32 %v3607, %v3608
        %v3610 = vand.u32 %v3609, 4294901760
        %3611 = vmatmul.mubr.f32.gmra.mxu0 %v3610
        %v3612 = vpop.f32.mrf.mxu0
        %v3613 = vadd.f32 0.0, %v3612
        %v3614 = vpop.f32.mrf.mxu0
        %3615 = vmatprep.mubr.f32.mxu0 0.0
        %v3616 = vand.u32 %v3531, 4294901760
        %v3617 = vsub.f32 %v3531, %v3616
        %v3618 = vand.u32 %v3617, 4294901760
        %v3619 = vsub.f32 %v3617, %v3618
        %v3620 = vand.u32 %v3619, 4294901760
        %3621 = vmatmul.mubr.f32.gmra.mxu0 %v3620
        %v3622 = vpop.f32.mrf.mxu0
        %v3623 = vadd.f32 0.0, %v3622
        %v3624 = vpop.f32.mrf.mxu0
        %3625 = vmatprep.mubr.f32.mxu0 0.0
        %v3626 = vand.u32 %v3533, 4294901760
        %v3627 = vsub.f32 %v3533, %v3626
        %v3628 = vand.u32 %v3627, 4294901760
        %v3629 = vsub.f32 %v3627, %v3628
        %v3630 = vand.u32 %v3629, 4294901760
        %3631 = vmatmul.mubr.f32.gmra.mxu0 %v3630
        %v3632 = vpop.f32.mrf.mxu0
        %v3633 = vadd.f32 0.0, %v3632
        %v3634 = vpop.f32.mrf.mxu0
        %3635 = vmatprep.mubr.f32.mxu0 0.0
        %v3636 = vand.u32 %v3535, 4294901760
        %v3637 = vsub.f32 %v3535, %v3636
        %v3638 = vand.u32 %v3637, 4294901760
        %v3639 = vsub.f32 %v3637, %v3638
        %v3640 = vand.u32 %v3639, 4294901760
        %3641 = vmatmul.mubr.f32.gmra.mxu0 %v3640
        %v3642 = vpop.f32.mrf.mxu0
        %v3643 = vadd.f32 0.0, %v3642
        %v3644 = vpop.f32.mrf.mxu0
        %3645 = vmatprep.mubr.f32.mxu0 0.0
        %v3646 = vand.u32 %v3537, 4294901760
        %v3647 = vsub.f32 %v3537, %v3646
        %v3648 = vand.u32 %v3647, 4294901760
        %v3649 = vsub.f32 %v3647, %v3648
        %v3650 = vand.u32 %v3649, 4294901760
        %3651 = vmatmul.mubr.f32.gmra.mxu0 %v3650
        %v3652 = vpop.f32.mrf.mxu0
        %v3653 = vadd.f32 0.0, %v3652
        %v3654 = vpop.f32.mrf.mxu0
        %3655 = vdwg.mxu0
        %3656 = vmatprep.subr.mxu0 0.0
        %3657 = vmatpush1.msra.mxu0 0.0
        %3658 = vmatprep.subr.mxu0 0.0
        %3659 = vmatpush1.msra.mxu0 0.0
        %3660 = vmatprep.subr.mxu0 0.0
        %3661 = vmatpush1.msra.mxu0 0.0
        %3662 = vmatprep.subr.mxu0 0.0
        %3663 = vmatpush1.msra.mxu0 0.0
        %3664 = vmatprep.subr.mxu0 0.0
        %3665 = vmatpush1.msra.mxu0 0.0
        %3666 = vmatprep.subr.mxu0 0.0
        %3667 = vmatpush1.msra.mxu0 0.0
        %3668 = vmatprep.subr.mxu0 0.0
        %3669 = vmatpush1.msra.mxu0 0.0
        %3670 = vmatprep.subr.mxu0 0.0
        %3671 = vmatpush1.msra.mxu0 0.0
        %3672 = vmatprep.subr.mxu0 0.0
        %3673 = vmatpush1.msra.mxu0 0.0
        %3674 = vmatprep.subr.mxu0 0.0
        %3675 = vmatpush1.msra.mxu0 0.0
        %3676 = vmatprep.subr.mxu0 0.0
        %3677 = vmatpush1.msra.mxu0 0.0
        %3678 = vmatprep.subr.mxu0 0.0
        %3679 = vmatpush1.msra.mxu0 0.0
        %3680 = vmatprep.subr.mxu0 0.0
        %3681 = vmatpush1.msra.mxu0 0.0
        %3682 = vmatprep.subr.mxu0 0.0
        %3683 = vmatpush1.msra.mxu0 0.0
        %3684 = vmatprep.subr.mxu0 0.0
        %v3685 = vand.u32 %v215, 4294901760
        %v3686 = vsub.f32 %v215, %v3685
        %v3687 = vand.u32 %v3686, 4294901760
        %v3688 = vsub.f32 %v3686, %v3687
        %v3689 = vand.u32 %v3688, 4294901760
        %3690 = vmatpush1.msra.mxu0 %v3689
        %3691 = vmatprep.subr.mxu0 0.0
        %v3692 = vand.u32 %v214, 4294901760
        %v3693 = vsub.f32 %v214, %v3692
        %v3694 = vand.u32 %v3693, 4294901760
        %v3695 = vsub.f32 %v3693, %v3694
        %v3696 = vand.u32 %v3695, 4294901760
        %3697 = vmatpush1.msra.mxu0 %v3696
        %3698 = vmatprep.subr.mxu0 0.0
        %3699 = vmatpush2.msra.mxu0 0.0
        %3700 = vmatprep.subr.mxu0 0.0
        %3701 = vmatpush2.msra.mxu0 0.0
        %3702 = vmatprep.subr.mxu0 0.0
        %3703 = vmatpush2.msra.mxu0 0.0
        %3704 = vmatprep.subr.mxu0 0.0
        %3705 = vmatpush2.msra.mxu0 0.0
        %3706 = vmatprep.subr.mxu0 0.0
        %3707 = vmatpush2.msra.mxu0 0.0
        %3708 = vmatprep.subr.mxu0 0.0
        %3709 = vmatpush2.msra.mxu0 0.0
        %3710 = vmatprep.subr.mxu0 0.0
        %3711 = vmatpush2.msra.mxu0 0.0
        %3712 = vmatprep.subr.mxu0 0.0
        %3713 = vmatpush2.msra.mxu0 0.0
        %3714 = vmatprep.subr.mxu0 0.0
        %3715 = vmatpush2.msra.mxu0 0.0
        %3716 = vmatprep.subr.mxu0 0.0
        %3717 = vmatpush2.msra.mxu0 0.0
        %3718 = vmatprep.subr.mxu0 0.0
        %3719 = vmatpush2.msra.mxu0 0.0
        %3720 = vmatprep.subr.mxu0 0.0
        %3721 = vmatpush2.msra.mxu0 0.0
        %3722 = vmatprep.subr.mxu0 0.0
        %3723 = vmatpush2.msra.mxu0 0.0
        %3724 = vmatprep.subr.mxu0 0.0
        %3725 = vmatpush2.msra.mxu0 0.0
        %3726 = vmatprep.subr.mxu0 0.0
        %3727 = vmatpush2.msra.mxu0 0.0
        %3728 = vmatprep.subr.mxu0 0.0
        %3729 = vmatpush2.msra.mxu0 0.0
        %3730 = vmatprep.mubr.f32.mxu0 0.0
        %v3731 = vand.u32 %v3529, 4294901760
        %3732 = vmatmul.mubr.f32.gmra.mxu0 %v3731
        %v3733 = vpop.f32.mrf.mxu0
        %v3734 = vadd.f32 %v3613, %v3733
        %v3735 = vpop.f32.mrf.mxu0
        %3736 = vmatprep.mubr.f32.mxu0 0.0
        %v3737 = vand.u32 %v3531, 4294901760
        %3738 = vmatmul.mubr.f32.gmra.mxu0 %v3737
        %v3739 = vpop.f32.mrf.mxu0
        %v3740 = vadd.f32 %v3623, %v3739
        %v3741 = vpop.f32.mrf.mxu0
        %3742 = vmatprep.mubr.f32.mxu0 0.0
        %v3743 = vand.u32 %v3533, 4294901760
        %3744 = vmatmul.mubr.f32.gmra.mxu0 %v3743
        %v3745 = vpop.f32.mrf.mxu0
        %v3746 = vadd.f32 %v3633, %v3745
        %v3747 = vpop.f32.mrf.mxu0
        %3748 = vmatprep.mubr.f32.mxu0 0.0
        %v3749 = vand.u32 %v3535, 4294901760
        %3750 = vmatmul.mubr.f32.gmra.mxu0 %v3749
        %v3751 = vpop.f32.mrf.mxu0
        %v3752 = vadd.f32 %v3643, %v3751
        %v3753 = vpop.f32.mrf.mxu0
        %3754 = vmatprep.mubr.f32.mxu0 0.0
        %v3755 = vand.u32 %v3537, 4294901760
        %3756 = vmatmul.mubr.f32.gmra.mxu0 %v3755
        %v3757 = vpop.f32.mrf.mxu0
        %v3758 = vadd.f32 %v3653, %v3757
        %v3759 = vpop.f32.mrf.mxu0
        %3760 = vdwg.mxu0
        %3761 = vmatprep.subr.mxu0 0.0
        %3762 = vmatpush1.msra.mxu0 0.0
        %3763 = vmatprep.subr.mxu0 0.0
        %3764 = vmatpush1.msra.mxu0 0.0
        %3765 = vmatprep.subr.mxu0 0.0
        %3766 = vmatpush1.msra.mxu0 0.0
        %3767 = vmatprep.subr.mxu0 0.0
        %3768 = vmatpush1.msra.mxu0 0.0
        %3769 = vmatprep.subr.mxu0 0.0
        %3770 = vmatpush1.msra.mxu0 0.0
        %3771 = vmatprep.subr.mxu0 0.0
        %3772 = vmatpush1.msra.mxu0 0.0
        %3773 = vmatprep.subr.mxu0 0.0
        %3774 = vmatpush1.msra.mxu0 0.0
        %3775 = vmatprep.subr.mxu0 0.0
        %3776 = vmatpush1.msra.mxu0 0.0
        %3777 = vmatprep.subr.mxu0 0.0
        %3778 = vmatpush1.msra.mxu0 0.0
        %3779 = vmatprep.subr.mxu0 0.0
        %3780 = vmatpush1.msra.mxu0 0.0
        %3781 = vmatprep.subr.mxu0 0.0
        %3782 = vmatpush1.msra.mxu0 0.0
        %3783 = vmatprep.subr.mxu0 0.0
        %3784 = vmatpush1.msra.mxu0 0.0
        %3785 = vmatprep.subr.mxu0 0.0
        %3786 = vmatpush1.msra.mxu0 0.0
        %3787 = vmatprep.subr.mxu0 0.0
        %3788 = vmatpush1.msra.mxu0 0.0
        %3789 = vmatprep.subr.mxu0 0.0
        %v3790 = vand.u32 %v215, 4294901760
        %v3791 = vsub.f32 %v215, %v3790
        %3792 = vmatpush1.msra.mxu0 %v3791
        %3793 = vmatprep.subr.mxu0 0.0
        %v3794 = vand.u32 %v214, 4294901760
        %v3795 = vsub.f32 %v214, %v3794
        %3796 = vmatpush1.msra.mxu0 %v3795
        %3797 = vmatprep.subr.mxu0 0.0
        %3798 = vmatpush2.msra.mxu0 0.0
        %3799 = vmatprep.subr.mxu0 0.0
        %3800 = vmatpush2.msra.mxu0 0.0
        %3801 = vmatprep.subr.mxu0 0.0
        %3802 = vmatpush2.msra.mxu0 0.0
        %3803 = vmatprep.subr.mxu0 0.0
        %3804 = vmatpush2.msra.mxu0 0.0
        %3805 = vmatprep.subr.mxu0 0.0
        %3806 = vmatpush2.msra.mxu0 0.0
        %3807 = vmatprep.subr.mxu0 0.0
        %3808 = vmatpush2.msra.mxu0 0.0
        %3809 = vmatprep.subr.mxu0 0.0
        %3810 = vmatpush2.msra.mxu0 0.0
        %3811 = vmatprep.subr.mxu0 0.0
        %3812 = vmatpush2.msra.mxu0 0.0
        %3813 = vmatprep.subr.mxu0 0.0
        %3814 = vmatpush2.msra.mxu0 0.0
        %3815 = vmatprep.subr.mxu0 0.0
        %3816 = vmatpush2.msra.mxu0 0.0
        %3817 = vmatprep.subr.mxu0 0.0
        %3818 = vmatpush2.msra.mxu0 0.0
        %3819 = vmatprep.subr.mxu0 0.0
        %3820 = vmatpush2.msra.mxu0 0.0
        %3821 = vmatprep.subr.mxu0 0.0
        %3822 = vmatpush2.msra.mxu0 0.0
        %3823 = vmatprep.subr.mxu0 0.0
        %3824 = vmatpush2.msra.mxu0 0.0
        %3825 = vmatprep.subr.mxu0 0.0
        %3826 = vmatpush2.msra.mxu0 0.0
        %3827 = vmatprep.subr.mxu0 0.0
        %3828 = vmatpush2.msra.mxu0 0.0
        %3829 = vmatprep.mubr.f32.mxu0 0.0
        %v3830 = vand.u32 %v3529, 4294901760
        %v3831 = vsub.f32 %v3529, %v3830
        %3832 = vmatmul.mubr.f32.gmra.mxu0 %v3831
        %v3833 = vpop.f32.mrf.mxu0
        %v3834 = vadd.f32 %v3734, %v3833
        %v3835 = vpop.f32.mrf.mxu0
        %3836 = vmatprep.mubr.f32.mxu0 0.0
        %v3837 = vand.u32 %v3531, 4294901760
        %v3838 = vsub.f32 %v3531, %v3837
        %3839 = vmatmul.mubr.f32.gmra.mxu0 %v3838
        %v3840 = vpop.f32.mrf.mxu0
        %v3841 = vadd.f32 %v3740, %v3840
        %v3842 = vpop.f32.mrf.mxu0
        %3843 = vmatprep.mubr.f32.mxu0 0.0
        %v3844 = vand.u32 %v3533, 4294901760
        %v3845 = vsub.f32 %v3533, %v3844
        %3846 = vmatmul.mubr.f32.gmra.mxu0 %v3845
        %v3847 = vpop.f32.mrf.mxu0
        %v3848 = vadd.f32 %v3746, %v3847
        %v3849 = vpop.f32.mrf.mxu0
        %3850 = vmatprep.mubr.f32.mxu0 0.0
        %v3851 = vand.u32 %v3535, 4294901760
        %v3852 = vsub.f32 %v3535, %v3851
        %3853 = vmatmul.mubr.f32.gmra.mxu0 %v3852
        %v3854 = vpop.f32.mrf.mxu0
        %v3855 = vadd.f32 %v3752, %v3854
        %v3856 = vpop.f32.mrf.mxu0
        %3857 = vmatprep.mubr.f32.mxu0 0.0
        %v3858 = vand.u32 %v3537, 4294901760
        %v3859 = vsub.f32 %v3537, %v3858
        %3860 = vmatmul.mubr.f32.gmra.mxu0 %v3859
        %v3861 = vpop.f32.mrf.mxu0
        %v3862 = vadd.f32 %v3758, %v3861
        %v3863 = vpop.f32.mrf.mxu0
        %3864 = vdwg.mxu0
        %3865 = vmatprep.subr.mxu0 0.0
        %3866 = vmatpush1.msra.mxu0 0.0
        %3867 = vmatprep.subr.mxu0 0.0
        %3868 = vmatpush1.msra.mxu0 0.0
        %3869 = vmatprep.subr.mxu0 0.0
        %3870 = vmatpush1.msra.mxu0 0.0
        %3871 = vmatprep.subr.mxu0 0.0
        %3872 = vmatpush1.msra.mxu0 0.0
        %3873 = vmatprep.subr.mxu0 0.0
        %3874 = vmatpush1.msra.mxu0 0.0
        %3875 = vmatprep.subr.mxu0 0.0
        %3876 = vmatpush1.msra.mxu0 0.0
        %3877 = vmatprep.subr.mxu0 0.0
        %3878 = vmatpush1.msra.mxu0 0.0
        %3879 = vmatprep.subr.mxu0 0.0
        %3880 = vmatpush1.msra.mxu0 0.0
        %3881 = vmatprep.subr.mxu0 0.0
        %3882 = vmatpush1.msra.mxu0 0.0
        %3883 = vmatprep.subr.mxu0 0.0
        %3884 = vmatpush1.msra.mxu0 0.0
        %3885 = vmatprep.subr.mxu0 0.0
        %3886 = vmatpush1.msra.mxu0 0.0
        %3887 = vmatprep.subr.mxu0 0.0
        %3888 = vmatpush1.msra.mxu0 0.0
        %3889 = vmatprep.subr.mxu0 0.0
        %3890 = vmatpush1.msra.mxu0 0.0
        %3891 = vmatprep.subr.mxu0 0.0
        %3892 = vmatpush1.msra.mxu0 0.0
        %3893 = vmatprep.subr.mxu0 0.0
        %v3894 = vand.u32 %v215, 4294901760
        %3895 = vmatpush1.msra.mxu0 %v3894
        %3896 = vmatprep.subr.mxu0 0.0
        %v3897 = vand.u32 %v214, 4294901760
        %3898 = vmatpush1.msra.mxu0 %v3897
        %3899 = vmatprep.subr.mxu0 0.0
        %3900 = vmatpush2.msra.mxu0 0.0
        %3901 = vmatprep.subr.mxu0 0.0
        %3902 = vmatpush2.msra.mxu0 0.0
        %3903 = vmatprep.subr.mxu0 0.0
        %3904 = vmatpush2.msra.mxu0 0.0
        %3905 = vmatprep.subr.mxu0 0.0
        %3906 = vmatpush2.msra.mxu0 0.0
        %3907 = vmatprep.subr.mxu0 0.0
        %3908 = vmatpush2.msra.mxu0 0.0
        %3909 = vmatprep.subr.mxu0 0.0
        %3910 = vmatpush2.msra.mxu0 0.0
        %3911 = vmatprep.subr.mxu0 0.0
        %3912 = vmatpush2.msra.mxu0 0.0
        %3913 = vmatprep.subr.mxu0 0.0
        %3914 = vmatpush2.msra.mxu0 0.0
        %3915 = vmatprep.subr.mxu0 0.0
        %3916 = vmatpush2.msra.mxu0 0.0
        %3917 = vmatprep.subr.mxu0 0.0
        %3918 = vmatpush2.msra.mxu0 0.0
        %3919 = vmatprep.subr.mxu0 0.0
        %3920 = vmatpush2.msra.mxu0 0.0
        %3921 = vmatprep.subr.mxu0 0.0
        %3922 = vmatpush2.msra.mxu0 0.0
        %3923 = vmatprep.subr.mxu0 0.0
        %3924 = vmatpush2.msra.mxu0 0.0
        %3925 = vmatprep.subr.mxu0 0.0
        %3926 = vmatpush2.msra.mxu0 0.0
        %3927 = vmatprep.subr.mxu0 0.0
        %3928 = vmatpush2.msra.mxu0 0.0
        %3929 = vmatprep.subr.mxu0 0.0
        %3930 = vmatpush2.msra.mxu0 0.0
        %3931 = vmatprep.mubr.f32.mxu0 0.0
        %v3932 = vand.u32 %v3529, 4294901760
        %v3933 = vsub.f32 %v3529, %v3932
        %v3934 = vand.u32 %v3933, 4294901760
        %3935 = vmatmul.mubr.f32.gmra.mxu0 %v3934
        %v3936 = vpop.f32.mrf.mxu0
        %v3937 = vadd.f32 %v3834, %v3936
        %v3938 = vpop.f32.mrf.mxu0
        %3939 = vmatprep.mubr.f32.mxu0 0.0
        %v3940 = vand.u32 %v3531, 4294901760
        %v3941 = vsub.f32 %v3531, %v3940
        %v3942 = vand.u32 %v3941, 4294901760
        %3943 = vmatmul.mubr.f32.gmra.mxu0 %v3942
        %v3944 = vpop.f32.mrf.mxu0
        %v3945 = vadd.f32 %v3841, %v3944
        %v3946 = vpop.f32.mrf.mxu0
        %3947 = vmatprep.mubr.f32.mxu0 0.0
        %v3948 = vand.u32 %v3533, 4294901760
        %v3949 = vsub.f32 %v3533, %v3948
        %v3950 = vand.u32 %v3949, 4294901760
        %3951 = vmatmul.mubr.f32.gmra.mxu0 %v3950
        %v3952 = vpop.f32.mrf.mxu0
        %v3953 = vadd.f32 %v3848, %v3952
        %v3954 = vpop.f32.mrf.mxu0
        %3955 = vmatprep.mubr.f32.mxu0 0.0
        %v3956 = vand.u32 %v3535, 4294901760
        %v3957 = vsub.f32 %v3535, %v3956
        %v3958 = vand.u32 %v3957, 4294901760
        %3959 = vmatmul.mubr.f32.gmra.mxu0 %v3958
        %v3960 = vpop.f32.mrf.mxu0
        %v3961 = vadd.f32 %v3855, %v3960
        %v3962 = vpop.f32.mrf.mxu0
        %3963 = vmatprep.mubr.f32.mxu0 0.0
        %v3964 = vand.u32 %v3537, 4294901760
        %v3965 = vsub.f32 %v3537, %v3964
        %v3966 = vand.u32 %v3965, 4294901760
        %3967 = vmatmul.mubr.f32.gmra.mxu0 %v3966
        %v3968 = vpop.f32.mrf.mxu0
        %v3969 = vadd.f32 %v3862, %v3968
        %v3970 = vpop.f32.mrf.mxu0
        %3971 = vdwg.mxu0
        %3972 = vmatprep.subr.mxu0 0.0
        %3973 = vmatpush1.msra.mxu0 0.0
        %3974 = vmatprep.subr.mxu0 0.0
        %3975 = vmatpush1.msra.mxu0 0.0
        %3976 = vmatprep.subr.mxu0 0.0
        %3977 = vmatpush1.msra.mxu0 0.0
        %3978 = vmatprep.subr.mxu0 0.0
        %3979 = vmatpush1.msra.mxu0 0.0
        %3980 = vmatprep.subr.mxu0 0.0
        %3981 = vmatpush1.msra.mxu0 0.0
        %3982 = vmatprep.subr.mxu0 0.0
        %3983 = vmatpush1.msra.mxu0 0.0
        %3984 = vmatprep.subr.mxu0 0.0
        %3985 = vmatpush1.msra.mxu0 0.0
        %3986 = vmatprep.subr.mxu0 0.0
        %3987 = vmatpush1.msra.mxu0 0.0
        %3988 = vmatprep.subr.mxu0 0.0
        %3989 = vmatpush1.msra.mxu0 0.0
        %3990 = vmatprep.subr.mxu0 0.0
        %3991 = vmatpush1.msra.mxu0 0.0
        %3992 = vmatprep.subr.mxu0 0.0
        %3993 = vmatpush1.msra.mxu0 0.0
        %3994 = vmatprep.subr.mxu0 0.0
        %3995 = vmatpush1.msra.mxu0 0.0
        %3996 = vmatprep.subr.mxu0 0.0
        %3997 = vmatpush1.msra.mxu0 0.0
        %3998 = vmatprep.subr.mxu0 0.0
        %3999 = vmatpush1.msra.mxu0 0.0
        %4000 = vmatprep.subr.mxu0 0.0
        %v4001 = vand.u32 %v215, 4294901760
        %v4002 = vsub.f32 %v215, %v4001
        %v4003 = vand.u32 %v4002, 4294901760
        %4004 = vmatpush1.msra.mxu0 %v4003
        %4005 = vmatprep.subr.mxu0 0.0
        %v4006 = vand.u32 %v214, 4294901760
        %v4007 = vsub.f32 %v214, %v4006
        %v4008 = vand.u32 %v4007, 4294901760
        %4009 = vmatpush1.msra.mxu0 %v4008
        %4010 = vmatprep.subr.mxu0 0.0
        %4011 = vmatpush2.msra.mxu0 0.0
        %4012 = vmatprep.subr.mxu0 0.0
        %4013 = vmatpush2.msra.mxu0 0.0
        %4014 = vmatprep.subr.mxu0 0.0
        %4015 = vmatpush2.msra.mxu0 0.0
        %4016 = vmatprep.subr.mxu0 0.0
        %4017 = vmatpush2.msra.mxu0 0.0
        %4018 = vmatprep.subr.mxu0 0.0
        %4019 = vmatpush2.msra.mxu0 0.0
        %4020 = vmatprep.subr.mxu0 0.0
        %4021 = vmatpush2.msra.mxu0 0.0
        %4022 = vmatprep.subr.mxu0 0.0
        %4023 = vmatpush2.msra.mxu0 0.0
        %4024 = vmatprep.subr.mxu0 0.0
        %4025 = vmatpush2.msra.mxu0 0.0
        %4026 = vmatprep.subr.mxu0 0.0
        %4027 = vmatpush2.msra.mxu0 0.0
        %4028 = vmatprep.subr.mxu0 0.0
        %4029 = vmatpush2.msra.mxu0 0.0
        %4030 = vmatprep.subr.mxu0 0.0
        %4031 = vmatpush2.msra.mxu0 0.0
        %4032 = vmatprep.subr.mxu0 0.0
        %4033 = vmatpush2.msra.mxu0 0.0
        %4034 = vmatprep.subr.mxu0 0.0
        %4035 = vmatpush2.msra.mxu0 0.0
        %4036 = vmatprep.subr.mxu0 0.0
        %4037 = vmatpush2.msra.mxu0 0.0
        %4038 = vmatprep.subr.mxu0 0.0
        %4039 = vmatpush2.msra.mxu0 0.0
        %4040 = vmatprep.subr.mxu0 0.0
        %4041 = vmatpush2.msra.mxu0 0.0
        %4042 = vmatprep.mubr.f32.mxu0 0.0
        %v4043 = vand.u32 %v3529, 4294901760
        %4044 = vmatmul.mubr.f32.gmra.mxu0 %v4043
        %v4045 = vpop.f32.mrf.mxu0
        %v4046 = vadd.f32 %v3937, %v4045
        %v4047 = vpop.f32.mrf.mxu0
        %4048 = vmatprep.mubr.f32.mxu0 0.0
        %v4049 = vand.u32 %v3531, 4294901760
        %4050 = vmatmul.mubr.f32.gmra.mxu0 %v4049
        %v4051 = vpop.f32.mrf.mxu0
        %v4052 = vadd.f32 %v3945, %v4051
        %v4053 = vpop.f32.mrf.mxu0
        %4054 = vmatprep.mubr.f32.mxu0 0.0
        %v4055 = vand.u32 %v3533, 4294901760
        %4056 = vmatmul.mubr.f32.gmra.mxu0 %v4055
        %v4057 = vpop.f32.mrf.mxu0
        %v4058 = vadd.f32 %v3953, %v4057
        %v4059 = vpop.f32.mrf.mxu0
        %4060 = vmatprep.mubr.f32.mxu0 0.0
        %v4061 = vand.u32 %v3535, 4294901760
        %4062 = vmatmul.mubr.f32.gmra.mxu0 %v4061
        %v4063 = vpop.f32.mrf.mxu0
        %v4064 = vadd.f32 %v3961, %v4063
        %v4065 = vpop.f32.mrf.mxu0
        %4066 = vmatprep.mubr.f32.mxu0 0.0
        %v4067 = vand.u32 %v3537, 4294901760
        %4068 = vmatmul.mubr.f32.gmra.mxu0 %v4067
        %v4069 = vpop.f32.mrf.mxu0
        %v4070 = vadd.f32 %v3969, %v4069
        %v4071 = vpop.f32.mrf.mxu0
        %4072 = vdwg.mxu0
        %4073 = vmatprep.subr.mxu0 0.0
        %4074 = vmatpush1.msra.mxu0 0.0
        %4075 = vmatprep.subr.mxu0 0.0
        %4076 = vmatpush1.msra.mxu0 0.0
        %4077 = vmatprep.subr.mxu0 0.0
        %4078 = vmatpush1.msra.mxu0 0.0
        %4079 = vmatprep.subr.mxu0 0.0
        %4080 = vmatpush1.msra.mxu0 0.0
        %4081 = vmatprep.subr.mxu0 0.0
        %4082 = vmatpush1.msra.mxu0 0.0
        %4083 = vmatprep.subr.mxu0 0.0
        %4084 = vmatpush1.msra.mxu0 0.0
        %4085 = vmatprep.subr.mxu0 0.0
        %4086 = vmatpush1.msra.mxu0 0.0
        %4087 = vmatprep.subr.mxu0 0.0
        %4088 = vmatpush1.msra.mxu0 0.0
        %4089 = vmatprep.subr.mxu0 0.0
        %4090 = vmatpush1.msra.mxu0 0.0
        %4091 = vmatprep.subr.mxu0 0.0
        %4092 = vmatpush1.msra.mxu0 0.0
        %4093 = vmatprep.subr.mxu0 0.0
        %4094 = vmatpush1.msra.mxu0 0.0
        %4095 = vmatprep.subr.mxu0 0.0
        %4096 = vmatpush1.msra.mxu0 0.0
        %4097 = vmatprep.subr.mxu0 0.0
        %4098 = vmatpush1.msra.mxu0 0.0
        %4099 = vmatprep.subr.mxu0 0.0
        %4100 = vmatpush1.msra.mxu0 0.0
        %4101 = vmatprep.subr.mxu0 0.0
        %v4102 = vand.u32 %v215, 4294901760
        %4103 = vmatpush1.msra.mxu0 %v4102
        %4104 = vmatprep.subr.mxu0 0.0
        %v4105 = vand.u32 %v214, 4294901760
        %4106 = vmatpush1.msra.mxu0 %v4105
        %4107 = vmatprep.subr.mxu0 0.0
        %4108 = vmatpush2.msra.mxu0 0.0
        %4109 = vmatprep.subr.mxu0 0.0
        %4110 = vmatpush2.msra.mxu0 0.0
        %4111 = vmatprep.subr.mxu0 0.0
        %4112 = vmatpush2.msra.mxu0 0.0
        %4113 = vmatprep.subr.mxu0 0.0
        %4114 = vmatpush2.msra.mxu0 0.0
        %4115 = vmatprep.subr.mxu0 0.0
        %4116 = vmatpush2.msra.mxu0 0.0
        %4117 = vmatprep.subr.mxu0 0.0
        %4118 = vmatpush2.msra.mxu0 0.0
        %4119 = vmatprep.subr.mxu0 0.0
        %4120 = vmatpush2.msra.mxu0 0.0
        %4121 = vmatprep.subr.mxu0 0.0
        %4122 = vmatpush2.msra.mxu0 0.0
        %4123 = vmatprep.subr.mxu0 0.0
        %4124 = vmatpush2.msra.mxu0 0.0
        %4125 = vmatprep.subr.mxu0 0.0
        %4126 = vmatpush2.msra.mxu0 0.0
        %4127 = vmatprep.subr.mxu0 0.0
        %4128 = vmatpush2.msra.mxu0 0.0
        %4129 = vmatprep.subr.mxu0 0.0
        %4130 = vmatpush2.msra.mxu0 0.0
        %4131 = vmatprep.subr.mxu0 0.0
        %4132 = vmatpush2.msra.mxu0 0.0
        %4133 = vmatprep.subr.mxu0 0.0
        %4134 = vmatpush2.msra.mxu0 0.0
        %4135 = vmatprep.subr.mxu0 0.0
        %4136 = vmatpush2.msra.mxu0 0.0
        %4137 = vmatprep.subr.mxu0 0.0
        %4138 = vmatpush2.msra.mxu0 0.0
        %4139 = vmatprep.mubr.f32.mxu0 0.0
        %v4140 = vand.u32 %v3529, 4294901760
        %4141 = vmatmul.mubr.f32.gmra.mxu0 %v4140
        %v4142 = vpop.f32.mrf.mxu0
        %v4143 = vadd.f32 %v4046, %v4142
        %v4144 = vpop.f32.mrf.mxu0
        %4145 = vmatprep.mubr.f32.mxu0 0.0
        %v4146 = vand.u32 %v3531, 4294901760
        %4147 = vmatmul.mubr.f32.gmra.mxu0 %v4146
        %v4148 = vpop.f32.mrf.mxu0
        %v4149 = vadd.f32 %v4052, %v4148
        %v4150 = vpop.f32.mrf.mxu0
        %4151 = vmatprep.mubr.f32.mxu0 0.0
        %v4152 = vand.u32 %v3533, 4294901760
        %4153 = vmatmul.mubr.f32.gmra.mxu0 %v4152
        %v4154 = vpop.f32.mrf.mxu0
        %v4155 = vadd.f32 %v4058, %v4154
        %v4156 = vpop.f32.mrf.mxu0
        %4157 = vmatprep.mubr.f32.mxu0 0.0
        %v4158 = vand.u32 %v3535, 4294901760
        %4159 = vmatmul.mubr.f32.gmra.mxu0 %v4158
        %v4160 = vpop.f32.mrf.mxu0
        %v4161 = vadd.f32 %v4064, %v4160
        %v4162 = vpop.f32.mrf.mxu0
        %4163 = vmatprep.mubr.f32.mxu0 0.0
        %v4164 = vand.u32 %v3537, 4294901760
        %4165 = vmatmul.mubr.f32.gmra.mxu0 %v4164
        %v4166 = vpop.f32.mrf.mxu0
        %v4167 = vadd.f32 %v4070, %v4166
        %v4168 = vpop.f32.mrf.mxu0
        %4169 = vdwg.mxu0
        %4170 = vrot.lane.b32.xlu0 %v1319, 112
        %v4171 = vpop.permute.xlu0 %4170
        %v4172 = vsel %vm1320, %v4171, 0
        %4174 = vmatprep.subr.mxu0 0.0
        %4175 = vmatpush1.msra.mxu0 0.0
        %4176 = vmatprep.subr.mxu0 0.0
        %4177 = vmatpush1.msra.mxu0 0.0
        %4178 = vmatprep.subr.mxu0 0.0
        %4179 = vmatpush1.msra.mxu0 0.0
        %4180 = vmatprep.subr.mxu0 0.0
        %4181 = vmatpush1.msra.mxu0 0.0
        %4182 = vmatprep.subr.mxu0 0.0
        %4183 = vmatpush1.msra.mxu0 0.0
        %4184 = vmatprep.subr.mxu0 0.0
        %4185 = vmatpush1.msra.mxu0 0.0
        %4186 = vmatprep.subr.mxu0 0.0
        %4187 = vmatpush1.msra.mxu0 0.0
        %4188 = vmatprep.subr.mxu0 0.0
        %4189 = vmatpush1.msra.mxu0 0.0
        %4190 = vmatprep.subr.mxu0 0.0
        %4191 = vmatpush1.msra.mxu0 0.0
        %4192 = vmatprep.subr.mxu0 0.0
        %4193 = vmatpush1.msra.mxu0 0.0
        %4194 = vmatprep.subr.mxu0 0.0
        %4195 = vmatpush1.msra.mxu0 0.0
        %4196 = vmatprep.subr.mxu0 0.0
        %4197 = vmatpush1.msra.mxu0 0.0
        %4198 = vmatprep.subr.mxu0 0.0
        %4199 = vmatpush1.msra.mxu0 0.0
        %4200 = vmatprep.subr.mxu0 0.0
        %4201 = vmatpush1.msra.mxu0 0.0
        %4202 = vmatprep.subr.mxu0 0.0
        %v4203 = vand.u32 %v215, 4294901760
        %4204 = vmatpush1.msra.mxu0 %v4203
        %4205 = vmatprep.subr.mxu0 0.0
        %v4206 = vand.u32 %v214, 4294901760
        %4207 = vmatpush1.msra.mxu0 %v4206
        %4208 = vmatprep.subr.mxu0 0.0
        %4209 = vmatpush2.msra.mxu0 0.0
        %4210 = vmatprep.subr.mxu0 0.0
        %4211 = vmatpush2.msra.mxu0 0.0
        %4212 = vmatprep.subr.mxu0 0.0
        %4213 = vmatpush2.msra.mxu0 0.0
        %4214 = vmatprep.subr.mxu0 0.0
        %4215 = vmatpush2.msra.mxu0 0.0
        %4216 = vmatprep.subr.mxu0 0.0
        %4217 = vmatpush2.msra.mxu0 0.0
        %4218 = vmatprep.subr.mxu0 0.0
        %4219 = vmatpush2.msra.mxu0 0.0
        %4220 = vmatprep.subr.mxu0 0.0
        %4221 = vmatpush2.msra.mxu0 0.0
        %4222 = vmatprep.subr.mxu0 0.0
        %4223 = vmatpush2.msra.mxu0 0.0
        %4224 = vmatprep.subr.mxu0 0.0
        %4225 = vmatpush2.msra.mxu0 0.0
        %4226 = vmatprep.subr.mxu0 0.0
        %4227 = vmatpush2.msra.mxu0 0.0
        %4228 = vmatprep.subr.mxu0 0.0
        %4229 = vmatpush2.msra.mxu0 0.0
        %4230 = vmatprep.subr.mxu0 0.0
        %4231 = vmatpush2.msra.mxu0 0.0
        %4232 = vmatprep.subr.mxu0 0.0
        %4233 = vmatpush2.msra.mxu0 0.0
        %4234 = vmatprep.subr.mxu0 0.0
        %4235 = vmatpush2.msra.mxu0 0.0
        %4236 = vmatprep.subr.mxu0 0.0
        %4237 = vmatpush2.msra.mxu0 0.0
        %4238 = vmatprep.subr.mxu0 0.0
        %4239 = vmatpush2.msra.mxu0 0.0
        %4240 = vmatprep.mubr.f32.mxu0 0.0
        %v4241 = vand.u32 %v4172, 4294901760
        %v4242 = vsub.f32 %v4172, %v4241
        %v4243 = vand.u32 %v4242, 4294901760
        %v4244 = vsub.f32 %v4242, %v4243
        %v4245 = vand.u32 %v4244, 4294901760
        %4246 = vmatmul.mubr.f32.gmra.mxu0 %v4245
        %v4247 = vpop.f32.mrf.mxu0
        %v4248 = vadd.f32 0.0, %v4247
        %v4249 = vpop.f32.mrf.mxu0
        %4250 = vdwg.mxu0
        %4251 = vmatprep.subr.mxu0 0.0
        %4252 = vmatpush1.msra.mxu0 0.0
        %4253 = vmatprep.subr.mxu0 0.0
        %4254 = vmatpush1.msra.mxu0 0.0
        %4255 = vmatprep.subr.mxu0 0.0
        %4256 = vmatpush1.msra.mxu0 0.0
        %4257 = vmatprep.subr.mxu0 0.0
        %4258 = vmatpush1.msra.mxu0 0.0
        %4259 = vmatprep.subr.mxu0 0.0
        %4260 = vmatpush1.msra.mxu0 0.0
        %4261 = vmatprep.subr.mxu0 0.0
        %4262 = vmatpush1.msra.mxu0 0.0
        %4263 = vmatprep.subr.mxu0 0.0
        %4264 = vmatpush1.msra.mxu0 0.0
        %4265 = vmatprep.subr.mxu0 0.0
        %4266 = vmatpush1.msra.mxu0 0.0
        %4267 = vmatprep.subr.mxu0 0.0
        %4268 = vmatpush1.msra.mxu0 0.0
        %4269 = vmatprep.subr.mxu0 0.0
        %4270 = vmatpush1.msra.mxu0 0.0
        %4271 = vmatprep.subr.mxu0 0.0
        %4272 = vmatpush1.msra.mxu0 0.0
        %4273 = vmatprep.subr.mxu0 0.0
        %4274 = vmatpush1.msra.mxu0 0.0
        %4275 = vmatprep.subr.mxu0 0.0
        %4276 = vmatpush1.msra.mxu0 0.0
        %4277 = vmatprep.subr.mxu0 0.0
        %4278 = vmatpush1.msra.mxu0 0.0
        %4279 = vmatprep.subr.mxu0 0.0
        %v4280 = vand.u32 %v215, 4294901760
        %v4281 = vsub.f32 %v215, %v4280
        %v4282 = vand.u32 %v4281, 4294901760
        %v4283 = vsub.f32 %v4281, %v4282
        %v4284 = vand.u32 %v4283, 4294901760
        %4285 = vmatpush1.msra.mxu0 %v4284
        %4286 = vmatprep.subr.mxu0 0.0
        %v4287 = vand.u32 %v214, 4294901760
        %v4288 = vsub.f32 %v214, %v4287
        %v4289 = vand.u32 %v4288, 4294901760
        %v4290 = vsub.f32 %v4288, %v4289
        %v4291 = vand.u32 %v4290, 4294901760
        %4292 = vmatpush1.msra.mxu0 %v4291
        %4293 = vmatprep.subr.mxu0 0.0
        %4294 = vmatpush2.msra.mxu0 0.0
        %4295 = vmatprep.subr.mxu0 0.0
        %4296 = vmatpush2.msra.mxu0 0.0
        %4297 = vmatprep.subr.mxu0 0.0
        %4298 = vmatpush2.msra.mxu0 0.0
        %4299 = vmatprep.subr.mxu0 0.0
        %4300 = vmatpush2.msra.mxu0 0.0
        %4301 = vmatprep.subr.mxu0 0.0
        %4302 = vmatpush2.msra.mxu0 0.0
        %4303 = vmatprep.subr.mxu0 0.0
        %4304 = vmatpush2.msra.mxu0 0.0
        %4305 = vmatprep.subr.mxu0 0.0
        %4306 = vmatpush2.msra.mxu0 0.0
        %4307 = vmatprep.subr.mxu0 0.0
        %4308 = vmatpush2.msra.mxu0 0.0
        %4309 = vmatprep.subr.mxu0 0.0
        %4310 = vmatpush2.msra.mxu0 0.0
        %4311 = vmatprep.subr.mxu0 0.0
        %4312 = vmatpush2.msra.mxu0 0.0
        %4313 = vmatprep.subr.mxu0 0.0
        %4314 = vmatpush2.msra.mxu0 0.0
        %4315 = vmatprep.subr.mxu0 0.0
        %4316 = vmatpush2.msra.mxu0 0.0
        %4317 = vmatprep.subr.mxu0 0.0
        %4318 = vmatpush2.msra.mxu0 0.0
        %4319 = vmatprep.subr.mxu0 0.0
        %4320 = vmatpush2.msra.mxu0 0.0
        %4321 = vmatprep.subr.mxu0 0.0
        %4322 = vmatpush2.msra.mxu0 0.0
        %4323 = vmatprep.subr.mxu0 0.0
        %4324 = vmatpush2.msra.mxu0 0.0
        %4325 = vmatprep.mubr.f32.mxu0 0.0
        %v4326 = vand.u32 %v4172, 4294901760
        %4327 = vmatmul.mubr.f32.gmra.mxu0 %v4326
        %v4328 = vpop.f32.mrf.mxu0
        %v4329 = vadd.f32 %v4248, %v4328
        %v4330 = vpop.f32.mrf.mxu0
        %4331 = vdwg.mxu0
        %4332 = vmatprep.subr.mxu0 0.0
        %4333 = vmatpush1.msra.mxu0 0.0
        %4334 = vmatprep.subr.mxu0 0.0
        %4335 = vmatpush1.msra.mxu0 0.0
        %4336 = vmatprep.subr.mxu0 0.0
        %4337 = vmatpush1.msra.mxu0 0.0
        %4338 = vmatprep.subr.mxu0 0.0
        %4339 = vmatpush1.msra.mxu0 0.0
        %4340 = vmatprep.subr.mxu0 0.0
        %4341 = vmatpush1.msra.mxu0 0.0
        %4342 = vmatprep.subr.mxu0 0.0
        %4343 = vmatpush1.msra.mxu0 0.0
        %4344 = vmatprep.subr.mxu0 0.0
        %4345 = vmatpush1.msra.mxu0 0.0
        %4346 = vmatprep.subr.mxu0 0.0
        %4347 = vmatpush1.msra.mxu0 0.0
        %4348 = vmatprep.subr.mxu0 0.0
        %4349 = vmatpush1.msra.mxu0 0.0
        %4350 = vmatprep.subr.mxu0 0.0
        %4351 = vmatpush1.msra.mxu0 0.0
        %4352 = vmatprep.subr.mxu0 0.0
        %4353 = vmatpush1.msra.mxu0 0.0
        %4354 = vmatprep.subr.mxu0 0.0
        %4355 = vmatpush1.msra.mxu0 0.0
        %4356 = vmatprep.subr.mxu0 0.0
        %4357 = vmatpush1.msra.mxu0 0.0
        %4358 = vmatprep.subr.mxu0 0.0
        %4359 = vmatpush1.msra.mxu0 0.0
        %4360 = vmatprep.subr.mxu0 0.0
        %v4361 = vand.u32 %v215, 4294901760
        %v4362 = vsub.f32 %v215, %v4361
        %4363 = vmatpush1.msra.mxu0 %v4362
        %4364 = vmatprep.subr.mxu0 0.0
        %v4365 = vand.u32 %v214, 4294901760
        %v4366 = vsub.f32 %v214, %v4365
        %4367 = vmatpush1.msra.mxu0 %v4366
        %4368 = vmatprep.subr.mxu0 0.0
        %4369 = vmatpush2.msra.mxu0 0.0
        %4370 = vmatprep.subr.mxu0 0.0
        %4371 = vmatpush2.msra.mxu0 0.0
        %4372 = vmatprep.subr.mxu0 0.0
        %4373 = vmatpush2.msra.mxu0 0.0
        %4374 = vmatprep.subr.mxu0 0.0
        %4375 = vmatpush2.msra.mxu0 0.0
        %4376 = vmatprep.subr.mxu0 0.0
        %4377 = vmatpush2.msra.mxu0 0.0
        %4378 = vmatprep.subr.mxu0 0.0
        %4379 = vmatpush2.msra.mxu0 0.0
        %4380 = vmatprep.subr.mxu0 0.0
        %4381 = vmatpush2.msra.mxu0 0.0
        %4382 = vmatprep.subr.mxu0 0.0
        %4383 = vmatpush2.msra.mxu0 0.0
        %4384 = vmatprep.subr.mxu0 0.0
        %4385 = vmatpush2.msra.mxu0 0.0
        %4386 = vmatprep.subr.mxu0 0.0
        %4387 = vmatpush2.msra.mxu0 0.0
        %4388 = vmatprep.subr.mxu0 0.0
        %4389 = vmatpush2.msra.mxu0 0.0
        %4390 = vmatprep.subr.mxu0 0.0
        %4391 = vmatpush2.msra.mxu0 0.0
        %4392 = vmatprep.subr.mxu0 0.0
        %4393 = vmatpush2.msra.mxu0 0.0
        %4394 = vmatprep.subr.mxu0 0.0
        %4395 = vmatpush2.msra.mxu0 0.0
        %4396 = vmatprep.subr.mxu0 0.0
        %4397 = vmatpush2.msra.mxu0 0.0
        %4398 = vmatprep.subr.mxu0 0.0
        %4399 = vmatpush2.msra.mxu0 0.0
        %4400 = vmatprep.mubr.f32.mxu0 0.0
        %v4401 = vand.u32 %v4172, 4294901760
        %v4402 = vsub.f32 %v4172, %v4401
        %4403 = vmatmul.mubr.f32.gmra.mxu0 %v4402
        %v4404 = vpop.f32.mrf.mxu0
        %v4405 = vadd.f32 %v4329, %v4404
        %v4406 = vpop.f32.mrf.mxu0
        %4407 = vdwg.mxu0
        %4408 = vmatprep.subr.mxu0 0.0
        %4409 = vmatpush1.msra.mxu0 0.0
        %4410 = vmatprep.subr.mxu0 0.0
        %4411 = vmatpush1.msra.mxu0 0.0
        %4412 = vmatprep.subr.mxu0 0.0
        %4413 = vmatpush1.msra.mxu0 0.0
        %4414 = vmatprep.subr.mxu0 0.0
        %4415 = vmatpush1.msra.mxu0 0.0
        %4416 = vmatprep.subr.mxu0 0.0
        %4417 = vmatpush1.msra.mxu0 0.0
        %4418 = vmatprep.subr.mxu0 0.0
        %4419 = vmatpush1.msra.mxu0 0.0
        %4420 = vmatprep.subr.mxu0 0.0
        %4421 = vmatpush1.msra.mxu0 0.0
        %4422 = vmatprep.subr.mxu0 0.0
        %4423 = vmatpush1.msra.mxu0 0.0
        %4424 = vmatprep.subr.mxu0 0.0
        %4425 = vmatpush1.msra.mxu0 0.0
        %4426 = vmatprep.subr.mxu0 0.0
        %4427 = vmatpush1.msra.mxu0 0.0
        %4428 = vmatprep.subr.mxu0 0.0
        %4429 = vmatpush1.msra.mxu0 0.0
        %4430 = vmatprep.subr.mxu0 0.0
        %4431 = vmatpush1.msra.mxu0 0.0
        %4432 = vmatprep.subr.mxu0 0.0
        %4433 = vmatpush1.msra.mxu0 0.0
        %4434 = vmatprep.subr.mxu0 0.0
        %4435 = vmatpush1.msra.mxu0 0.0
        %4436 = vmatprep.subr.mxu0 0.0
        %v4437 = vand.u32 %v215, 4294901760
        %4438 = vmatpush1.msra.mxu0 %v4437
        %4439 = vmatprep.subr.mxu0 0.0
        %v4440 = vand.u32 %v214, 4294901760
        %4441 = vmatpush1.msra.mxu0 %v4440
        %4442 = vmatprep.subr.mxu0 0.0
        %4443 = vmatpush2.msra.mxu0 0.0
        %4444 = vmatprep.subr.mxu0 0.0
        %4445 = vmatpush2.msra.mxu0 0.0
        %4446 = vmatprep.subr.mxu0 0.0
        %4447 = vmatpush2.msra.mxu0 0.0
        %4448 = vmatprep.subr.mxu0 0.0
        %4449 = vmatpush2.msra.mxu0 0.0
        %4450 = vmatprep.subr.mxu0 0.0
        %4451 = vmatpush2.msra.mxu0 0.0
        %4452 = vmatprep.subr.mxu0 0.0
        %4453 = vmatpush2.msra.mxu0 0.0
        %4454 = vmatprep.subr.mxu0 0.0
        %4455 = vmatpush2.msra.mxu0 0.0
        %4456 = vmatprep.subr.mxu0 0.0
        %4457 = vmatpush2.msra.mxu0 0.0
        %4458 = vmatprep.subr.mxu0 0.0
        %4459 = vmatpush2.msra.mxu0 0.0
        %4460 = vmatprep.subr.mxu0 0.0
        %4461 = vmatpush2.msra.mxu0 0.0
        %4462 = vmatprep.subr.mxu0 0.0
        %4463 = vmatpush2.msra.mxu0 0.0
        %4464 = vmatprep.subr.mxu0 0.0
        %4465 = vmatpush2.msra.mxu0 0.0
        %4466 = vmatprep.subr.mxu0 0.0
        %4467 = vmatpush2.msra.mxu0 0.0
        %4468 = vmatprep.subr.mxu0 0.0
        %4469 = vmatpush2.msra.mxu0 0.0
        %4470 = vmatprep.subr.mxu0 0.0
        %4471 = vmatpush2.msra.mxu0 0.0
        %4472 = vmatprep.subr.mxu0 0.0
        %4473 = vmatpush2.msra.mxu0 0.0
        %4474 = vmatprep.mubr.f32.mxu0 0.0
        %v4475 = vand.u32 %v4172, 4294901760
        %v4476 = vsub.f32 %v4172, %v4475
        %v4477 = vand.u32 %v4476, 4294901760
        %4478 = vmatmul.mubr.f32.gmra.mxu0 %v4477
        %v4479 = vpop.f32.mrf.mxu0
        %v4480 = vadd.f32 %v4405, %v4479
        %v4481 = vpop.f32.mrf.mxu0
        %4482 = vdwg.mxu0
        %4483 = vmatprep.subr.mxu0 0.0
        %4484 = vmatpush1.msra.mxu0 0.0
        %4485 = vmatprep.subr.mxu0 0.0
        %4486 = vmatpush1.msra.mxu0 0.0
        %4487 = vmatprep.subr.mxu0 0.0
        %4488 = vmatpush1.msra.mxu0 0.0
        %4489 = vmatprep.subr.mxu0 0.0
        %4490 = vmatpush1.msra.mxu0 0.0
        %4491 = vmatprep.subr.mxu0 0.0
        %4492 = vmatpush1.msra.mxu0 0.0
        %4493 = vmatprep.subr.mxu0 0.0
        %4494 = vmatpush1.msra.mxu0 0.0
        %4495 = vmatprep.subr.mxu0 0.0
        %4496 = vmatpush1.msra.mxu0 0.0
        %4497 = vmatprep.subr.mxu0 0.0
        %4498 = vmatpush1.msra.mxu0 0.0
        %4499 = vmatprep.subr.mxu0 0.0
        %4500 = vmatpush1.msra.mxu0 0.0
        %4501 = vmatprep.subr.mxu0 0.0
        %4502 = vmatpush1.msra.mxu0 0.0
        %4503 = vmatprep.subr.mxu0 0.0
        %4504 = vmatpush1.msra.mxu0 0.0
        %4505 = vmatprep.subr.mxu0 0.0
        %4506 = vmatpush1.msra.mxu0 0.0
        %4507 = vmatprep.subr.mxu0 0.0
        %4508 = vmatpush1.msra.mxu0 0.0
        %4509 = vmatprep.subr.mxu0 0.0
        %4510 = vmatpush1.msra.mxu0 0.0
        %4511 = vmatprep.subr.mxu0 0.0
        %v4512 = vand.u32 %v215, 4294901760
        %v4513 = vsub.f32 %v215, %v4512
        %v4514 = vand.u32 %v4513, 4294901760
        %4515 = vmatpush1.msra.mxu0 %v4514
        %4516 = vmatprep.subr.mxu0 0.0
        %v4517 = vand.u32 %v214, 4294901760
        %v4518 = vsub.f32 %v214, %v4517
        %v4519 = vand.u32 %v4518, 4294901760
        %4520 = vmatpush1.msra.mxu0 %v4519
        %4521 = vmatprep.subr.mxu0 0.0
        %4522 = vmatpush2.msra.mxu0 0.0
        %4523 = vmatprep.subr.mxu0 0.0
        %4524 = vmatpush2.msra.mxu0 0.0
        %4525 = vmatprep.subr.mxu0 0.0
        %4526 = vmatpush2.msra.mxu0 0.0
        %4527 = vmatprep.subr.mxu0 0.0
        %4528 = vmatpush2.msra.mxu0 0.0
        %4529 = vmatprep.subr.mxu0 0.0
        %4530 = vmatpush2.msra.mxu0 0.0
        %4531 = vmatprep.subr.mxu0 0.0
        %4532 = vmatpush2.msra.mxu0 0.0
        %4533 = vmatprep.subr.mxu0 0.0
        %4534 = vmatpush2.msra.mxu0 0.0
        %4535 = vmatprep.subr.mxu0 0.0
        %4536 = vmatpush2.msra.mxu0 0.0
        %4537 = vmatprep.subr.mxu0 0.0
        %4538 = vmatpush2.msra.mxu0 0.0
        %4539 = vmatprep.subr.mxu0 0.0
        %4540 = vmatpush2.msra.mxu0 0.0
        %4541 = vmatprep.subr.mxu0 0.0
        %4542 = vmatpush2.msra.mxu0 0.0
        %4543 = vmatprep.subr.mxu0 0.0
        %4544 = vmatpush2.msra.mxu0 0.0
        %4545 = vmatprep.subr.mxu0 0.0
        %4546 = vmatpush2.msra.mxu0 0.0
        %4547 = vmatprep.subr.mxu0 0.0
        %4548 = vmatpush2.msra.mxu0 0.0
        %4549 = vmatprep.subr.mxu0 0.0
        %4550 = vmatpush2.msra.mxu0 0.0
        %4551 = vmatprep.subr.mxu0 0.0
        %4552 = vmatpush2.msra.mxu0 0.0
        %4553 = vmatprep.mubr.f32.mxu0 0.0
        %v4554 = vand.u32 %v4172, 4294901760
        %4555 = vmatmul.mubr.f32.gmra.mxu0 %v4554
        %v4556 = vpop.f32.mrf.mxu0
        %v4557 = vadd.f32 %v4480, %v4556
        %v4558 = vpop.f32.mrf.mxu0
        %4559 = vdwg.mxu0
        %4560 = vmatprep.subr.mxu0 0.0
        %4561 = vmatpush1.msra.mxu0 0.0
        %4562 = vmatprep.subr.mxu0 0.0
        %4563 = vmatpush1.msra.mxu0 0.0
        %4564 = vmatprep.subr.mxu0 0.0
        %4565 = vmatpush1.msra.mxu0 0.0
        %4566 = vmatprep.subr.mxu0 0.0
        %4567 = vmatpush1.msra.mxu0 0.0
        %4568 = vmatprep.subr.mxu0 0.0
        %4569 = vmatpush1.msra.mxu0 0.0
        %4570 = vmatprep.subr.mxu0 0.0
        %4571 = vmatpush1.msra.mxu0 0.0
        %4572 = vmatprep.subr.mxu0 0.0
        %4573 = vmatpush1.msra.mxu0 0.0
        %4574 = vmatprep.subr.mxu0 0.0
        %4575 = vmatpush1.msra.mxu0 0.0
        %4576 = vmatprep.subr.mxu0 0.0
        %4577 = vmatpush1.msra.mxu0 0.0
        %4578 = vmatprep.subr.mxu0 0.0
        %4579 = vmatpush1.msra.mxu0 0.0
        %4580 = vmatprep.subr.mxu0 0.0
        %4581 = vmatpush1.msra.mxu0 0.0
        %4582 = vmatprep.subr.mxu0 0.0
        %4583 = vmatpush1.msra.mxu0 0.0
        %4584 = vmatprep.subr.mxu0 0.0
        %4585 = vmatpush1.msra.mxu0 0.0
        %4586 = vmatprep.subr.mxu0 0.0
        %4587 = vmatpush1.msra.mxu0 0.0
        %4588 = vmatprep.subr.mxu0 0.0
        %v4589 = vand.u32 %v215, 4294901760
        %4590 = vmatpush1.msra.mxu0 %v4589
        %4591 = vmatprep.subr.mxu0 0.0
        %v4592 = vand.u32 %v214, 4294901760
        %4593 = vmatpush1.msra.mxu0 %v4592
        %4594 = vmatprep.subr.mxu0 0.0
        %4595 = vmatpush2.msra.mxu0 0.0
        %4596 = vmatprep.subr.mxu0 0.0
        %4597 = vmatpush2.msra.mxu0 0.0
        %4598 = vmatprep.subr.mxu0 0.0
        %4599 = vmatpush2.msra.mxu0 0.0
        %4600 = vmatprep.subr.mxu0 0.0
        %4601 = vmatpush2.msra.mxu0 0.0
        %4602 = vmatprep.subr.mxu0 0.0
        %4603 = vmatpush2.msra.mxu0 0.0
        %4604 = vmatprep.subr.mxu0 0.0
        %4605 = vmatpush2.msra.mxu0 0.0
        %4606 = vmatprep.subr.mxu0 0.0
        %4607 = vmatpush2.msra.mxu0 0.0
        %4608 = vmatprep.subr.mxu0 0.0
        %4609 = vmatpush2.msra.mxu0 0.0
        %4610 = vmatprep.subr.mxu0 0.0
        %4611 = vmatpush2.msra.mxu0 0.0
        %4612 = vmatprep.subr.mxu0 0.0
        %4613 = vmatpush2.msra.mxu0 0.0
        %4614 = vmatprep.subr.mxu0 0.0
        %4615 = vmatpush2.msra.mxu0 0.0
        %4616 = vmatprep.subr.mxu0 0.0
        %4617 = vmatpush2.msra.mxu0 0.0
        %4618 = vmatprep.subr.mxu0 0.0
        %4619 = vmatpush2.msra.mxu0 0.0
        %4620 = vmatprep.subr.mxu0 0.0
        %4621 = vmatpush2.msra.mxu0 0.0
        %4622 = vmatprep.subr.mxu0 0.0
        %4623 = vmatpush2.msra.mxu0 0.0
        %4624 = vmatprep.subr.mxu0 0.0
        %4625 = vmatpush2.msra.mxu0 0.0
        %4626 = vmatprep.mubr.f32.mxu0 0.0
        %v4627 = vand.u32 %v4172, 4294901760
        %4628 = vmatmul.mubr.f32.gmra.mxu0 %v4627
        %v4629 = vpop.f32.mrf.mxu0
        %v4630 = vadd.f32 %v4557, %v4629
        %v4631 = vpop.f32.mrf.mxu0
        %4632 = vdwg.mxu0
        %4633 = vmatprep.subr.mxu0 0.0
        %4634 = vmatpush1.msra.mxu0 0.0
        %4635 = vmatprep.subr.mxu0 0.0
        %4636 = vmatpush1.msra.mxu0 0.0
        %4637 = vmatprep.subr.mxu0 0.0
        %4638 = vmatpush1.msra.mxu0 0.0
        %4639 = vmatprep.subr.mxu0 0.0
        %4640 = vmatpush1.msra.mxu0 0.0
        %4641 = vmatprep.subr.mxu0 0.0
        %4642 = vmatpush1.msra.mxu0 0.0
        %4643 = vmatprep.subr.mxu0 0.0
        %4644 = vmatpush1.msra.mxu0 0.0
        %4645 = vmatprep.subr.mxu0 0.0
        %4646 = vmatpush1.msra.mxu0 0.0
        %4647 = vmatprep.subr.mxu0 0.0
        %4648 = vmatpush1.msra.mxu0 0.0
        %4649 = vmatprep.subr.mxu0 0.0
        %4650 = vmatpush1.msra.mxu0 0.0
        %4651 = vmatprep.subr.mxu0 0.0
        %4652 = vmatpush1.msra.mxu0 0.0
        %4653 = vmatprep.subr.mxu0 0.0
        %4654 = vmatpush1.msra.mxu0 0.0
        %4655 = vmatprep.subr.mxu0 0.0
        %4656 = vmatpush1.msra.mxu0 0.0
        %4657 = vmatprep.subr.mxu0 0.0
        %4658 = vmatpush1.msra.mxu0 0.0
        %4659 = vmatprep.subr.mxu0 0.0
        %4660 = vmatpush1.msra.mxu0 0.0
        %4661 = vmatprep.subr.mxu0 0.0
        %v4662 = vand.u32 %v217, 4294901760
        %4663 = vmatpush1.msra.mxu0 %v4662
        %4664 = vmatprep.subr.mxu0 0.0
        %v4665 = vand.u32 %v216, 4294901760
        %4666 = vmatpush1.msra.mxu0 %v4665
        %4667 = vmatprep.subr.mxu0 0.0
        %4668 = vmatpush2.msra.mxu0 0.0
        %4669 = vmatprep.subr.mxu0 0.0
        %4670 = vmatpush2.msra.mxu0 0.0
        %4671 = vmatprep.subr.mxu0 0.0
        %4672 = vmatpush2.msra.mxu0 0.0
        %4673 = vmatprep.subr.mxu0 0.0
        %4674 = vmatpush2.msra.mxu0 0.0
        %4675 = vmatprep.subr.mxu0 0.0
        %4676 = vmatpush2.msra.mxu0 0.0
        %4677 = vmatprep.subr.mxu0 0.0
        %4678 = vmatpush2.msra.mxu0 0.0
        %4679 = vmatprep.subr.mxu0 0.0
        %4680 = vmatpush2.msra.mxu0 0.0
        %4681 = vmatprep.subr.mxu0 0.0
        %4682 = vmatpush2.msra.mxu0 0.0
        %4683 = vmatprep.subr.mxu0 0.0
        %4684 = vmatpush2.msra.mxu0 0.0
        %4685 = vmatprep.subr.mxu0 0.0
        %4686 = vmatpush2.msra.mxu0 0.0
        %4687 = vmatprep.subr.mxu0 0.0
        %4688 = vmatpush2.msra.mxu0 0.0
        %4689 = vmatprep.subr.mxu0 0.0
        %4690 = vmatpush2.msra.mxu0 0.0
        %4691 = vmatprep.subr.mxu0 0.0
        %4692 = vmatpush2.msra.mxu0 0.0
        %4693 = vmatprep.subr.mxu0 0.0
        %4694 = vmatpush2.msra.mxu0 0.0
        %4695 = vmatprep.subr.mxu0 0.0
        %4696 = vmatpush2.msra.mxu0 0.0
        %4697 = vmatprep.subr.mxu0 0.0
        %4698 = vmatpush2.msra.mxu0 0.0
        %4699 = vmatprep.mubr.f32.mxu0 0.0
        %v4700 = vand.u32 %v3529, 4294901760
        %v4701 = vsub.f32 %v3529, %v4700
        %v4702 = vand.u32 %v4701, 4294901760
        %v4703 = vsub.f32 %v4701, %v4702
        %v4704 = vand.u32 %v4703, 4294901760
        %4705 = vmatmul.mubr.f32.gmra.mxu0 %v4704
        %v4706 = vpop.f32.mrf.mxu0
        %v4707 = vadd.f32 0.0, %v4706
        %v4708 = vpop.f32.mrf.mxu0
        %4709 = vmatprep.mubr.f32.mxu0 0.0
        %v4710 = vand.u32 %v3531, 4294901760
        %v4711 = vsub.f32 %v3531, %v4710
        %v4712 = vand.u32 %v4711, 4294901760
        %v4713 = vsub.f32 %v4711, %v4712
        %v4714 = vand.u32 %v4713, 4294901760
        %4715 = vmatmul.mubr.f32.gmra.mxu0 %v4714
        %v4716 = vpop.f32.mrf.mxu0
        %v4717 = vadd.f32 0.0, %v4716
        %v4718 = vpop.f32.mrf.mxu0
        %4719 = vmatprep.mubr.f32.mxu0 0.0
        %v4720 = vand.u32 %v3533, 4294901760
        %v4721 = vsub.f32 %v3533, %v4720
        %v4722 = vand.u32 %v4721, 4294901760
        %v4723 = vsub.f32 %v4721, %v4722
        %v4724 = vand.u32 %v4723, 4294901760
        %4725 = vmatmul.mubr.f32.gmra.mxu0 %v4724
        %v4726 = vpop.f32.mrf.mxu0
        %v4727 = vadd.f32 0.0, %v4726
        %v4728 = vpop.f32.mrf.mxu0
        %4729 = vmatprep.mubr.f32.mxu0 0.0
        %v4730 = vand.u32 %v3535, 4294901760
        %v4731 = vsub.f32 %v3535, %v4730
        %v4732 = vand.u32 %v4731, 4294901760
        %v4733 = vsub.f32 %v4731, %v4732
        %v4734 = vand.u32 %v4733, 4294901760
        %4735 = vmatmul.mubr.f32.gmra.mxu0 %v4734
        %v4736 = vpop.f32.mrf.mxu0
        %v4737 = vadd.f32 0.0, %v4736
        %v4738 = vpop.f32.mrf.mxu0
        %4739 = vmatprep.mubr.f32.mxu0 0.0
        %v4740 = vand.u32 %v3537, 4294901760
        %v4741 = vsub.f32 %v3537, %v4740
        %v4742 = vand.u32 %v4741, 4294901760
        %v4743 = vsub.f32 %v4741, %v4742
        %v4744 = vand.u32 %v4743, 4294901760
        %4745 = vmatmul.mubr.f32.gmra.mxu0 %v4744
        %v4746 = vpop.f32.mrf.mxu0
        %v4747 = vadd.f32 0.0, %v4746
        %v4748 = vpop.f32.mrf.mxu0
        %4749 = vdwg.mxu0
        %4750 = vmatprep.subr.mxu0 0.0
        %4751 = vmatpush1.msra.mxu0 0.0
        %4752 = vmatprep.subr.mxu0 0.0
        %4753 = vmatpush1.msra.mxu0 0.0
        %4754 = vmatprep.subr.mxu0 0.0
        %4755 = vmatpush1.msra.mxu0 0.0
        %4756 = vmatprep.subr.mxu0 0.0
        %4757 = vmatpush1.msra.mxu0 0.0
        %4758 = vmatprep.subr.mxu0 0.0
        %4759 = vmatpush1.msra.mxu0 0.0
        %4760 = vmatprep.subr.mxu0 0.0
        %4761 = vmatpush1.msra.mxu0 0.0
        %4762 = vmatprep.subr.mxu0 0.0
        %4763 = vmatpush1.msra.mxu0 0.0
        %4764 = vmatprep.subr.mxu0 0.0
        %4765 = vmatpush1.msra.mxu0 0.0
        %4766 = vmatprep.subr.mxu0 0.0
        %4767 = vmatpush1.msra.mxu0 0.0
        %4768 = vmatprep.subr.mxu0 0.0
        %4769 = vmatpush1.msra.mxu0 0.0
        %4770 = vmatprep.subr.mxu0 0.0
        %4771 = vmatpush1.msra.mxu0 0.0
        %4772 = vmatprep.subr.mxu0 0.0
        %4773 = vmatpush1.msra.mxu0 0.0
        %4774 = vmatprep.subr.mxu0 0.0
        %4775 = vmatpush1.msra.mxu0 0.0
        %4776 = vmatprep.subr.mxu0 0.0
        %4777 = vmatpush1.msra.mxu0 0.0
        %4778 = vmatprep.subr.mxu0 0.0
        %v4779 = vand.u32 %v217, 4294901760
        %v4780 = vsub.f32 %v217, %v4779
        %v4781 = vand.u32 %v4780, 4294901760
        %v4782 = vsub.f32 %v4780, %v4781
        %v4783 = vand.u32 %v4782, 4294901760
        %4784 = vmatpush1.msra.mxu0 %v4783
        %4785 = vmatprep.subr.mxu0 0.0
        %v4786 = vand.u32 %v216, 4294901760
        %v4787 = vsub.f32 %v216, %v4786
        %v4788 = vand.u32 %v4787, 4294901760
        %v4789 = vsub.f32 %v4787, %v4788
        %v4790 = vand.u32 %v4789, 4294901760
        %4791 = vmatpush1.msra.mxu0 %v4790
        %4792 = vmatprep.subr.mxu0 0.0
        %4793 = vmatpush2.msra.mxu0 0.0
        %4794 = vmatprep.subr.mxu0 0.0
        %4795 = vmatpush2.msra.mxu0 0.0
        %4796 = vmatprep.subr.mxu0 0.0
        %4797 = vmatpush2.msra.mxu0 0.0
        %4798 = vmatprep.subr.mxu0 0.0
        %4799 = vmatpush2.msra.mxu0 0.0
        %4800 = vmatprep.subr.mxu0 0.0
        %4801 = vmatpush2.msra.mxu0 0.0
        %4802 = vmatprep.subr.mxu0 0.0
        %4803 = vmatpush2.msra.mxu0 0.0
        %4804 = vmatprep.subr.mxu0 0.0
        %4805 = vmatpush2.msra.mxu0 0.0
        %4806 = vmatprep.subr.mxu0 0.0
        %4807 = vmatpush2.msra.mxu0 0.0
        %4808 = vmatprep.subr.mxu0 0.0
        %4809 = vmatpush2.msra.mxu0 0.0
        %4810 = vmatprep.subr.mxu0 0.0
        %4811 = vmatpush2.msra.mxu0 0.0
        %4812 = vmatprep.subr.mxu0 0.0
        %4813 = vmatpush2.msra.mxu0 0.0
        %4814 = vmatprep.subr.mxu0 0.0
        %4815 = vmatpush2.msra.mxu0 0.0
        %4816 = vmatprep.subr.mxu0 0.0
        %4817 = vmatpush2.msra.mxu0 0.0
        %4818 = vmatprep.subr.mxu0 0.0
        %4819 = vmatpush2.msra.mxu0 0.0
        %4820 = vmatprep.subr.mxu0 0.0
        %4821 = vmatpush2.msra.mxu0 0.0
        %4822 = vmatprep.subr.mxu0 0.0
        %4823 = vmatpush2.msra.mxu0 0.0
        %4824 = vmatprep.mubr.f32.mxu0 0.0
        %v4825 = vand.u32 %v3529, 4294901760
        %4826 = vmatmul.mubr.f32.gmra.mxu0 %v4825
        %v4827 = vpop.f32.mrf.mxu0
        %v4828 = vadd.f32 %v4707, %v4827
        %v4829 = vpop.f32.mrf.mxu0
        %4830 = vmatprep.mubr.f32.mxu0 0.0
        %v4831 = vand.u32 %v3531, 4294901760
        %4832 = vmatmul.mubr.f32.gmra.mxu0 %v4831
        %v4833 = vpop.f32.mrf.mxu0
        %v4834 = vadd.f32 %v4717, %v4833
        %v4835 = vpop.f32.mrf.mxu0
        %4836 = vmatprep.mubr.f32.mxu0 0.0
        %v4837 = vand.u32 %v3533, 4294901760
        %4838 = vmatmul.mubr.f32.gmra.mxu0 %v4837
        %v4839 = vpop.f32.mrf.mxu0
        %v4840 = vadd.f32 %v4727, %v4839
        %v4841 = vpop.f32.mrf.mxu0
        %4842 = vmatprep.mubr.f32.mxu0 0.0
        %v4843 = vand.u32 %v3535, 4294901760
        %4844 = vmatmul.mubr.f32.gmra.mxu0 %v4843
        %v4845 = vpop.f32.mrf.mxu0
        %v4846 = vadd.f32 %v4737, %v4845
        %v4847 = vpop.f32.mrf.mxu0
        %4848 = vmatprep.mubr.f32.mxu0 0.0
        %v4849 = vand.u32 %v3537, 4294901760
        %4850 = vmatmul.mubr.f32.gmra.mxu0 %v4849
        %v4851 = vpop.f32.mrf.mxu0
        %v4852 = vadd.f32 %v4747, %v4851
        %v4853 = vpop.f32.mrf.mxu0
        %4854 = vdwg.mxu0
        %4855 = vmatprep.subr.mxu0 0.0
        %4856 = vmatpush1.msra.mxu0 0.0
        %4857 = vmatprep.subr.mxu0 0.0
        %4858 = vmatpush1.msra.mxu0 0.0
        %4859 = vmatprep.subr.mxu0 0.0
        %4860 = vmatpush1.msra.mxu0 0.0
        %4861 = vmatprep.subr.mxu0 0.0
        %4862 = vmatpush1.msra.mxu0 0.0
        %4863 = vmatprep.subr.mxu0 0.0
        %4864 = vmatpush1.msra.mxu0 0.0
        %4865 = vmatprep.subr.mxu0 0.0
        %4866 = vmatpush1.msra.mxu0 0.0
        %4867 = vmatprep.subr.mxu0 0.0
        %4868 = vmatpush1.msra.mxu0 0.0
        %4869 = vmatprep.subr.mxu0 0.0
        %4870 = vmatpush1.msra.mxu0 0.0
        %4871 = vmatprep.subr.mxu0 0.0
        %4872 = vmatpush1.msra.mxu0 0.0
        %4873 = vmatprep.subr.mxu0 0.0
        %4874 = vmatpush1.msra.mxu0 0.0
        %4875 = vmatprep.subr.mxu0 0.0
        %4876 = vmatpush1.msra.mxu0 0.0
        %4877 = vmatprep.subr.mxu0 0.0
        %4878 = vmatpush1.msra.mxu0 0.0
        %4879 = vmatprep.subr.mxu0 0.0
        %4880 = vmatpush1.msra.mxu0 0.0
        %4881 = vmatprep.subr.mxu0 0.0
        %4882 = vmatpush1.msra.mxu0 0.0
        %4883 = vmatprep.subr.mxu0 0.0
        %v4884 = vand.u32 %v217, 4294901760
        %v4885 = vsub.f32 %v217, %v4884
        %4886 = vmatpush1.msra.mxu0 %v4885
        %4887 = vmatprep.subr.mxu0 0.0
        %v4888 = vand.u32 %v216, 4294901760
        %v4889 = vsub.f32 %v216, %v4888
        %4890 = vmatpush1.msra.mxu0 %v4889
        %4891 = vmatprep.subr.mxu0 0.0
        %4892 = vmatpush2.msra.mxu0 0.0
        %4893 = vmatprep.subr.mxu0 0.0
        %4894 = vmatpush2.msra.mxu0 0.0
        %4895 = vmatprep.subr.mxu0 0.0
        %4896 = vmatpush2.msra.mxu0 0.0
        %4897 = vmatprep.subr.mxu0 0.0
        %4898 = vmatpush2.msra.mxu0 0.0
        %4899 = vmatprep.subr.mxu0 0.0
        %4900 = vmatpush2.msra.mxu0 0.0
        %4901 = vmatprep.subr.mxu0 0.0
        %4902 = vmatpush2.msra.mxu0 0.0
        %4903 = vmatprep.subr.mxu0 0.0
        %4904 = vmatpush2.msra.mxu0 0.0
        %4905 = vmatprep.subr.mxu0 0.0
        %4906 = vmatpush2.msra.mxu0 0.0
        %4907 = vmatprep.subr.mxu0 0.0
        %4908 = vmatpush2.msra.mxu0 0.0
        %4909 = vmatprep.subr.mxu0 0.0
        %4910 = vmatpush2.msra.mxu0 0.0
        %4911 = vmatprep.subr.mxu0 0.0
        %4912 = vmatpush2.msra.mxu0 0.0
        %4913 = vmatprep.subr.mxu0 0.0
        %4914 = vmatpush2.msra.mxu0 0.0
        %4915 = vmatprep.subr.mxu0 0.0
        %4916 = vmatpush2.msra.mxu0 0.0
        %4917 = vmatprep.subr.mxu0 0.0
        %4918 = vmatpush2.msra.mxu0 0.0
        %4919 = vmatprep.subr.mxu0 0.0
        %4920 = vmatpush2.msra.mxu0 0.0
        %4921 = vmatprep.subr.mxu0 0.0
        %4922 = vmatpush2.msra.mxu0 0.0
        %4923 = vmatprep.mubr.f32.mxu0 0.0
        %v4924 = vand.u32 %v3529, 4294901760
        %v4925 = vsub.f32 %v3529, %v4924
        %4926 = vmatmul.mubr.f32.gmra.mxu0 %v4925
        %v4927 = vpop.f32.mrf.mxu0
        %v4928 = vadd.f32 %v4828, %v4927
        %v4929 = vpop.f32.mrf.mxu0
        %4930 = vmatprep.mubr.f32.mxu0 0.0
        %v4931 = vand.u32 %v3531, 4294901760
        %v4932 = vsub.f32 %v3531, %v4931
        %4933 = vmatmul.mubr.f32.gmra.mxu0 %v4932
        %v4934 = vpop.f32.mrf.mxu0
        %v4935 = vadd.f32 %v4834, %v4934
        %v4936 = vpop.f32.mrf.mxu0
        %4937 = vmatprep.mubr.f32.mxu0 0.0
        %v4938 = vand.u32 %v3533, 4294901760
        %v4939 = vsub.f32 %v3533, %v4938
        %4940 = vmatmul.mubr.f32.gmra.mxu0 %v4939
        %v4941 = vpop.f32.mrf.mxu0
        %v4942 = vadd.f32 %v4840, %v4941
        %v4943 = vpop.f32.mrf.mxu0
        %4944 = vmatprep.mubr.f32.mxu0 0.0
        %v4945 = vand.u32 %v3535, 4294901760
        %v4946 = vsub.f32 %v3535, %v4945
        %4947 = vmatmul.mubr.f32.gmra.mxu0 %v4946
        %v4948 = vpop.f32.mrf.mxu0
        %v4949 = vadd.f32 %v4846, %v4948
        %v4950 = vpop.f32.mrf.mxu0
        %4951 = vmatprep.mubr.f32.mxu0 0.0
        %v4952 = vand.u32 %v3537, 4294901760
        %v4953 = vsub.f32 %v3537, %v4952
        %4954 = vmatmul.mubr.f32.gmra.mxu0 %v4953
        %v4955 = vpop.f32.mrf.mxu0
        %v4956 = vadd.f32 %v4852, %v4955
        %v4957 = vpop.f32.mrf.mxu0
        %4958 = vdwg.mxu0
        %4959 = vmatprep.subr.mxu0 0.0
        %4960 = vmatpush1.msra.mxu0 0.0
        %4961 = vmatprep.subr.mxu0 0.0
        %4962 = vmatpush1.msra.mxu0 0.0
        %4963 = vmatprep.subr.mxu0 0.0
        %4964 = vmatpush1.msra.mxu0 0.0
        %4965 = vmatprep.subr.mxu0 0.0
        %4966 = vmatpush1.msra.mxu0 0.0
        %4967 = vmatprep.subr.mxu0 0.0
        %4968 = vmatpush1.msra.mxu0 0.0
        %4969 = vmatprep.subr.mxu0 0.0
        %4970 = vmatpush1.msra.mxu0 0.0
        %4971 = vmatprep.subr.mxu0 0.0
        %4972 = vmatpush1.msra.mxu0 0.0
        %4973 = vmatprep.subr.mxu0 0.0
        %4974 = vmatpush1.msra.mxu0 0.0
        %4975 = vmatprep.subr.mxu0 0.0
        %4976 = vmatpush1.msra.mxu0 0.0
        %4977 = vmatprep.subr.mxu0 0.0
        %4978 = vmatpush1.msra.mxu0 0.0
        %4979 = vmatprep.subr.mxu0 0.0
        %4980 = vmatpush1.msra.mxu0 0.0
        %4981 = vmatprep.subr.mxu0 0.0
        %4982 = vmatpush1.msra.mxu0 0.0
        %4983 = vmatprep.subr.mxu0 0.0
        %4984 = vmatpush1.msra.mxu0 0.0
        %4985 = vmatprep.subr.mxu0 0.0
        %4986 = vmatpush1.msra.mxu0 0.0
        %4987 = vmatprep.subr.mxu0 0.0
        %v4988 = vand.u32 %v217, 4294901760
        %4989 = vmatpush1.msra.mxu0 %v4988
        %4990 = vmatprep.subr.mxu0 0.0
        %v4991 = vand.u32 %v216, 4294901760
        %4992 = vmatpush1.msra.mxu0 %v4991
        %4993 = vmatprep.subr.mxu0 0.0
        %4994 = vmatpush2.msra.mxu0 0.0
        %4995 = vmatprep.subr.mxu0 0.0
        %4996 = vmatpush2.msra.mxu0 0.0
        %4997 = vmatprep.subr.mxu0 0.0
        %4998 = vmatpush2.msra.mxu0 0.0
        %4999 = vmatprep.subr.mxu0 0.0
        %5000 = vmatpush2.msra.mxu0 0.0
        %5001 = vmatprep.subr.mxu0 0.0
        %5002 = vmatpush2.msra.mxu0 0.0
        %5003 = vmatprep.subr.mxu0 0.0
        %5004 = vmatpush2.msra.mxu0 0.0
        %5005 = vmatprep.subr.mxu0 0.0
        %5006 = vmatpush2.msra.mxu0 0.0
        %5007 = vmatprep.subr.mxu0 0.0
        %5008 = vmatpush2.msra.mxu0 0.0
        %5009 = vmatprep.subr.mxu0 0.0
        %5010 = vmatpush2.msra.mxu0 0.0
        %5011 = vmatprep.subr.mxu0 0.0
        %5012 = vmatpush2.msra.mxu0 0.0
        %5013 = vmatprep.subr.mxu0 0.0
        %5014 = vmatpush2.msra.mxu0 0.0
        %5015 = vmatprep.subr.mxu0 0.0
        %5016 = vmatpush2.msra.mxu0 0.0
        %5017 = vmatprep.subr.mxu0 0.0
        %5018 = vmatpush2.msra.mxu0 0.0
        %5019 = vmatprep.subr.mxu0 0.0
        %5020 = vmatpush2.msra.mxu0 0.0
        %5021 = vmatprep.subr.mxu0 0.0
        %5022 = vmatpush2.msra.mxu0 0.0
        %5023 = vmatprep.subr.mxu0 0.0
        %5024 = vmatpush2.msra.mxu0 0.0
        %5025 = vmatprep.mubr.f32.mxu0 0.0
        %v5026 = vand.u32 %v3529, 4294901760
        %v5027 = vsub.f32 %v3529, %v5026
        %v5028 = vand.u32 %v5027, 4294901760
        %5029 = vmatmul.mubr.f32.gmra.mxu0 %v5028
        %v5030 = vpop.f32.mrf.mxu0
        %v5031 = vadd.f32 %v4928, %v5030
        %v5032 = vpop.f32.mrf.mxu0
        %5033 = vmatprep.mubr.f32.mxu0 0.0
        %v5034 = vand.u32 %v3531, 4294901760
        %v5035 = vsub.f32 %v3531, %v5034
        %v5036 = vand.u32 %v5035, 4294901760
        %5037 = vmatmul.mubr.f32.gmra.mxu0 %v5036
        %v5038 = vpop.f32.mrf.mxu0
        %v5039 = vadd.f32 %v4935, %v5038
        %v5040 = vpop.f32.mrf.mxu0
        %5041 = vmatprep.mubr.f32.mxu0 0.0
        %v5042 = vand.u32 %v3533, 4294901760
        %v5043 = vsub.f32 %v3533, %v5042
        %v5044 = vand.u32 %v5043, 4294901760
        %5045 = vmatmul.mubr.f32.gmra.mxu0 %v5044
        %v5046 = vpop.f32.mrf.mxu0
        %v5047 = vadd.f32 %v4942, %v5046
        %v5048 = vpop.f32.mrf.mxu0
        %5049 = vmatprep.mubr.f32.mxu0 0.0
        %v5050 = vand.u32 %v3535, 4294901760
        %v5051 = vsub.f32 %v3535, %v5050
        %v5052 = vand.u32 %v5051, 4294901760
        %5053 = vmatmul.mubr.f32.gmra.mxu0 %v5052
        %v5054 = vpop.f32.mrf.mxu0
        %v5055 = vadd.f32 %v4949, %v5054
        %v5056 = vpop.f32.mrf.mxu0
        %5057 = vmatprep.mubr.f32.mxu0 0.0
        %v5058 = vand.u32 %v3537, 4294901760
        %v5059 = vsub.f32 %v3537, %v5058
        %v5060 = vand.u32 %v5059, 4294901760
        %5061 = vmatmul.mubr.f32.gmra.mxu0 %v5060
        %v5062 = vpop.f32.mrf.mxu0
        %v5063 = vadd.f32 %v4956, %v5062
        %v5064 = vpop.f32.mrf.mxu0
        %5065 = vdwg.mxu0
        %5066 = vmatprep.subr.mxu0 0.0
        %5067 = vmatpush1.msra.mxu0 0.0
        %5068 = vmatprep.subr.mxu0 0.0
        %5069 = vmatpush1.msra.mxu0 0.0
        %5070 = vmatprep.subr.mxu0 0.0
        %5071 = vmatpush1.msra.mxu0 0.0
        %5072 = vmatprep.subr.mxu0 0.0
        %5073 = vmatpush1.msra.mxu0 0.0
        %5074 = vmatprep.subr.mxu0 0.0
        %5075 = vmatpush1.msra.mxu0 0.0
        %5076 = vmatprep.subr.mxu0 0.0
        %5077 = vmatpush1.msra.mxu0 0.0
        %5078 = vmatprep.subr.mxu0 0.0
        %5079 = vmatpush1.msra.mxu0 0.0
        %5080 = vmatprep.subr.mxu0 0.0
        %5081 = vmatpush1.msra.mxu0 0.0
        %5082 = vmatprep.subr.mxu0 0.0
        %5083 = vmatpush1.msra.mxu0 0.0
        %5084 = vmatprep.subr.mxu0 0.0
        %5085 = vmatpush1.msra.mxu0 0.0
        %5086 = vmatprep.subr.mxu0 0.0
        %5087 = vmatpush1.msra.mxu0 0.0
        %5088 = vmatprep.subr.mxu0 0.0
        %5089 = vmatpush1.msra.mxu0 0.0
        %5090 = vmatprep.subr.mxu0 0.0
        %5091 = vmatpush1.msra.mxu0 0.0
        %5092 = vmatprep.subr.mxu0 0.0
        %5093 = vmatpush1.msra.mxu0 0.0
        %5094 = vmatprep.subr.mxu0 0.0
        %v5095 = vand.u32 %v217, 4294901760
        %v5096 = vsub.f32 %v217, %v5095
        %v5097 = vand.u32 %v5096, 4294901760
        %5098 = vmatpush1.msra.mxu0 %v5097
        %5099 = vmatprep.subr.mxu0 0.0
        %v5100 = vand.u32 %v216, 4294901760
        %v5101 = vsub.f32 %v216, %v5100
        %v5102 = vand.u32 %v5101, 4294901760
        %5103 = vmatpush1.msra.mxu0 %v5102
        %5104 = vmatprep.subr.mxu0 0.0
        %5105 = vmatpush2.msra.mxu0 0.0
        %5106 = vmatprep.subr.mxu0 0.0
        %5107 = vmatpush2.msra.mxu0 0.0
        %5108 = vmatprep.subr.mxu0 0.0
        %5109 = vmatpush2.msra.mxu0 0.0
        %5110 = vmatprep.subr.mxu0 0.0
        %5111 = vmatpush2.msra.mxu0 0.0
        %5112 = vmatprep.subr.mxu0 0.0
        %5113 = vmatpush2.msra.mxu0 0.0
        %5114 = vmatprep.subr.mxu0 0.0
        %5115 = vmatpush2.msra.mxu0 0.0
        %5116 = vmatprep.subr.mxu0 0.0
        %5117 = vmatpush2.msra.mxu0 0.0
        %5118 = vmatprep.subr.mxu0 0.0
        %5119 = vmatpush2.msra.mxu0 0.0
        %5120 = vmatprep.subr.mxu0 0.0
        %5121 = vmatpush2.msra.mxu0 0.0
        %5122 = vmatprep.subr.mxu0 0.0
        %5123 = vmatpush2.msra.mxu0 0.0
        %5124 = vmatprep.subr.mxu0 0.0
        %5125 = vmatpush2.msra.mxu0 0.0
        %5126 = vmatprep.subr.mxu0 0.0
        %5127 = vmatpush2.msra.mxu0 0.0
        %5128 = vmatprep.subr.mxu0 0.0
        %5129 = vmatpush2.msra.mxu0 0.0
        %5130 = vmatprep.subr.mxu0 0.0
        %5131 = vmatpush2.msra.mxu0 0.0
        %5132 = vmatprep.subr.mxu0 0.0
        %5133 = vmatpush2.msra.mxu0 0.0
        %5134 = vmatprep.subr.mxu0 0.0
        %5135 = vmatpush2.msra.mxu0 0.0
        %5136 = vmatprep.mubr.f32.mxu0 0.0
        %v5137 = vand.u32 %v3529, 4294901760
        %5138 = vmatmul.mubr.f32.gmra.mxu0 %v5137
        %v5139 = vpop.f32.mrf.mxu0
        %v5140 = vadd.f32 %v5031, %v5139
        %v5141 = vpop.f32.mrf.mxu0
        %5142 = vmatprep.mubr.f32.mxu0 0.0
        %v5143 = vand.u32 %v3531, 4294901760
        %5144 = vmatmul.mubr.f32.gmra.mxu0 %v5143
        %v5145 = vpop.f32.mrf.mxu0
        %v5146 = vadd.f32 %v5039, %v5145
        %v5147 = vpop.f32.mrf.mxu0
        %5148 = vmatprep.mubr.f32.mxu0 0.0
        %v5149 = vand.u32 %v3533, 4294901760
        %5150 = vmatmul.mubr.f32.gmra.mxu0 %v5149
        %v5151 = vpop.f32.mrf.mxu0
        %v5152 = vadd.f32 %v5047, %v5151
        %v5153 = vpop.f32.mrf.mxu0
        %5154 = vmatprep.mubr.f32.mxu0 0.0
        %v5155 = vand.u32 %v3535, 4294901760
        %5156 = vmatmul.mubr.f32.gmra.mxu0 %v5155
        %v5157 = vpop.f32.mrf.mxu0
        %v5158 = vadd.f32 %v5055, %v5157
        %v5159 = vpop.f32.mrf.mxu0
        %5160 = vmatprep.mubr.f32.mxu0 0.0
        %v5161 = vand.u32 %v3537, 4294901760
        %5162 = vmatmul.mubr.f32.gmra.mxu0 %v5161
        %v5163 = vpop.f32.mrf.mxu0
        %v5164 = vadd.f32 %v5063, %v5163
        %v5165 = vpop.f32.mrf.mxu0
        %5166 = vdwg.mxu0
        %5167 = vmatprep.subr.mxu0 0.0
        %5168 = vmatpush1.msra.mxu0 0.0
        %5169 = vmatprep.subr.mxu0 0.0
        %5170 = vmatpush1.msra.mxu0 0.0
        %5171 = vmatprep.subr.mxu0 0.0
        %5172 = vmatpush1.msra.mxu0 0.0
        %5173 = vmatprep.subr.mxu0 0.0
        %5174 = vmatpush1.msra.mxu0 0.0
        %5175 = vmatprep.subr.mxu0 0.0
        %5176 = vmatpush1.msra.mxu0 0.0
        %5177 = vmatprep.subr.mxu0 0.0
        %5178 = vmatpush1.msra.mxu0 0.0
        %5179 = vmatprep.subr.mxu0 0.0
        %5180 = vmatpush1.msra.mxu0 0.0
        %5181 = vmatprep.subr.mxu0 0.0
        %5182 = vmatpush1.msra.mxu0 0.0
        %5183 = vmatprep.subr.mxu0 0.0
        %5184 = vmatpush1.msra.mxu0 0.0
        %5185 = vmatprep.subr.mxu0 0.0
        %5186 = vmatpush1.msra.mxu0 0.0
        %5187 = vmatprep.subr.mxu0 0.0
        %5188 = vmatpush1.msra.mxu0 0.0
        %5189 = vmatprep.subr.mxu0 0.0
        %5190 = vmatpush1.msra.mxu0 0.0
        %5191 = vmatprep.subr.mxu0 0.0
        %5192 = vmatpush1.msra.mxu0 0.0
        %5193 = vmatprep.subr.mxu0 0.0
        %5194 = vmatpush1.msra.mxu0 0.0
        %5195 = vmatprep.subr.mxu0 0.0
        %v5196 = vand.u32 %v217, 4294901760
        %5197 = vmatpush1.msra.mxu0 %v5196
        %5198 = vmatprep.subr.mxu0 0.0
        %v5199 = vand.u32 %v216, 4294901760
        %5200 = vmatpush1.msra.mxu0 %v5199
        %5201 = vmatprep.subr.mxu0 0.0
        %5202 = vmatpush2.msra.mxu0 0.0
        %5203 = vmatprep.subr.mxu0 0.0
        %5204 = vmatpush2.msra.mxu0 0.0
        %5205 = vmatprep.subr.mxu0 0.0
        %5206 = vmatpush2.msra.mxu0 0.0
        %5207 = vmatprep.subr.mxu0 0.0
        %5208 = vmatpush2.msra.mxu0 0.0
        %5209 = vmatprep.subr.mxu0 0.0
        %5210 = vmatpush2.msra.mxu0 0.0
        %5211 = vmatprep.subr.mxu0 0.0
        %5212 = vmatpush2.msra.mxu0 0.0
        %5213 = vmatprep.subr.mxu0 0.0
        %5214 = vmatpush2.msra.mxu0 0.0
        %5215 = vmatprep.subr.mxu0 0.0
        %5216 = vmatpush2.msra.mxu0 0.0
        %5217 = vmatprep.subr.mxu0 0.0
        %5218 = vmatpush2.msra.mxu0 0.0
        %5219 = vmatprep.subr.mxu0 0.0
        %5220 = vmatpush2.msra.mxu0 0.0
        %5221 = vmatprep.subr.mxu0 0.0
        %5222 = vmatpush2.msra.mxu0 0.0
        %5223 = vmatprep.subr.mxu0 0.0
        %5224 = vmatpush2.msra.mxu0 0.0
        %5225 = vmatprep.subr.mxu0 0.0
        %5226 = vmatpush2.msra.mxu0 0.0
        %5227 = vmatprep.subr.mxu0 0.0
        %5228 = vmatpush2.msra.mxu0 0.0
        %5229 = vmatprep.subr.mxu0 0.0
        %5230 = vmatpush2.msra.mxu0 0.0
        %5231 = vmatprep.subr.mxu0 0.0
        %5232 = vmatpush2.msra.mxu0 0.0
        %5233 = vmatprep.mubr.f32.mxu0 0.0
        %v5234 = vand.u32 %v3529, 4294901760
        %5235 = vmatmul.mubr.f32.gmra.mxu0 %v5234
        %v5236 = vpop.f32.mrf.mxu0
        %v5237 = vadd.f32 %v5140, %v5236
        %v5238 = vpop.f32.mrf.mxu0
        %5239 = vmatprep.mubr.f32.mxu0 0.0
        %v5240 = vand.u32 %v3531, 4294901760
        %5241 = vmatmul.mubr.f32.gmra.mxu0 %v5240
        %v5242 = vpop.f32.mrf.mxu0
        %v5243 = vadd.f32 %v5146, %v5242
        %v5244 = vpop.f32.mrf.mxu0
        %5245 = vmatprep.mubr.f32.mxu0 0.0
        %v5246 = vand.u32 %v3533, 4294901760
        %5247 = vmatmul.mubr.f32.gmra.mxu0 %v5246
        %v5248 = vpop.f32.mrf.mxu0
        %v5249 = vadd.f32 %v5152, %v5248
        %v5250 = vpop.f32.mrf.mxu0
        %5251 = vmatprep.mubr.f32.mxu0 0.0
        %v5252 = vand.u32 %v3535, 4294901760
        %5253 = vmatmul.mubr.f32.gmra.mxu0 %v5252
        %v5254 = vpop.f32.mrf.mxu0
        %v5255 = vadd.f32 %v5158, %v5254
        %v5256 = vpop.f32.mrf.mxu0
        %5257 = vmatprep.mubr.f32.mxu0 0.0
        %v5258 = vand.u32 %v3537, 4294901760
        %5259 = vmatmul.mubr.f32.gmra.mxu0 %v5258
        %v5260 = vpop.f32.mrf.mxu0
        %v5261 = vadd.f32 %v5164, %v5260
        %v5262 = vpop.f32.mrf.mxu0
        %5263 = vdwg.mxu0
        %5264 = vmatprep.subr.mxu0 0.0
        %5265 = vmatpush1.msra.mxu0 0.0
        %5266 = vmatprep.subr.mxu0 0.0
        %5267 = vmatpush1.msra.mxu0 0.0
        %5268 = vmatprep.subr.mxu0 0.0
        %5269 = vmatpush1.msra.mxu0 0.0
        %5270 = vmatprep.subr.mxu0 0.0
        %5271 = vmatpush1.msra.mxu0 0.0
        %5272 = vmatprep.subr.mxu0 0.0
        %5273 = vmatpush1.msra.mxu0 0.0
        %5274 = vmatprep.subr.mxu0 0.0
        %5275 = vmatpush1.msra.mxu0 0.0
        %5276 = vmatprep.subr.mxu0 0.0
        %5277 = vmatpush1.msra.mxu0 0.0
        %5278 = vmatprep.subr.mxu0 0.0
        %5279 = vmatpush1.msra.mxu0 0.0
        %5280 = vmatprep.subr.mxu0 0.0
        %5281 = vmatpush1.msra.mxu0 0.0
        %5282 = vmatprep.subr.mxu0 0.0
        %5283 = vmatpush1.msra.mxu0 0.0
        %5284 = vmatprep.subr.mxu0 0.0
        %5285 = vmatpush1.msra.mxu0 0.0
        %5286 = vmatprep.subr.mxu0 0.0
        %5287 = vmatpush1.msra.mxu0 0.0
        %5288 = vmatprep.subr.mxu0 0.0
        %5289 = vmatpush1.msra.mxu0 0.0
        %5290 = vmatprep.subr.mxu0 0.0
        %5291 = vmatpush1.msra.mxu0 0.0
        %5292 = vmatprep.subr.mxu0 0.0
        %v5293 = vand.u32 %v217, 4294901760
        %5294 = vmatpush1.msra.mxu0 %v5293
        %5295 = vmatprep.subr.mxu0 0.0
        %v5296 = vand.u32 %v216, 4294901760
        %5297 = vmatpush1.msra.mxu0 %v5296
        %5298 = vmatprep.subr.mxu0 0.0
        %5299 = vmatpush2.msra.mxu0 0.0
        %5300 = vmatprep.subr.mxu0 0.0
        %5301 = vmatpush2.msra.mxu0 0.0
        %5302 = vmatprep.subr.mxu0 0.0
        %5303 = vmatpush2.msra.mxu0 0.0
        %5304 = vmatprep.subr.mxu0 0.0
        %5305 = vmatpush2.msra.mxu0 0.0
        %5306 = vmatprep.subr.mxu0 0.0
        %5307 = vmatpush2.msra.mxu0 0.0
        %5308 = vmatprep.subr.mxu0 0.0
        %5309 = vmatpush2.msra.mxu0 0.0
        %5310 = vmatprep.subr.mxu0 0.0
        %5311 = vmatpush2.msra.mxu0 0.0
        %5312 = vmatprep.subr.mxu0 0.0
        %5313 = vmatpush2.msra.mxu0 0.0
        %5314 = vmatprep.subr.mxu0 0.0
        %5315 = vmatpush2.msra.mxu0 0.0
        %5316 = vmatprep.subr.mxu0 0.0
        %5317 = vmatpush2.msra.mxu0 0.0
        %5318 = vmatprep.subr.mxu0 0.0
        %5319 = vmatpush2.msra.mxu0 0.0
        %5320 = vmatprep.subr.mxu0 0.0
        %5321 = vmatpush2.msra.mxu0 0.0
        %5322 = vmatprep.subr.mxu0 0.0
        %5323 = vmatpush2.msra.mxu0 0.0
        %5324 = vmatprep.subr.mxu0 0.0
        %5325 = vmatpush2.msra.mxu0 0.0
        %5326 = vmatprep.subr.mxu0 0.0
        %5327 = vmatpush2.msra.mxu0 0.0
        %5328 = vmatprep.subr.mxu0 0.0
        %5329 = vmatpush2.msra.mxu0 0.0
        %5330 = vmatprep.mubr.f32.mxu0 0.0
        %v5331 = vand.u32 %v4172, 4294901760
        %v5332 = vsub.f32 %v4172, %v5331
        %v5333 = vand.u32 %v5332, 4294901760
        %v5334 = vsub.f32 %v5332, %v5333
        %v5335 = vand.u32 %v5334, 4294901760
        %5336 = vmatmul.mubr.f32.gmra.mxu0 %v5335
        %v5337 = vpop.f32.mrf.mxu0
        %v5338 = vadd.f32 0.0, %v5337
        %v5339 = vpop.f32.mrf.mxu0
        %5340 = vdwg.mxu0
        %5341 = vmatprep.subr.mxu0 0.0
        %5342 = vmatpush1.msra.mxu0 0.0
        %5343 = vmatprep.subr.mxu0 0.0
        %5344 = vmatpush1.msra.mxu0 0.0
        %5345 = vmatprep.subr.mxu0 0.0
        %5346 = vmatpush1.msra.mxu0 0.0
        %5347 = vmatprep.subr.mxu0 0.0
        %5348 = vmatpush1.msra.mxu0 0.0
        %5349 = vmatprep.subr.mxu0 0.0
        %5350 = vmatpush1.msra.mxu0 0.0
        %5351 = vmatprep.subr.mxu0 0.0
        %5352 = vmatpush1.msra.mxu0 0.0
        %5353 = vmatprep.subr.mxu0 0.0
        %5354 = vmatpush1.msra.mxu0 0.0
        %5355 = vmatprep.subr.mxu0 0.0
        %5356 = vmatpush1.msra.mxu0 0.0
        %5357 = vmatprep.subr.mxu0 0.0
        %5358 = vmatpush1.msra.mxu0 0.0
        %5359 = vmatprep.subr.mxu0 0.0
        %5360 = vmatpush1.msra.mxu0 0.0
        %5361 = vmatprep.subr.mxu0 0.0
        %5362 = vmatpush1.msra.mxu0 0.0
        %5363 = vmatprep.subr.mxu0 0.0
        %5364 = vmatpush1.msra.mxu0 0.0
        %5365 = vmatprep.subr.mxu0 0.0
        %5366 = vmatpush1.msra.mxu0 0.0
        %5367 = vmatprep.subr.mxu0 0.0
        %5368 = vmatpush1.msra.mxu0 0.0
        %5369 = vmatprep.subr.mxu0 0.0
        %v5370 = vand.u32 %v217, 4294901760
        %v5371 = vsub.f32 %v217, %v5370
        %v5372 = vand.u32 %v5371, 4294901760
        %v5373 = vsub.f32 %v5371, %v5372
        %v5374 = vand.u32 %v5373, 4294901760
        %5375 = vmatpush1.msra.mxu0 %v5374
        %5376 = vmatprep.subr.mxu0 0.0
        %v5377 = vand.u32 %v216, 4294901760
        %v5378 = vsub.f32 %v216, %v5377
        %v5379 = vand.u32 %v5378, 4294901760
        %v5380 = vsub.f32 %v5378, %v5379
        %v5381 = vand.u32 %v5380, 4294901760
        %5382 = vmatpush1.msra.mxu0 %v5381
        %5383 = vmatprep.subr.mxu0 0.0
        %5384 = vmatpush2.msra.mxu0 0.0
        %5385 = vmatprep.subr.mxu0 0.0
        %5386 = vmatpush2.msra.mxu0 0.0
        %5387 = vmatprep.subr.mxu0 0.0
        %5388 = vmatpush2.msra.mxu0 0.0
        %5389 = vmatprep.subr.mxu0 0.0
        %5390 = vmatpush2.msra.mxu0 0.0
        %5391 = vmatprep.subr.mxu0 0.0
        %5392 = vmatpush2.msra.mxu0 0.0
        %5393 = vmatprep.subr.mxu0 0.0
        %5394 = vmatpush2.msra.mxu0 0.0
        %5395 = vmatprep.subr.mxu0 0.0
        %5396 = vmatpush2.msra.mxu0 0.0
        %5397 = vmatprep.subr.mxu0 0.0
        %5398 = vmatpush2.msra.mxu0 0.0
        %5399 = vmatprep.subr.mxu0 0.0
        %5400 = vmatpush2.msra.mxu0 0.0
        %5401 = vmatprep.subr.mxu0 0.0
        %5402 = vmatpush2.msra.mxu0 0.0
        %5403 = vmatprep.subr.mxu0 0.0
        %5404 = vmatpush2.msra.mxu0 0.0
        %5405 = vmatprep.subr.mxu0 0.0
        %5406 = vmatpush2.msra.mxu0 0.0
        %5407 = vmatprep.subr.mxu0 0.0
        %5408 = vmatpush2.msra.mxu0 0.0
        %5409 = vmatprep.subr.mxu0 0.0
        %5410 = vmatpush2.msra.mxu0 0.0
        %5411 = vmatprep.subr.mxu0 0.0
        %5412 = vmatpush2.msra.mxu0 0.0
        %5413 = vmatprep.subr.mxu0 0.0
        %5414 = vmatpush2.msra.mxu0 0.0
        %5415 = vmatprep.mubr.f32.mxu0 0.0
        %v5416 = vand.u32 %v4172, 4294901760
        %5417 = vmatmul.mubr.f32.gmra.mxu0 %v5416
        %v5418 = vpop.f32.mrf.mxu0
        %v5419 = vadd.f32 %v5338, %v5418
        %v5420 = vpop.f32.mrf.mxu0
        %5421 = vdwg.mxu0
        %5422 = vmatprep.subr.mxu0 0.0
        %5423 = vmatpush1.msra.mxu0 0.0
        %5424 = vmatprep.subr.mxu0 0.0
        %5425 = vmatpush1.msra.mxu0 0.0
        %5426 = vmatprep.subr.mxu0 0.0
        %5427 = vmatpush1.msra.mxu0 0.0
        %5428 = vmatprep.subr.mxu0 0.0
        %5429 = vmatpush1.msra.mxu0 0.0
        %5430 = vmatprep.subr.mxu0 0.0
        %5431 = vmatpush1.msra.mxu0 0.0
        %5432 = vmatprep.subr.mxu0 0.0
        %5433 = vmatpush1.msra.mxu0 0.0
        %5434 = vmatprep.subr.mxu0 0.0
        %5435 = vmatpush1.msra.mxu0 0.0
        %5436 = vmatprep.subr.mxu0 0.0
        %5437 = vmatpush1.msra.mxu0 0.0
        %5438 = vmatprep.subr.mxu0 0.0
        %5439 = vmatpush1.msra.mxu0 0.0
        %5440 = vmatprep.subr.mxu0 0.0
        %5441 = vmatpush1.msra.mxu0 0.0
        %5442 = vmatprep.subr.mxu0 0.0
        %5443 = vmatpush1.msra.mxu0 0.0
        %5444 = vmatprep.subr.mxu0 0.0
        %5445 = vmatpush1.msra.mxu0 0.0
        %5446 = vmatprep.subr.mxu0 0.0
        %5447 = vmatpush1.msra.mxu0 0.0
        %5448 = vmatprep.subr.mxu0 0.0
        %5449 = vmatpush1.msra.mxu0 0.0
        %5450 = vmatprep.subr.mxu0 0.0
        %v5451 = vand.u32 %v217, 4294901760
        %v5452 = vsub.f32 %v217, %v5451
        %5453 = vmatpush1.msra.mxu0 %v5452
        %5454 = vmatprep.subr.mxu0 0.0
        %v5455 = vand.u32 %v216, 4294901760
        %v5456 = vsub.f32 %v216, %v5455
        %5457 = vmatpush1.msra.mxu0 %v5456
        %5458 = vmatprep.subr.mxu0 0.0
        %5459 = vmatpush2.msra.mxu0 0.0
        %5460 = vmatprep.subr.mxu0 0.0
        %5461 = vmatpush2.msra.mxu0 0.0
        %5462 = vmatprep.subr.mxu0 0.0
        %5463 = vmatpush2.msra.mxu0 0.0
        %5464 = vmatprep.subr.mxu0 0.0
        %5465 = vmatpush2.msra.mxu0 0.0
        %5466 = vmatprep.subr.mxu0 0.0
        %5467 = vmatpush2.msra.mxu0 0.0
        %5468 = vmatprep.subr.mxu0 0.0
        %5469 = vmatpush2.msra.mxu0 0.0
        %5470 = vmatprep.subr.mxu0 0.0
        %5471 = vmatpush2.msra.mxu0 0.0
        %5472 = vmatprep.subr.mxu0 0.0
        %5473 = vmatpush2.msra.mxu0 0.0
        %5474 = vmatprep.subr.mxu0 0.0
        %5475 = vmatpush2.msra.mxu0 0.0
        %5476 = vmatprep.subr.mxu0 0.0
        %5477 = vmatpush2.msra.mxu0 0.0
        %5478 = vmatprep.subr.mxu0 0.0
        %5479 = vmatpush2.msra.mxu0 0.0
        %5480 = vmatprep.subr.mxu0 0.0
        %5481 = vmatpush2.msra.mxu0 0.0
        %5482 = vmatprep.subr.mxu0 0.0
        %5483 = vmatpush2.msra.mxu0 0.0
        %5484 = vmatprep.subr.mxu0 0.0
        %5485 = vmatpush2.msra.mxu0 0.0
        %5486 = vmatprep.subr.mxu0 0.0
        %5487 = vmatpush2.msra.mxu0 0.0
        %5488 = vmatprep.subr.mxu0 0.0
        %5489 = vmatpush2.msra.mxu0 0.0
        %5490 = vmatprep.mubr.f32.mxu0 0.0
        %v5491 = vand.u32 %v4172, 4294901760
        %v5492 = vsub.f32 %v4172, %v5491
        %5493 = vmatmul.mubr.f32.gmra.mxu0 %v5492
        %v5494 = vpop.f32.mrf.mxu0
        %v5495 = vadd.f32 %v5419, %v5494
        %v5496 = vpop.f32.mrf.mxu0
        %5497 = vdwg.mxu0
        %5498 = vmatprep.subr.mxu0 0.0
        %5499 = vmatpush1.msra.mxu0 0.0
        %5500 = vmatprep.subr.mxu0 0.0
        %5501 = vmatpush1.msra.mxu0 0.0
        %5502 = vmatprep.subr.mxu0 0.0
        %5503 = vmatpush1.msra.mxu0 0.0
        %5504 = vmatprep.subr.mxu0 0.0
        %5505 = vmatpush1.msra.mxu0 0.0
        %5506 = vmatprep.subr.mxu0 0.0
        %5507 = vmatpush1.msra.mxu0 0.0
        %5508 = vmatprep.subr.mxu0 0.0
        %5509 = vmatpush1.msra.mxu0 0.0
        %5510 = vmatprep.subr.mxu0 0.0
        %5511 = vmatpush1.msra.mxu0 0.0
        %5512 = vmatprep.subr.mxu0 0.0
        %5513 = vmatpush1.msra.mxu0 0.0
        %5514 = vmatprep.subr.mxu0 0.0
        %5515 = vmatpush1.msra.mxu0 0.0
        %5516 = vmatprep.subr.mxu0 0.0
        %5517 = vmatpush1.msra.mxu0 0.0
        %5518 = vmatprep.subr.mxu0 0.0
        %5519 = vmatpush1.msra.mxu0 0.0
        %5520 = vmatprep.subr.mxu0 0.0
        %5521 = vmatpush1.msra.mxu0 0.0
        %5522 = vmatprep.subr.mxu0 0.0
        %5523 = vmatpush1.msra.mxu0 0.0
        %5524 = vmatprep.subr.mxu0 0.0
        %5525 = vmatpush1.msra.mxu0 0.0
        %5526 = vmatprep.subr.mxu0 0.0
        %v5527 = vand.u32 %v217, 4294901760
        %5528 = vmatpush1.msra.mxu0 %v5527
        %5529 = vmatprep.subr.mxu0 0.0
        %v5530 = vand.u32 %v216, 4294901760
        %5531 = vmatpush1.msra.mxu0 %v5530
        %5532 = vmatprep.subr.mxu0 0.0
        %5533 = vmatpush2.msra.mxu0 0.0
        %5534 = vmatprep.subr.mxu0 0.0
        %5535 = vmatpush2.msra.mxu0 0.0
        %5536 = vmatprep.subr.mxu0 0.0
        %5537 = vmatpush2.msra.mxu0 0.0
        %5538 = vmatprep.subr.mxu0 0.0
        %5539 = vmatpush2.msra.mxu0 0.0
        %5540 = vmatprep.subr.mxu0 0.0
        %5541 = vmatpush2.msra.mxu0 0.0
        %5542 = vmatprep.subr.mxu0 0.0
        %5543 = vmatpush2.msra.mxu0 0.0
        %5544 = vmatprep.subr.mxu0 0.0
        %5545 = vmatpush2.msra.mxu0 0.0
        %5546 = vmatprep.subr.mxu0 0.0
        %5547 = vmatpush2.msra.mxu0 0.0
        %5548 = vmatprep.subr.mxu0 0.0
        %5549 = vmatpush2.msra.mxu0 0.0
        %5550 = vmatprep.subr.mxu0 0.0
        %5551 = vmatpush2.msra.mxu0 0.0
        %5552 = vmatprep.subr.mxu0 0.0
        %5553 = vmatpush2.msra.mxu0 0.0
        %5554 = vmatprep.subr.mxu0 0.0
        %5555 = vmatpush2.msra.mxu0 0.0
        %5556 = vmatprep.subr.mxu0 0.0
        %5557 = vmatpush2.msra.mxu0 0.0
        %5558 = vmatprep.subr.mxu0 0.0
        %5559 = vmatpush2.msra.mxu0 0.0
        %5560 = vmatprep.subr.mxu0 0.0
        %5561 = vmatpush2.msra.mxu0 0.0
        %5562 = vmatprep.subr.mxu0 0.0
        %5563 = vmatpush2.msra.mxu0 0.0
        %5564 = vmatprep.mubr.f32.mxu0 0.0
        %v5565 = vand.u32 %v4172, 4294901760
        %v5566 = vsub.f32 %v4172, %v5565
        %v5567 = vand.u32 %v5566, 4294901760
        %5568 = vmatmul.mubr.f32.gmra.mxu0 %v5567
        %v5569 = vpop.f32.mrf.mxu0
        %v5570 = vadd.f32 %v5495, %v5569
        %v5571 = vpop.f32.mrf.mxu0
        %5572 = vdwg.mxu0
        %5573 = vmatprep.subr.mxu0 0.0
        %5574 = vmatpush1.msra.mxu0 0.0
        %5575 = vmatprep.subr.mxu0 0.0
        %5576 = vmatpush1.msra.mxu0 0.0
        %5577 = vmatprep.subr.mxu0 0.0
        %5578 = vmatpush1.msra.mxu0 0.0
        %5579 = vmatprep.subr.mxu0 0.0
        %5580 = vmatpush1.msra.mxu0 0.0
        %5581 = vmatprep.subr.mxu0 0.0
        %5582 = vmatpush1.msra.mxu0 0.0
        %5583 = vmatprep.subr.mxu0 0.0
        %5584 = vmatpush1.msra.mxu0 0.0
        %5585 = vmatprep.subr.mxu0 0.0
        %5586 = vmatpush1.msra.mxu0 0.0
        %5587 = vmatprep.subr.mxu0 0.0
        %5588 = vmatpush1.msra.mxu0 0.0
        %5589 = vmatprep.subr.mxu0 0.0
        %5590 = vmatpush1.msra.mxu0 0.0
        %5591 = vmatprep.subr.mxu0 0.0
        %5592 = vmatpush1.msra.mxu0 0.0
        %5593 = vmatprep.subr.mxu0 0.0
        %5594 = vmatpush1.msra.mxu0 0.0
        %5595 = vmatprep.subr.mxu0 0.0
        %5596 = vmatpush1.msra.mxu0 0.0
        %5597 = vmatprep.subr.mxu0 0.0
        %5598 = vmatpush1.msra.mxu0 0.0
        %5599 = vmatprep.subr.mxu0 0.0
        %5600 = vmatpush1.msra.mxu0 0.0
        %5601 = vmatprep.subr.mxu0 0.0
        %v5602 = vand.u32 %v217, 4294901760
        %v5603 = vsub.f32 %v217, %v5602
        %v5604 = vand.u32 %v5603, 4294901760
        %5605 = vmatpush1.msra.mxu0 %v5604
        %5606 = vmatprep.subr.mxu0 0.0
        %v5607 = vand.u32 %v216, 4294901760
        %v5608 = vsub.f32 %v216, %v5607
        %v5609 = vand.u32 %v5608, 4294901760
        %5610 = vmatpush1.msra.mxu0 %v5609
        %5611 = vmatprep.subr.mxu0 0.0
        %5612 = vmatpush2.msra.mxu0 0.0
        %5613 = vmatprep.subr.mxu0 0.0
        %5614 = vmatpush2.msra.mxu0 0.0
        %5615 = vmatprep.subr.mxu0 0.0
        %5616 = vmatpush2.msra.mxu0 0.0
        %5617 = vmatprep.subr.mxu0 0.0
        %5618 = vmatpush2.msra.mxu0 0.0
        %5619 = vmatprep.subr.mxu0 0.0
        %5620 = vmatpush2.msra.mxu0 0.0
        %5621 = vmatprep.subr.mxu0 0.0
        %5622 = vmatpush2.msra.mxu0 0.0
        %5623 = vmatprep.subr.mxu0 0.0
        %5624 = vmatpush2.msra.mxu0 0.0
        %5625 = vmatprep.subr.mxu0 0.0
        %5626 = vmatpush2.msra.mxu0 0.0
        %5627 = vmatprep.subr.mxu0 0.0
        %5628 = vmatpush2.msra.mxu0 0.0
        %5629 = vmatprep.subr.mxu0 0.0
        %5630 = vmatpush2.msra.mxu0 0.0
        %5631 = vmatprep.subr.mxu0 0.0
        %5632 = vmatpush2.msra.mxu0 0.0
        %5633 = vmatprep.subr.mxu0 0.0
        %5634 = vmatpush2.msra.mxu0 0.0
        %5635 = vmatprep.subr.mxu0 0.0
        %5636 = vmatpush2.msra.mxu0 0.0
        %5637 = vmatprep.subr.mxu0 0.0
        %5638 = vmatpush2.msra.mxu0 0.0
        %5639 = vmatprep.subr.mxu0 0.0
        %5640 = vmatpush2.msra.mxu0 0.0
        %5641 = vmatprep.subr.mxu0 0.0
        %5642 = vmatpush2.msra.mxu0 0.0
        %5643 = vmatprep.mubr.f32.mxu0 0.0
        %v5644 = vand.u32 %v4172, 4294901760
        %5645 = vmatmul.mubr.f32.gmra.mxu0 %v5644
        %v5646 = vpop.f32.mrf.mxu0
        %v5647 = vadd.f32 %v5570, %v5646
        %v5648 = vpop.f32.mrf.mxu0
        %5649 = vdwg.mxu0
        %5650 = vmatprep.subr.mxu0 0.0
        %5651 = vmatpush1.msra.mxu0 0.0
        %5652 = vmatprep.subr.mxu0 0.0
        %5653 = vmatpush1.msra.mxu0 0.0
        %5654 = vmatprep.subr.mxu0 0.0
        %5655 = vmatpush1.msra.mxu0 0.0
        %5656 = vmatprep.subr.mxu0 0.0
        %5657 = vmatpush1.msra.mxu0 0.0
        %5658 = vmatprep.subr.mxu0 0.0
        %5659 = vmatpush1.msra.mxu0 0.0
        %5660 = vmatprep.subr.mxu0 0.0
        %5661 = vmatpush1.msra.mxu0 0.0
        %5662 = vmatprep.subr.mxu0 0.0
        %5663 = vmatpush1.msra.mxu0 0.0
        %5664 = vmatprep.subr.mxu0 0.0
        %5665 = vmatpush1.msra.mxu0 0.0
        %5666 = vmatprep.subr.mxu0 0.0
        %5667 = vmatpush1.msra.mxu0 0.0
        %5668 = vmatprep.subr.mxu0 0.0
        %5669 = vmatpush1.msra.mxu0 0.0
        %5670 = vmatprep.subr.mxu0 0.0
        %5671 = vmatpush1.msra.mxu0 0.0
        %5672 = vmatprep.subr.mxu0 0.0
        %5673 = vmatpush1.msra.mxu0 0.0
        %5674 = vmatprep.subr.mxu0 0.0
        %5675 = vmatpush1.msra.mxu0 0.0
        %5676 = vmatprep.subr.mxu0 0.0
        %5677 = vmatpush1.msra.mxu0 0.0
        %5678 = vmatprep.subr.mxu0 0.0
        %v5679 = vand.u32 %v217, 4294901760
        %5680 = vmatpush1.msra.mxu0 %v5679
        %5681 = vmatprep.subr.mxu0 0.0
        %v5682 = vand.u32 %v216, 4294901760
        %5683 = vmatpush1.msra.mxu0 %v5682
        %5684 = vmatprep.subr.mxu0 0.0
        %5685 = vmatpush2.msra.mxu0 0.0
        %5686 = vmatprep.subr.mxu0 0.0
        %5687 = vmatpush2.msra.mxu0 0.0
        %5688 = vmatprep.subr.mxu0 0.0
        %5689 = vmatpush2.msra.mxu0 0.0
        %5690 = vmatprep.subr.mxu0 0.0
        %5691 = vmatpush2.msra.mxu0 0.0
        %5692 = vmatprep.subr.mxu0 0.0
        %5693 = vmatpush2.msra.mxu0 0.0
        %5694 = vmatprep.subr.mxu0 0.0
        %5695 = vmatpush2.msra.mxu0 0.0
        %5696 = vmatprep.subr.mxu0 0.0
        %5697 = vmatpush2.msra.mxu0 0.0
        %5698 = vmatprep.subr.mxu0 0.0
        %5699 = vmatpush2.msra.mxu0 0.0
        %5700 = vmatprep.subr.mxu0 0.0
        %5701 = vmatpush2.msra.mxu0 0.0
        %5702 = vmatprep.subr.mxu0 0.0
        %5703 = vmatpush2.msra.mxu0 0.0
        %5704 = vmatprep.subr.mxu0 0.0
        %5705 = vmatpush2.msra.mxu0 0.0
        %5706 = vmatprep.subr.mxu0 0.0
        %5707 = vmatpush2.msra.mxu0 0.0
        %5708 = vmatprep.subr.mxu0 0.0
        %5709 = vmatpush2.msra.mxu0 0.0
        %5710 = vmatprep.subr.mxu0 0.0
        %5711 = vmatpush2.msra.mxu0 0.0
        %5712 = vmatprep.subr.mxu0 0.0
        %5713 = vmatpush2.msra.mxu0 0.0
        %5714 = vmatprep.subr.mxu0 0.0
        %5715 = vmatpush2.msra.mxu0 0.0
        %5716 = vmatprep.mubr.f32.mxu0 0.0
        %v5717 = vand.u32 %v4172, 4294901760
        %5718 = vmatmul.mubr.f32.gmra.mxu0 %v5717
        %v5719 = vpop.f32.mrf.mxu0
        %v5720 = vadd.f32 %v5647, %v5719
        %v5721 = vpop.f32.mrf.mxu0
        %5722 = vdwg.mxu0
        %v5723 = vadd.f32 %v2426, %v3516
        %v5724 = vadd.f32 %v5723, %v4630
        %v5725 = vadd.f32 %v5724, %v5720
        %v5726 = vrcp.pop %v5725
        %v5727 = vmul.f32 %v2426, %v5726
        %v5728 = vmul.f32 %v3516, %v5726
        %v5729 = vmul.f32 %v4630, %v5726
        %v5730 = vmul.f32 %v5720, %v5726
        %v5731 = vmul.f32 %v1940, %v5727
        %v5732 = vmul.f32 %v3033, %v5728
        %v5733 = vadd.f32 %v5731, %v5732
        %v5734 = vmul.f32 %v4143, %v5729
        %v5735 = vadd.f32 %v5733, %v5734
        %v5736 = vmul.f32 %v5237, %v5730
        %v5737 = vadd.f32 %v5735, %v5736
        %v5738 = vmul.f32 %v1946, %v5727
        %v5739 = vmul.f32 %v3039, %v5728
        %v5740 = vadd.f32 %v5738, %v5739
        %v5741 = vmul.f32 %v4149, %v5729
        %v5742 = vadd.f32 %v5740, %v5741
        %v5743 = vmul.f32 %v5243, %v5730
        %v5744 = vadd.f32 %v5742, %v5743
        %v5745 = vmul.f32 %v1952, %v5727
        %v5746 = vmul.f32 %v3045, %v5728
        %v5747 = vadd.f32 %v5745, %v5746
        %v5748 = vmul.f32 %v4155, %v5729
        %v5749 = vadd.f32 %v5747, %v5748
        %v5750 = vmul.f32 %v5249, %v5730
        %v5751 = vadd.f32 %v5749, %v5750
        %v5752 = vsub.f32 %v1940, %v5737
        %v5753 = vmul.f32 %v5752, %v5752
        %v5754 = vsub.f32 %v3033, %v5737
        %v5755 = vmul.f32 %v5754, %v5754
        %v5756 = vsub.f32 %v4143, %v5737
        %v5757 = vmul.f32 %v5756, %v5756
        %v5758 = vsub.f32 %v5237, %v5737
        %v5759 = vmul.f32 %v5758, %v5758
        %v5760 = vmul.f32 %v5753, %v5727
        %v5761 = vmul.f32 %v5755, %v5728
        %v5762 = vadd.f32 %v5760, %v5761
        %v5763 = vmul.f32 %v5757, %v5729
        %v5764 = vadd.f32 %v5762, %v5763
        %v5765 = vmul.f32 %v5759, %v5730
        %v5766 = vadd.f32 %v5764, %v5765
        %v5767 = vadd.f32 %v5751, %v5766
        %v5768 = vmul.f32 %v1958, %v5727
        %v5769 = vmul.f32 %v3051, %v5728
        %v5770 = vadd.f32 %v5768, %v5769
        %v5771 = vmul.f32 %v4161, %v5729
        %v5772 = vadd.f32 %v5770, %v5771
        %v5773 = vmul.f32 %v5255, %v5730
        %v5774 = vadd.f32 %v5772, %v5773
        %v5775 = vsub.f32 %v1946, %v5744
        %v5776 = vmul.f32 %v5775, %v5775
        %v5777 = vsub.f32 %v3039, %v5744
        %v5778 = vmul.f32 %v5777, %v5777
        %v5779 = vsub.f32 %v4149, %v5744
        %v5780 = vmul.f32 %v5779, %v5779
        %v5781 = vsub.f32 %v5243, %v5744
        %v5782 = vmul.f32 %v5781, %v5781
        %v5783 = vmul.f32 %v5776, %v5727
        %v5784 = vmul.f32 %v5778, %v5728
        %v5785 = vadd.f32 %v5783, %v5784
        %v5786 = vmul.f32 %v5780, %v5729
        %v5787 = vadd.f32 %v5785, %v5786
        %v5788 = vmul.f32 %v5782, %v5730
        %v5789 = vadd.f32 %v5787, %v5788
        %v5790 = vadd.f32 %v5774, %v5789
        %v5791 = vmul.f32 %v5727, %v5727
        %v5792 = vmul.f32 %v5728, %v5728
        %v5793 = vmul.f32 %v5729, %v5729
        %v5794 = vmul.f32 %v5730, %v5730
        %v5795 = vmul.f32 %v1964, %v5727
        %v5796 = vmul.f32 %v3057, %v5728
        %v5797 = vadd.f32 %v5795, %v5796
        %v5798 = vmul.f32 %v4167, %v5729
        %v5799 = vadd.f32 %v5797, %v5798
        %v5800 = vmul.f32 %v5261, %v5730
        %v5801 = vadd.f32 %v5799, %v5800
        %v5802 = vmul.f32 %v5752, %v5775
        %v5803 = vmul.f32 %v5754, %v5777
        %v5804 = vmul.f32 %v5756, %v5779
        %v5805 = vmul.f32 %v5758, %v5781
        %v5806 = vmul.f32 %v5802, %v5791
        %v5807 = vmul.f32 %v5803, %v5792
        %v5808 = vadd.f32 %v5806, %v5807
        %v5809 = vmul.f32 %v5804, %v5793
        %v5810 = vadd.f32 %v5808, %v5809
        %v5811 = vmul.f32 %v5805, %v5794
        %v5812 = vadd.f32 %v5810, %v5811
        %v5813 = vadd.f32 %v5801, %v5812
        %vm5814 = vcmask 64512
        %5815 = vst.msk [vmem:[%s213] sm:$0xff] %vm5814, %v1209
        %5816 = vst.msk [vmem:[%s213 + $0x8] sm:$0xff] %vm5814, %v1215
        %5817 = vst.msk [vmem:[%s213 + $0x10] sm:$0xff] %vm5814, %v1221
        %5818 = vst.msk [vmem:[%s213 + $0x18] sm:$0xff] %vm5814, %v1227
        %5819 = vst.msk [vmem:[%s213 + $0x20] sm:$0xff] %vm5814, %v1233
        %5820 = vst.msk [vmem:[%s213 + $0x28] sm:$0xff] %vm5814, %v1239
        %5821 = vst.msk [vmem:[%s213 + $0x30] sm:$0xff] %vm5814, %v1245
        %5822 = vst.msk [vmem:[%s213 + $0x38] sm:$0xff] %vm5814, %v1251
        %5823 = vst.msk [vmem:[%s213 + $0x40] sm:$0xff] %vm5814, %v1257
        %5824 = vst.msk [vmem:[%s213 + $0x48] sm:$0xff] %vm5814, %v1263
        %5825 = vst.msk [vmem:[%s213 + $0x50] sm:$0xff] %vm5814, %v1269
        %s5826 = scalar_lea.vmem %s213, 88
        %5827 = vst.msk [vmem:[%s5826] sm:$0xff] %vm5814, %v5737
        %s5828 = scalar_lea.vmem %s213, 96
        %5829 = vst.msk [vmem:[%s5828] sm:$0xff] %vm5814, %v5744
        %s5830 = scalar_lea.vmem %s213, 104
        %5831 = vst.msk [vmem:[%s5830] sm:$0xff] %vm5814, %v5767
        %s5832 = scalar_lea.vmem %s213, 112
        %5833 = vst.msk [vmem:[%s5832] sm:$0xff] %vm5814, %v5790
        %s5834 = scalar_lea.vmem %s213, 120
        %5835 = vst.msk [vmem:[%s5834] sm:$0xff] %vm5814, %v5813
        %p5836 = scmp.lt.s32.totalorder %s21, 1
        %s5837 = scalar_select %p5836, %s21, 1
        %p5838 = scmp.lt.s32.totalorder %s22, 0
        %s5839 = scalar_select %p5838, %s22, 0
        %s5840 = smul.addr %s5837, 16
        %s5841 = sadd.s32 %s5839, %s5840
        %s5842 = smul.addr %s5841, 8
        %s5843 = scalar_lea.vmem %s3, %s5842
        // Predicated region
        $region37: #{tpu_custom_call.1} parent=31 // pred_check
          %p5844 = pneg %p119
        $region38: #{tpu_custom_call.1} parent=31 // pred_check_branch
          %5846 = sbr.rel (%p5844) target = $region40
        $region39: #{tpu_custom_call.1} parent=31 // pred_region
          _
        $region40: #{tpu_custom_call.1} parent=31 // pred_fallthru
          _
      $region32: #{tpu_custom_call.1} parent=5 // pred_fallthru
        _
      %p5847 = scmp.le.s32.totalorder 2, %s12
      // Predicated region
      $region41: #{tpu_custom_call.1} parent=5 // pred_check
        %p5848 = pneg %p5847
      $region42: #{tpu_custom_call.1} parent=5 // pred_check_branch
        %5850 = sbr.rel (%p5848) target = $region44
      $region43: #{tpu_custom_call.1} parent=5 // pred_region
        %s5851 = ssub.s32 %s12, 2
        // Predicated region
        $region45: #{tpu_custom_call.1} parent=43 // pred_check
          %p5852 = pneg %p125
        $region46: #{tpu_custom_call.1} parent=43 // pred_check_branch
          %5854 = sbr.rel (%p5852) target = $region48
        $region47: #{tpu_custom_call.1} parent=43 // pred_region
          %p5855 = scmp.lt.s32.totalorder %s23, 1
          %s5856 = scalar_select %p5855, %s23, 1
          %p5857 = scmp.lt.s32.totalorder %s24, 0
          %s5858 = scalar_select %p5857, %s24, 0
          %s5859 = smul.addr %s5856, 16
          %s5860 = sadd.s32 %s5858, %s5859
          %s5861 = smul.addr %s5860, 8
          %s5862 = scalar_lea.vmem %s3, %s5861
        $region48: #{tpu_custom_call.1} parent=43 // pred_fallthru
          _
      $region44: #{tpu_custom_call.1} parent=5 // pred_fallthru
        _
    $region6: #{tpu_custom_call.1} parent=1 // loop_footer
      %s16 = sadd.s32 1, %s12
    $region7: #{tpu_custom_call.1} parent=1 // loop_footer_branch
      %11 = sbr.rel target = $region3
    $region8: #{tpu_custom_call.1} parent=1 // loop_exit
      _
    %5863 = vsyncpa [#allocation3], 1
    %s5864 = scalar_lea.sflag [#allocation3], 1
    %5865 = vsyncpa %s5864, 1

</llo_original>
